<compile_context>
chip_gen: v6e
topology: v6e:2x2x1
jax: 0.10.0
libtpu: 0.0.40
codegen_flags: <defaults>
</compile_context>

<pallas_src>
import functools

import numpy as np
import jax
import jax.numpy as jnp
from jax.experimental import pallas as pl
from jax.experimental.pallas import tpu as pltpu


# --------------------------------------------------------------------------
# Tiling helpers
# --------------------------------------------------------------------------

def _pick_tile(dim, target):
    """Largest multiple-of-128 divisor of `dim` that is <= target, else dim."""
    if dim <= target:
        return dim
    t = (target // 128) * 128
    while t >= 128:
        if dim % t == 0:
            return t
        t -= 128
    return dim          # fall back to the full (untiled) dim -> always legal


# --------------------------------------------------------------------------
# Feature extractor stand-in + global average pool
# --------------------------------------------------------------------------

def _feat_pool_kernel(x_ref, w_ref, b_ref, o_ref, col_acc, *, inv_hw):
    """Pointwise conv + ReLU + global average pool for one frame / HW tile.

    Grid = (N frames, HW tiles); both axes 'arbitrary' (resident output).

    x_ref  : (1, Cin, thw)   channel-major pixel tile of one frame
    w_ref  : (Cf, Cin)       pointwise-conv weight, pre-transposed
    b_ref  : (Cf, 1)         bias
    o_ref  : (Cf, N)         pooled features (transposed), bf16, VMEM-resident
    col_acc: (Cf, 1) f32     per-frame pooling accumulator (scratch)
    """
    n = pl.program_id(0)
    k = pl.program_id(1)

    @pl.when(jnp.logical_and(n == 0, k == 0))
    def _():
        o_ref[...] = jnp.zeros_like(o_ref)

    x = x_ref[0].astype(jnp.float32)            # (Cin, thw), pixels on lanes
    w = w_ref[...]                              # (Cf, Cin)
    cin, thw = x.shape
    cf, n_frames = o_ref.shape

    # pointwise "conv" as Cin VPU FMA outer products (no K=Cin MXU matmul).
    f = w[:, 0:1] * x[0:1, :]                   # (Cf,1)*(1,thw) -> (Cf, thw)
    for c in range(1, cin):                     # static tiny loop (Cin <= 3)
        f = f + w[:, c:c + 1] * x[c:c + 1, :]
    f = jnp.maximum(f + b_ref[...], 0.0)        # bias + ReLU

    # global average pool contribution of this tile: lane reduction.
    part = jnp.sum(f, axis=1, keepdims=True) * inv_hw     # (Cf, 1) f32

    @pl.when(k == 0)
    def _():
        col_acc[...] = jnp.zeros_like(col_acc)
    col_acc[...] += part

    @pl.when(k == pl.num_programs(1) - 1)
    def _():
        # insert this frame's pooled column into the resident (Cf, N) block
        lane = jax.lax.broadcasted_iota(jnp.int32, (cf, n_frames), 1)
        o_ref[...] = jnp.where(lane == n, col_acc[...],
                               o_ref[...].astype(jnp.float32)).astype(o_ref.dtype)


def feature_and_pool(x3, w_t, b_col, *, hw_tile_target=512):
    """(N, Cin, HW) -> (Cf, N) pooled per-frame features (transposed, bf16)."""
    N, cin, HW = x3.shape
    cf = w_t.shape[0]
    thw = _pick_tile(HW, hw_tile_target)
    n_hw = HW // thw
    kernel = functools.partial(_feat_pool_kernel, inv_hw=1.0 / HW)
    return pl.pallas_call(
        kernel,
        out_shape=jax.ShapeDtypeStruct((cf, N), jnp.bfloat16),
        grid_spec=pltpu.PrefetchScalarGridSpec(
            num_scalar_prefetch=0,
            grid=(N, n_hw),
            in_specs=[
                pl.BlockSpec((1, cin, thw), lambda n, k: (n, 0, k)),
                pl.BlockSpec((cf, cin), lambda n, k: (0, 0)),
                pl.BlockSpec((cf, 1), lambda n, k: (0, 0)),
            ],
            out_specs=pl.BlockSpec((cf, N), lambda n, k: (0, 0)),
            scratch_shapes=[pltpu.VMEM((cf, 1), jnp.float32)],
        ),
        compiler_params=pltpu.CompilerParams(
            dimension_semantics=("arbitrary", "arbitrary"),
            vmem_limit_bytes=32 * 1024 * 1024),
    )(x3, w_t, b_col)


# --------------------------------------------------------------------------
# Tiled Linear (+bias, optional ReLU) with f32 accumulation
# --------------------------------------------------------------------------

def _linear_kernel(x_ref, w_ref, b_ref, o_ref, acc_ref, *, relu):
    """Grid = (N_tiles, K_tiles); K last ('arbitrary'), N 'parallel'."""
    k = pl.program_id(1)

    @pl.when(k == 0)
    def _():
        acc_ref[...] = jnp.zeros_like(acc_ref)

    acc_ref[...] += jnp.dot(x_ref[...].astype(w_ref.dtype), w_ref[...],
                            preferred_element_type=jnp.float32)

    @pl.when(k == pl.num_programs(1) - 1)
    def _():
        r = acc_ref[...] + b_ref[...]
        if relu:
            r = jnp.maximum(r, 0.0)
        o_ref[...] = r.astype(o_ref.dtype)


def linear(x, w, b, *, relu, out_dtype, tn_target=1024, tk_target=2048):
    """y = act(x @ w + b).  bf16 weights, f32 MXU accumulation in VMEM scratch.

    tn_target=1024 keeps >=2 parallel output tiles for the 2048-wide layers so
    the grid shards across v7x's two TensorCores (one extra ~0.35us step on
    v5e/v6e, negligible next to the weight DMA).
    """
    M, K = x.shape
    _, N = w.shape
    tk = _pick_tile(K, tk_target)
    tn = _pick_tile(N, tn_target)
    kernel = functools.partial(_linear_kernel, relu=relu)
    return pl.pallas_call(
        kernel,
        out_shape=jax.ShapeDtypeStruct((M, N), out_dtype),
        grid_spec=pltpu.PrefetchScalarGridSpec(
            num_scalar_prefetch=0,
            grid=(N // tn, K // tk),
            in_specs=[
                pl.BlockSpec((M, tk), lambda j, k: (0, k)),
                pl.BlockSpec((tk, tn), lambda j, k: (k, j)),
                pl.BlockSpec((1, tn), lambda j, k: (0, j)),
            ],
            out_specs=pl.BlockSpec((M, tn), lambda j, k: (0, j)),
            scratch_shapes=[pltpu.VMEM((M, tn), jnp.float32)],
        ),
        compiler_params=pltpu.CompilerParams(
            dimension_semantics=("parallel", "arbitrary"),
            vmem_limit_bytes=32 * 1024 * 1024),
    )(x, w, b)


# --------------------------------------------------------------------------
# Model wrapper (parameter setup + layout glue)
# --------------------------------------------------------------------------

class JointResNetMobileNetV2Pallas:
    """fusion_point != 'logits' path of JointResNetMobileNetV2."""

    def __init__(self, depth, num_frames, modality, num_classes, input_channels,
                 key):
        self.depth = depth
        self.num_frames = num_frames
        self.modality = modality
        self.num_classes = num_classes
        self.input_channels = input_channels

        # last_channels exactly as in the reference __init__
        self.last_channels = []
        for m in modality:
            if m != 'sound':
                self.last_channels.append(2048 if depth >= 50 else 512)
            else:
                self.last_channels.append(1280)        # MobileNetV2 last_channel

        in_feature_c = sum(self.last_channels)
        out_feature_c = 2048

        keys = jax.random.split(key, 2 * len(modality) + 6)
        ki = iter(range(len(keys)))

        # per-modality stand-in feature extractor params, stored pre-transposed:
        #   w_t: (Cf, Cin) f32, b: (Cf, 1) f32  (Cin-as-lane never hits the MXU)
        self.feat_params = []
        for cin, cf in zip(input_channels, self.last_channels):
            w = 0.05 * jax.random.normal(keys[next(ki)], (cf, cin), jnp.float32)
            b = 0.01 * jax.random.normal(keys[next(ki)], (cf, 1), jnp.float32)
            self.feat_params.append((w, b))

        # joint = Linear(in_feature_c, 2048) + ReLU + Linear(2048, 2048) + ReLU
        # weights in bf16 (memory-bound layers), biases in f32.
        self.joint1_w = (0.02 * jax.random.normal(
            keys[next(ki)], (in_feature_c, out_feature_c), jnp.float32)
        ).astype(jnp.bfloat16)
        self.joint1_b = 0.01 * jax.random.normal(keys[next(ki)],
                                                 (1, out_feature_c), jnp.float32)
        self.joint2_w = (0.02 * jax.random.normal(
            keys[next(ki)], (out_feature_c, out_feature_c), jnp.float32)
        ).astype(jnp.bfloat16)
        self.joint2_b = 0.01 * jax.random.normal(keys[next(ki)],
                                                 (1, out_feature_c), jnp.float32)

        # fc = Linear(2048, num_classes), output lanes padded to a multiple of
        # 128 so the kernel's stores are lane-dense; sliced back after the call.
        self.num_classes_padded = ((num_classes + 127) // 128) * 128
        pad = self.num_classes_padded - num_classes
        fc_w = 0.02 * jax.random.normal(keys[next(ki)],
                                        (out_feature_c, num_classes), jnp.float32)
        fc_b = 0.01 * jax.random.normal(keys[next(ki)], (1, num_classes), jnp.float32)
        self.fc_w = jnp.pad(fc_w, ((0, 0), (0, pad))).astype(jnp.bfloat16)
        self.fc_b = jnp.pad(fc_b, ((0, 0), (0, pad)))              # f32

    def forward(self, multi_modalities):
        bs = multi_modalities[0].shape[0]
        T = self.num_frames
        N = bs * T

        feats_t = []
        for i, x in enumerate(multi_modalities):
            cin = self.input_channels[i]
            H, W = x.shape[2], x.shape[3]
            # pure reshape (channel-major per frame preserved) -> no HBM transpose
            x3 = x.reshape(N, cin, H * W)
            w_t, b_col = self.feat_params[i]
            feats_t.append(feature_and_pool(x3, w_t, b_col))       # (Cf_i, N) bf16

        # tiny (sum_C, N) -> (N, sum_C) transpose + concat (a few KiB, XLA glue)
        h = jnp.concatenate(feats_t, axis=0).T                     # (N, sum_C) bf16
        h = linear(h, self.joint1_w, self.joint1_b, relu=True, out_dtype=jnp.bfloat16)
        h = linear(h, self.joint2_w, self.joint2_b, relu=True, out_dtype=jnp.bfloat16)
        # dropout: identity in inference

        # fc is affine => mean_t(h_t W + b) == (mean_t h_t) W + b : hoist the mean
        h = h.astype(jnp.float32).reshape(bs, T, -1).mean(axis=1)  # (bs, 2048)
        out = linear(h, self.fc_w, self.fc_b, relu=False, out_dtype=jnp.float32)
        return out[:, :self.num_classes]


# --------------------------------------------------------------------------
# Pure numpy reference (same math, sanity check)
# --------------------------------------------------------------------------

def reference_forward(model, multi_modalities):
    bs = multi_modalities[0].shape[0]
    T = model.num_frames
    nc = model.num_classes
    pooled = []
    for i, x in enumerate(multi_modalities):
        cin = model.input_channels[i]
        x = np.asarray(x)
        H, W = x.shape[2], x.shape[3]
        xf = x.reshape(bs * T, cin, H * W)
        w_t = np.asarray(model.feat_params[i][0]).astype(np.float32)   # (Cf, Cin)
        b = np.asarray(model.feat_params[i][1]).astype(np.float32)     # (Cf, 1)
        f = np.einsum('ncp,dc->npd', xf, w_t) + b[:, 0][None, None, :]
        f = np.maximum(f, 0.0)
        pooled.append(f.mean(axis=1))                                  # (N, Cf)
    h = np.concatenate(pooled, axis=1)
    w1 = np.asarray(model.joint1_w).astype(np.float32)
    b1 = np.asarray(model.joint1_b).astype(np.float32)
    w2 = np.asarray(model.joint2_w).astype(np.float32)
    b2 = np.asarray(model.joint2_b).astype(np.float32)
    wf = np.asarray(model.fc_w).astype(np.float32)[:, :nc]
    bf = np.asarray(model.fc_b).astype(np.float32)[:, :nc]
    h = np.maximum(h @ w1 + b1, 0.0)
    h = np.maximum(h @ w2 + b2, 0.0)
    logits = h @ wf + bf
    return logits.reshape(bs, T, -1).mean(axis=1)


# --------------------------------------------------------------------------

if __name__ == "__main__":
    key = jax.random.PRNGKey(0)
    k_model, k_rgb, k_snd = jax.random.split(key, 3)

    bs, T, H, W = 2, 4, 16, 16
    num_classes = 128
    modality = ('rgb', 'sound')
    input_channels = (3, 1)

    model = JointResNetMobileNetV2Pallas(
        depth=18, num_frames=T, modality=modality, num_classes=num_classes,
        input_channels=input_channels, key=k_model)

    # inputs follow the PyTorch convention: NCHW with frames folded into channels
    x_rgb = jax.random.normal(k_rgb, (bs, T * input_channels[0], H, W), jnp.float32)
    x_snd = jax.random.normal(k_snd, (bs, T * input_channels[1], H, W), jnp.float32)

    out = model.forward([x_rgb, x_snd])
    out = jax.block_until_ready(out)

    ref = reference_forward(model, [x_rgb, x_snd])
    assert out.shape == (bs, num_classes), out.shape
    np.testing.assert_allclose(np.asarray(out), ref, rtol=5e-2, atol=1e-2)

    print("KERNEL_OK")
</pallas_src>

<mosaic_0001>
module attributes {stable_mosaic.version = 11 : i64} {
  func.func @_feat_pool_kernel(%arg0: i32, %arg1: i32, %arg2: memref<1x3x256xf32, #tpu.memory_space<vmem>>, %arg3: memref<512x3xf32, #tpu.memory_space<vmem>>, %arg4: memref<512x1xf32, #tpu.memory_space<vmem>>, %arg5: memref<512x8xbf16, #tpu.memory_space<vmem>>, %arg6: memref<512x1xf32, #tpu.memory_space<vmem>>) attributes {dimension_semantics = [#tpu.dimension_semantics<arbitrary>, #tpu.dimension_semantics<arbitrary>], iteration_bounds = array<i64: 8, 1>, scalar_prefetch = 0 : i64, scratch_operands = 1 : i64, tpu.core_type = #tpu.core_type<tc>, window_params = [{transform_indices = @transform_0, window_bounds = array<i64: 1, 3, 256>}, {pipeline_mode = #tpu.pipeline_mode<synchronous>, transform_indices = @transform_1, window_bounds = array<i64: 512, 3>}, {pipeline_mode = #tpu.pipeline_mode<synchronous>, transform_indices = @transform_2, window_bounds = array<i64: 512, 1>}, {pipeline_mode = #tpu.pipeline_mode<synchronous>, transform_indices = @transform_3, window_bounds = array<i64: 512, 8>}]} {
    %c0_i32 = arith.constant 0 : i32
    %0 = arith.cmpi eq, %arg0, %c0_i32 : i32
    %c0_i32_0 = arith.constant 0 : i32
    %1 = arith.cmpi eq, %arg1, %c0_i32_0 : i32
    %2 = arith.andi %0, %1 : i1
    %3 = arith.extui %2 : i1 to i32
    %c0_i32_1 = arith.constant 0 : i32
    %4 = arith.cmpi ne, %3, %c0_i32_1 : i32
    scf.if %4 {
      %cst_18 = arith.constant 0.000000e+00 : bf16
      %43 = vector.broadcast %cst_18 : bf16 to vector<512x8xbf16>
      %c0_19 = arith.constant 0 : index
      %c0_20 = arith.constant 0 : index
      %44 = vector.load %arg5[%c0_19, %c0_20] : memref<512x8xbf16, #tpu.memory_space<vmem>>, vector<512x8xbf16>
      tpu.vector_store %arg5[%c0_19, %c0_20], %43 {strides = array<i32>} : memref<512x8xbf16, #tpu.memory_space<vmem>>, vector<512x8xbf16>,
    } else {
    }
    %c0 = arith.constant 0 : index
    %c0_2 = arith.constant 0 : index
    %c0_3 = arith.constant 0 : index
    %5 = vector.load %arg2[%c0, %c0_2, %c0_3] : memref<1x3x256xf32, #tpu.memory_space<vmem>>, vector<1x3x256xf32>
    %6 = vector.shape_cast %5 : vector<1x3x256xf32> to vector<3x256xf32>
    %c0_4 = arith.constant 0 : index
    %c0_5 = arith.constant 0 : index
    %7 = vector.load %arg3[%c0_4, %c0_5] : memref<512x3xf32, #tpu.memory_space<vmem>>, vector<512x3xf32>
    %8 = vector.extract_strided_slice %7 {offsets = [0, 0], sizes = [512, 1], strides = [1, 1]} : vector<512x3xf32> to vector<512x1xf32>
    %9 = vector.extract_strided_slice %6 {offsets = [0, 0], sizes = [1, 256], strides = [1, 1]} : vector<3x256xf32> to vector<1x256xf32>
    %10 = vector.broadcast %8 : vector<512x1xf32> to vector<512x256xf32>
    %11 = vector.broadcast %9 : vector<1x256xf32> to vector<512x256xf32>
    %12 = arith.mulf %10, %11 : vector<512x256xf32>
    %13 = vector.extract_strided_slice %7 {offsets = [0, 1], sizes = [512, 1], strides = [1, 1]} : vector<512x3xf32> to vector<512x1xf32>
    %14 = vector.extract_strided_slice %6 {offsets = [1, 0], sizes = [1, 256], strides = [1, 1]} : vector<3x256xf32> to vector<1x256xf32>
    %15 = vector.broadcast %13 : vector<512x1xf32> to vector<512x256xf32>
    %16 = vector.broadcast %14 : vector<1x256xf32> to vector<512x256xf32>
    %17 = arith.mulf %15, %16 : vector<512x256xf32>
    %18 = arith.addf %12, %17 : vector<512x256xf32>
    %19 = vector.extract_strided_slice %7 {offsets = [0, 2], sizes = [512, 1], strides = [1, 1]} : vector<512x3xf32> to vector<512x1xf32>
    %20 = vector.extract_strided_slice %6 {offsets = [2, 0], sizes = [1, 256], strides = [1, 1]} : vector<3x256xf32> to vector<1x256xf32>
    %21 = vector.broadcast %19 : vector<512x1xf32> to vector<512x256xf32>
    %22 = vector.broadcast %20 : vector<1x256xf32> to vector<512x256xf32>
    %23 = arith.mulf %21, %22 : vector<512x256xf32>
    %24 = arith.addf %18, %23 : vector<512x256xf32>
    %c0_6 = arith.constant 0 : index
    %c0_7 = arith.constant 0 : index
    %25 = vector.load %arg4[%c0_6, %c0_7] : memref<512x1xf32, #tpu.memory_space<vmem>>, vector<512x1xf32>
    %26 = vector.broadcast %25 : vector<512x1xf32> to vector<512x256xf32>
    %27 = arith.addf %24, %26 : vector<512x256xf32>
    %cst = arith.constant 0.000000e+00 : f32
    %28 = vector.broadcast %cst : f32 to vector<512x256xf32>
    %29 = arith.maximumf %27, %28 : vector<512x256xf32>
    %cst_8 = arith.constant dense<0.000000e+00> : vector<512xf32>
    %30 = vector.multi_reduction <add>, %29, %cst_8 [1] : vector<512x256xf32> to vector<512xf32>
    %31 = vector.shape_cast %30 : vector<512xf32> to vector<512x1xf32>
    %cst_9 = arith.constant 3.906250e-03 : f32
    %32 = vector.broadcast %cst_9 : f32 to vector<512x1xf32>
    %33 = arith.mulf %31, %32 : vector<512x1xf32>
    %c0_i32_10 = arith.constant 0 : i32
    %34 = arith.cmpi eq, %arg1, %c0_i32_10 : i32
    %35 = arith.extui %34 : i1 to i32
    %c0_i32_11 = arith.constant 0 : i32
    %36 = arith.cmpi ne, %35, %c0_i32_11 : i32
    scf.if %36 {
      %cst_18 = arith.constant 0.000000e+00 : f32
      %43 = vector.broadcast %cst_18 : f32 to vector<512x1xf32>
      %c0_19 = arith.constant 0 : index
      %c0_20 = arith.constant 0 : index
      %44 = vector.load %arg6[%c0_19, %c0_20] : memref<512x1xf32, #tpu.memory_space<vmem>>, vector<512x1xf32>
      tpu.vector_store %arg6[%c0_19, %c0_20], %43 {strides = array<i32>} : memref<512x1xf32, #tpu.memory_space<vmem>>, vector<512x1xf32>,
    } else {
    }
    %c0_12 = arith.constant 0 : index
    %c0_13 = arith.constant 0 : index
    %37 = vector.load %arg6[%c0_12, %c0_13] : memref<512x1xf32, #tpu.memory_space<vmem>>, vector<512x1xf32>
    %38 = arith.addf %37, %33 : vector<512x1xf32>
    %c0_14 = arith.constant 0 : index
    %c0_15 = arith.constant 0 : index
    %39 = vector.load %arg6[%c0_14, %c0_15] : memref<512x1xf32, #tpu.memory_space<vmem>>, vector<512x1xf32>
    tpu.vector_store %arg6[%c0_14, %c0_15], %38 {strides = array<i32>} : memref<512x1xf32, #tpu.memory_space<vmem>>, vector<512x1xf32>,
    %c0_i32_16 = arith.constant 0 : i32
    %40 = arith.cmpi eq, %arg1, %c0_i32_16 : i32
    %41 = arith.extui %40 : i1 to i32
    %c0_i32_17 = arith.constant 0 : i32
    %42 = arith.cmpi ne, %41, %c0_i32_17 : i32
    scf.if %42 {
      %43 = tpu.iota {dimensions = array<i32: 1>} : vector<512x8xi32>
      %44 = vector.broadcast %arg0 : i32 to vector<512x8xi32>
      %45 = arith.cmpi eq, %43, %44 : vector<512x8xi32>
      %c0_18 = arith.constant 0 : index
      %c0_19 = arith.constant 0 : index
      %46 = vector.load %arg6[%c0_18, %c0_19] : memref<512x1xf32, #tpu.memory_space<vmem>>, vector<512x1xf32>
      %c0_20 = arith.constant 0 : index
      %c0_21 = arith.constant 0 : index
      %47 = vector.load %arg5[%c0_20, %c0_21] : memref<512x8xbf16, #tpu.memory_space<vmem>>, vector<512x8xbf16>
      %48 = arith.extf %47 : vector<512x8xbf16> to vector<512x8xf32>
      %49 = vector.shape_cast %46 : vector<512x1xf32> to vector<512x1xf32>
      %50 = vector.broadcast %49 : vector<512x1xf32> to vector<512x8xf32>
      %51 = arith.select %45, %50, %48 : vector<512x8xi1>, vector<512x8xf32>
      %52 = arith.truncf %51 : vector<512x8xf32> to vector<512x8xbf16>
      %c0_22 = arith.constant 0 : index
      %c0_23 = arith.constant 0 : index
      %53 = vector.load %arg5[%c0_22, %c0_23] : memref<512x8xbf16, #tpu.memory_space<vmem>>, vector<512x8xbf16>
      tpu.vector_store %arg5[%c0_22, %c0_23], %52 {strides = array<i32>} : memref<512x8xbf16, #tpu.memory_space<vmem>>, vector<512x8xbf16>,
    } else {
    }
    return
  }
  func.func @transform_0(%arg0: i32, %arg1: i32) -> (i32, i32, i32) {
    %c0_i32 = arith.constant 0 : i32
    %c0_i32_0 = arith.constant 0 : i32
    return %arg0, %c0_i32, %arg1 : i32, i32, i32
  }
  func.func @transform_1(%arg0: i32, %arg1: i32) -> (i32, i32) {
    %c0_i32 = arith.constant 0 : i32
    %c0_i32_0 = arith.constant 0 : i32
    %c0_i32_1 = arith.constant 0 : i32
    return %c0_i32, %c0_i32_0 : i32, i32
  }
  func.func @transform_2(%arg0: i32, %arg1: i32) -> (i32, i32) {
    %c0_i32 = arith.constant 0 : i32
    %c0_i32_0 = arith.constant 0 : i32
    %c0_i32_1 = arith.constant 0 : i32
    return %c0_i32, %c0_i32_0 : i32, i32
  }
  func.func @transform_3(%arg0: i32, %arg1: i32) -> (i32, i32) {
    %c0_i32 = arith.constant 0 : i32
    %c0_i32_0 = arith.constant 0 : i32
    %c0_i32_1 = arith.constant 0 : i32
    return %c0_i32, %c0_i32_0 : i32, i32
  }
}

</mosaic_0001>

<llo_original>
// kernel: tpu_custom_call.1
$region0: #{tpu_custom_call.1}
  #allocation0 [shape = 'u32[]', space=smem, size = 0x4, offset = 0x4, fixed_abs, tag = 'smem constant byte address 0x4 - core index']
  #allocation1 [shape = 'u32[144,128]{1,0:T(1,128)}', space=vmem, size = 0x12000, scoped, tag = 'internal scratch']
  #allocation2 [shape = 'f32[512,1]{1,0:T(8,128)}', space=vmem, size = 0x40000, scoped, tag = 'scratch operand']
  %s0 = inlined_call_operand.vmem [shape: f32[8,3,256], index: 0, kind: input, shape index: {}]
  %s1 = inlined_call_operand.vmem [shape: f32[512,3], index: 1, kind: input, shape index: {}]
  %s2 = inlined_call_operand.vmem [shape: f32[512,1], index: 2, kind: input, shape index: {}]
  %s3 = inlined_call_operand.vmem [shape: bf16[512,8], index: 3, kind: output, shape index: {}]
  %s4 = sld [smem:[#allocation0]]
  $region57: #{tpu_custom_call.1} parent=0
    _
  %s6 = ssub.s32 1, %s4
  %s7 = scalar_select 0, %s6, %s4
  loop: start=0, step=1, limit=10
  $region2: #{tpu_custom_call.1} parent=0 // loop_pre_header
    _
  $region3: #{tpu_custom_call.1} parent=0 // loop_header
    %s9 = sphi 0, %s13
    %p10 = scmp.ge.s32.totalorder %s9, 10
    %s16 = sphi 0, %s28
    %s17 = sphi 0, %s24
    %s18 = sphi 0, %s16
    %s19 = sphi 0, %s17
    %s20 = sphi 0, %s18
    %s21 = sphi 0, %s19
    %s33 = sphi 0, %s35
    %s36 = sphi 0, %s33
    %s37 = sphi 0, %s36
    %s53 = sphi 0, %s37
    %s57 = sphi 0, %s57
    %s59 = sphi 0, %s57
    %s60 = sphi 0, %s59
    %s74 = sphi 0, %s60
    %s78 = sphi 0, %s78
    %s80 = sphi 0, %s78
    %s81 = sphi 0, %s80
    %s95 = sphi 0, %s81
    %s99 = sphi 0, %s99
    %s101 = sphi 0, %s99
    %s102 = sphi 0, %s101
    %s116 = sphi 0, %s102
  $region4: #{tpu_custom_call.1} parent=0 // loop_header_branch
    %12 = sbr.rel (%p10) target = $region8
  $region5: #{tpu_custom_call.1} parent=0 // loop_body
    %s14 = ssub.s32 %s9, 1
    %s15 = ssub.s32 %s9, 2
    %s22 = sadd.s32 1, %s17
    %p23 = scmp.ge.s32.totalorder %s22, 1
    %s24 = scalar_select %p23, 0, %s22
    %s25 = sadd.s32 1, %s16
    %s26 = scalar_select %p23, %s25, %s16
    %p27 = scmp.ge.s32.totalorder %s26, 8
    %s28 = scalar_select %p27, 0, %s26
    %s29 = ssub.s32 %s16, %s28
    %s30 = ssub.s32 %s17, %s24
    %s31 = sor.u32 %s29, %s30
    %p32 = scmp.eq.s32.totalorder %s31, 0
    %s34 = sadd.s32 %s33, 1
    %s35 = scalar_select %p32, %s33, %s34
    %p38 = pneg %p32
    %p39 = scmp.eq.s32.totalorder %s9, 7
    %p40 = por %p38, %p39
    %p41 = scmp.ne.s32.totalorder %s33, %s36
    %p42 = scmp.eq.s32.totalorder %s9, 0
    %p43 = por %p41, %p42
    %p44 = scmp.ne.s32.totalorder %s33, %s36
    %p45 = scmp.eq.s32.totalorder %s14, 7
    %p46 = por %p44, %p45
    %p47 = scmp.ne.s32.totalorder %s36, %s37
    %p48 = scmp.eq.s32.totalorder %s14, 0
    %p49 = por %p47, %p48
    %p50 = scmp.ne.s32.totalorder %s36, %s37
    %p51 = scmp.eq.s32.totalorder %s15, 7
    %p52 = por %p50, %p51
    %p54 = scmp.ne.s32.totalorder %s37, %s53
    %p55 = scmp.eq.s32.totalorder %s15, 0
    %p56 = por %p54, %p55
    %s58 = sadd.s32 %s57, 1
    %p61 = scmp.eq.s32.totalorder %s9, 7
    %p62 = scmp.ne.s32.totalorder %s57, %s59
    %p63 = scmp.eq.s32.totalorder %s9, 0
    %p64 = por %p62, %p63
    %p65 = scmp.ne.s32.totalorder %s57, %s59
    %p66 = scmp.eq.s32.totalorder %s14, 7
    %p67 = por %p65, %p66
    %p68 = scmp.ne.s32.totalorder %s59, %s60
    %p69 = scmp.eq.s32.totalorder %s14, 0
    %p70 = por %p68, %p69
    %p71 = scmp.ne.s32.totalorder %s59, %s60
    %p72 = scmp.eq.s32.totalorder %s15, 7
    %p73 = por %p71, %p72
    %p75 = scmp.ne.s32.totalorder %s60, %s74
    %p76 = scmp.eq.s32.totalorder %s15, 0
    %p77 = por %p75, %p76
    %s79 = sadd.s32 %s78, 1
    %p82 = scmp.eq.s32.totalorder %s9, 7
    %p83 = scmp.ne.s32.totalorder %s78, %s80
    %p84 = scmp.eq.s32.totalorder %s9, 0
    %p85 = por %p83, %p84
    %p86 = scmp.ne.s32.totalorder %s78, %s80
    %p87 = scmp.eq.s32.totalorder %s14, 7
    %p88 = por %p86, %p87
    %p89 = scmp.ne.s32.totalorder %s80, %s81
    %p90 = scmp.eq.s32.totalorder %s14, 0
    %p91 = por %p89, %p90
    %p92 = scmp.ne.s32.totalorder %s80, %s81
    %p93 = scmp.eq.s32.totalorder %s15, 7
    %p94 = por %p92, %p93
    %p96 = scmp.ne.s32.totalorder %s81, %s95
    %p97 = scmp.eq.s32.totalorder %s15, 0
    %p98 = por %p96, %p97
    %s100 = sadd.s32 %s99, 1
    %p103 = scmp.eq.s32.totalorder %s9, 7
    %p104 = scmp.ne.s32.totalorder %s99, %s101
    %p105 = scmp.eq.s32.totalorder %s9, 0
    %p106 = por %p104, %p105
    %p107 = scmp.ne.s32.totalorder %s99, %s101
    %p108 = scmp.eq.s32.totalorder %s14, 7
    %p109 = por %p107, %p108
    %p110 = scmp.ne.s32.totalorder %s101, %s102
    %p111 = scmp.eq.s32.totalorder %s14, 0
    %p112 = por %p110, %p111
    %p113 = scmp.ne.s32.totalorder %s101, %s102
    %p114 = scmp.eq.s32.totalorder %s15, 7
    %p115 = por %p113, %p114
    %p117 = scmp.ne.s32.totalorder %s102, %s116
    %p118 = scmp.eq.s32.totalorder %s15, 0
    %p119 = por %p117, %p118
    %p120 = scmp.le.s32.totalorder 1, %s9
    %p121 = scmp.lt.s32.totalorder %s9, 9
    %p122 = pnand %p120, %p121
    %p123 = pneg %p122
    // Predicated region
    $region9: #{tpu_custom_call.1} parent=5 // pred_check
      _
    $region10: #{tpu_custom_call.1} parent=5 // pred_check_branch
      %125 = sbr.rel (%p122) target = $region12
    $region11: #{tpu_custom_call.1} parent=5 // pred_region
      %s126 = ssub.s32 %s9, 1
      // Predicated region
      $region13: #{tpu_custom_call.1} parent=11 // pred_check
        %p127 = pneg %p70
      $region14: #{tpu_custom_call.1} parent=11 // pred_check_branch
        %129 = sbr.rel (%p127) target = $region16
      $region15: #{tpu_custom_call.1} parent=11 // pred_region
        _
      $region16: #{tpu_custom_call.1} parent=11 // pred_fallthru
        _
      // Predicated region
      $region17: #{tpu_custom_call.1} parent=11 // pred_check
        %p130 = pneg %p91
      $region18: #{tpu_custom_call.1} parent=11 // pred_check_branch
        %132 = sbr.rel (%p130) target = $region20
      $region19: #{tpu_custom_call.1} parent=11 // pred_region
        _
      $region20: #{tpu_custom_call.1} parent=11 // pred_fallthru
        _
    $region12: #{tpu_custom_call.1} parent=5 // pred_fallthru
      _
    %p133 = scmp.lt.s32.totalorder %s9, 8
    // Predicated region
    $region21: #{tpu_custom_call.1} parent=5 // pred_check
      %p134 = pneg %p133
    $region22: #{tpu_custom_call.1} parent=5 // pred_check_branch
      %136 = sbr.rel (%p134) target = $region24
    $region23: #{tpu_custom_call.1} parent=5 // pred_region
      // Predicated region
      $region25: #{tpu_custom_call.1} parent=23 // pred_check
        %p137 = pneg %p43
      $region26: #{tpu_custom_call.1} parent=23 // pred_check_branch
        %139 = sbr.rel (%p137) target = $region28
      $region27: #{tpu_custom_call.1} parent=23 // pred_region
        %s140 = smul.u32 2, %s17
        %p141 = scmp.lt.s32.totalorder %s16, 7
        %s142 = scalar_select %p141, %s16, 7
        %p143 = scmp.lt.s32.totalorder %s140, 1
        %s144 = scalar_select %p143, %s140, 1
        %s145 = smul.addr %s142, 2
        %s146 = sadd.s32 %s144, %s145
        %s147 = smul.addr %s146, 4
        %s148 = scalar_lea.vmem %s0, %s147
        %s149 = smul.u32 2, %s17
      $region28: #{tpu_custom_call.1} parent=23 // pred_fallthru
        _
    $region24: #{tpu_custom_call.1} parent=5 // pred_fallthru
      _
    %p150 = scmp.le.s32.totalorder 1, %s9
    %p151 = scmp.lt.s32.totalorder %s9, 9
    %p152 = pnand %p150, %p151
    %p153 = pneg %p152
    // Predicated region
    $region29: #{tpu_custom_call.1} parent=5 // pred_check
      _
    $region30: #{tpu_custom_call.1} parent=5 // pred_check_branch
      %155 = sbr.rel (%p152) target = $region32
    $region31: #{tpu_custom_call.1} parent=5 // pred_region
      %s156 = ssub.s32 %s9, 1
      %s157 = smul.u32 2, %s19
      %p158 = scmp.lt.s32.totalorder %s18, 7
      %s159 = scalar_select %p158, %s18, 7
      %p160 = scmp.lt.s32.totalorder %s157, 1
      %s161 = scalar_select %p160, %s157, 1
      %s162 = smul.addr %s159, 2
      %s163 = sadd.s32 %s161, %s162
      %s164 = smul.addr %s163, 4
      %s165 = scalar_lea.vmem %s0, %s164
      %p166 = pneg %p49
      %p167 = pneg %p46
      %p168 = pneg %p70
      %p169 = pneg %p67
      %p170 = pneg %p91
      %p171 = pneg %p88
      %p172 = pneg %p112
      %p173 = pneg %p109
      %s174 = smul.u32 2, %s19
      %p175 = scmp.lt.s32.totalorder %s18, 7
      %s176 = scalar_select %p175, %s18, 7
      %p177 = scmp.lt.s32.totalorder %s174, 1
      %s178 = scalar_select %p177, %s174, 1
      %s179 = smul.addr %s176, 2
      %s180 = sadd.s32 %s178, %s179
      %s181 = smul.addr %s180, 4
      %s182 = scalar_lea.vmem %s0, %s181
      %s183 = smul.u32 2, %s19
      %p185 = scmp.eq.s32.totalorder %s18, 0
      %p186 = scmp.eq.s32.totalorder %s19, 0
      %p187 = pnand %p185, %p186
      %p188 = pneg %p187
      // Predicated region
      $region33: #{tpu_custom_call.1} parent=31 // pred_check
        _
      $region34: #{tpu_custom_call.1} parent=31 // pred_check_branch
        %190 = sbr.rel (%p187) target = $region36
      $region35: #{tpu_custom_call.1} parent=31 // pred_region
        %vm191 = vcmask 60416
        %192 = vst.msk [vmem:[%s3] sm:$0xf] %vm191, 0
        %193 = vst.msk [vmem:[%s3 + $0x4] sm:$0xf] %vm191, 0
        %194 = vst.msk [vmem:[%s3 + $0x8] sm:$0xf] %vm191, 0
        %195 = vst.msk [vmem:[%s3 + $0xc] sm:$0xf] %vm191, 0
        %196 = vst.msk [vmem:[%s3 + $0x10] sm:$0xf] %vm191, 0
        %197 = vst.msk [vmem:[%s3 + $0x14] sm:$0xf] %vm191, 0
        %198 = vst.msk [vmem:[%s3 + $0x18] sm:$0xf] %vm191, 0
        %199 = vst.msk [vmem:[%s3 + $0x1c] sm:$0xf] %vm191, 0
        %200 = vst.msk [vmem:[%s3 + $0x20] sm:$0xf] %vm191, 0
        %201 = vst.msk [vmem:[%s3 + $0x24] sm:$0xf] %vm191, 0
        %202 = vst.msk [vmem:[%s3 + $0x28] sm:$0xf] %vm191, 0
        %203 = vst.msk [vmem:[%s3 + $0x2c] sm:$0xf] %vm191, 0
        %204 = vst.msk [vmem:[%s3 + $0x30] sm:$0xf] %vm191, 0
        %205 = vst.msk [vmem:[%s3 + $0x34] sm:$0xf] %vm191, 0
        %206 = vst.msk [vmem:[%s3 + $0x38] sm:$0xf] %vm191, 0
        %207 = vst.msk [vmem:[%s3 + $0x3c] sm:$0xf] %vm191, 0
        %208 = vst.msk [vmem:[%s3 + $0x40] sm:$0xf] %vm191, 0
        %209 = vst.msk [vmem:[%s3 + $0x44] sm:$0xf] %vm191, 0
        %210 = vst.msk [vmem:[%s3 + $0x48] sm:$0xf] %vm191, 0
        %211 = vst.msk [vmem:[%s3 + $0x4c] sm:$0xf] %vm191, 0
        %212 = vst.msk [vmem:[%s3 + $0x50] sm:$0xf] %vm191, 0
        %213 = vst.msk [vmem:[%s3 + $0x54] sm:$0xf] %vm191, 0
        %214 = vst.msk [vmem:[%s3 + $0x58] sm:$0xf] %vm191, 0
        %215 = vst.msk [vmem:[%s3 + $0x5c] sm:$0xf] %vm191, 0
        %216 = vst.msk [vmem:[%s3 + $0x60] sm:$0xf] %vm191, 0
        %217 = vst.msk [vmem:[%s3 + $0x64] sm:$0xf] %vm191, 0
        %218 = vst.msk [vmem:[%s3 + $0x68] sm:$0xf] %vm191, 0
        %219 = vst.msk [vmem:[%s3 + $0x6c] sm:$0xf] %vm191, 0
        %220 = vst.msk [vmem:[%s3 + $0x70] sm:$0xf] %vm191, 0
        %221 = vst.msk [vmem:[%s3 + $0x74] sm:$0xf] %vm191, 0
        %222 = vst.msk [vmem:[%s3 + $0x78] sm:$0xf] %vm191, 0
        %223 = vst.msk [vmem:[%s3 + $0x7c] sm:$0xf] %vm191, 0
        %224 = vst.msk [vmem:[%s3 + $0x80] sm:$0xf] %vm191, 0
        %225 = vst.msk [vmem:[%s3 + $0x84] sm:$0xf] %vm191, 0
        %226 = vst.msk [vmem:[%s3 + $0x88] sm:$0xf] %vm191, 0
        %227 = vst.msk [vmem:[%s3 + $0x8c] sm:$0xf] %vm191, 0
        %228 = vst.msk [vmem:[%s3 + $0x90] sm:$0xf] %vm191, 0
        %229 = vst.msk [vmem:[%s3 + $0x94] sm:$0xf] %vm191, 0
        %230 = vst.msk [vmem:[%s3 + $0x98] sm:$0xf] %vm191, 0
        %231 = vst.msk [vmem:[%s3 + $0x9c] sm:$0xf] %vm191, 0
        %232 = vst.msk [vmem:[%s3 + $0xa0] sm:$0xf] %vm191, 0
        %233 = vst.msk [vmem:[%s3 + $0xa4] sm:$0xf] %vm191, 0
        %234 = vst.msk [vmem:[%s3 + $0xa8] sm:$0xf] %vm191, 0
        %235 = vst.msk [vmem:[%s3 + $0xac] sm:$0xf] %vm191, 0
        %236 = vst.msk [vmem:[%s3 + $0xb0] sm:$0xf] %vm191, 0
        %237 = vst.msk [vmem:[%s3 + $0xb4] sm:$0xf] %vm191, 0
        %238 = vst.msk [vmem:[%s3 + $0xb8] sm:$0xf] %vm191, 0
        %239 = vst.msk [vmem:[%s3 + $0xbc] sm:$0xf] %vm191, 0
        %240 = vst.msk [vmem:[%s3 + $0xc0] sm:$0xf] %vm191, 0
        %241 = vst.msk [vmem:[%s3 + $0xc4] sm:$0xf] %vm191, 0
        %242 = vst.msk [vmem:[%s3 + $0xc8] sm:$0xf] %vm191, 0
        %243 = vst.msk [vmem:[%s3 + $0xcc] sm:$0xf] %vm191, 0
        %244 = vst.msk [vmem:[%s3 + $0xd0] sm:$0xf] %vm191, 0
        %245 = vst.msk [vmem:[%s3 + $0xd4] sm:$0xf] %vm191, 0
        %246 = vst.msk [vmem:[%s3 + $0xd8] sm:$0xf] %vm191, 0
        %247 = vst.msk [vmem:[%s3 + $0xdc] sm:$0xf] %vm191, 0
        %248 = vst.msk [vmem:[%s3 + $0xe0] sm:$0xf] %vm191, 0
        %249 = vst.msk [vmem:[%s3 + $0xe4] sm:$0xf] %vm191, 0
        %250 = vst.msk [vmem:[%s3 + $0xe8] sm:$0xf] %vm191, 0
        %251 = vst.msk [vmem:[%s3 + $0xec] sm:$0xf] %vm191, 0
        %252 = vst.msk [vmem:[%s3 + $0xf0] sm:$0xf] %vm191, 0
        %253 = vst.msk [vmem:[%s3 + $0xf4] sm:$0xf] %vm191, 0
        %254 = vst.msk [vmem:[%s3 + $0xf8] sm:$0xf] %vm191, 0
        %255 = vst.msk [vmem:[%s3 + $0xfc] sm:$0xf] %vm191, 0
      $region36: #{tpu_custom_call.1} parent=31 // pred_fallthru
        _
      %v256 = vld [vmem:[%s182] sm:$0x77]
      %v257 = vld [vmem:[%s1] sm:$0xff]
      %v258 = vld [vmem:[%s1 + $0x8] sm:$0xff]
      %v259 = vld [vmem:[%s1 + $0x10] sm:$0xff]
      %v260 = vld [vmem:[%s1 + $0x18] sm:$0xff]
      %v261 = vld [vmem:[%s1 + $0x20] sm:$0xff]
      %v262 = vld [vmem:[%s1 + $0x28] sm:$0xff]
      %v263 = vld [vmem:[%s1 + $0x30] sm:$0xff]
      %v264 = vld [vmem:[%s1 + $0x38] sm:$0xff]
      %v265 = vld [vmem:[%s1 + $0x40] sm:$0xff]
      %v266 = vld [vmem:[%s1 + $0x48] sm:$0xff]
      %v267 = vld [vmem:[%s1 + $0x50] sm:$0xff]
      %v268 = vld [vmem:[%s1 + $0x58] sm:$0xff]
      %v269 = vld [vmem:[%s1 + $0x60] sm:$0xff]
      %v270 = vld [vmem:[%s1 + $0x68] sm:$0xff]
      %v271 = vld [vmem:[%s1 + $0x70] sm:$0xff]
      %v272 = vld [vmem:[%s1 + $0x78] sm:$0xff]
      %v273 = vld [vmem:[%s1 + $0x80] sm:$0xff]
      %v274 = vld [vmem:[%s1 + $0x88] sm:$0xff]
      %v275 = vld [vmem:[%s1 + $0x90] sm:$0xff]
      %v276 = vld [vmem:[%s1 + $0x98] sm:$0xff]
      %v277 = vld [vmem:[%s1 + $0xa0] sm:$0xff]
      %v278 = vld [vmem:[%s1 + $0xa8] sm:$0xff]
      %v279 = vld [vmem:[%s1 + $0xb0] sm:$0xff]
      %v280 = vld [vmem:[%s1 + $0xb8] sm:$0xff]
      %v281 = vld [vmem:[%s1 + $0xc0] sm:$0xff]
      %v282 = vld [vmem:[%s1 + $0xc8] sm:$0xff]
      %v283 = vld [vmem:[%s1 + $0xd0] sm:$0xff]
      %v284 = vld [vmem:[%s1 + $0xd8] sm:$0xff]
      %v285 = vld [vmem:[%s1 + $0xe0] sm:$0xff]
      %v286 = vld [vmem:[%s1 + $0xe8] sm:$0xff]
      %v287 = vld [vmem:[%s1 + $0xf0] sm:$0xff]
      %v288 = vld [vmem:[%s1 + $0xf8] sm:$0xff]
      %v289 = vld [vmem:[%s1 + $0x100] sm:$0xff]
      %v290 = vld [vmem:[%s1 + $0x108] sm:$0xff]
      %v291 = vld [vmem:[%s1 + $0x110] sm:$0xff]
      %v292 = vld [vmem:[%s1 + $0x118] sm:$0xff]
      %v293 = vld [vmem:[%s1 + $0x120] sm:$0xff]
      %v294 = vld [vmem:[%s1 + $0x128] sm:$0xff]
      %v295 = vld [vmem:[%s1 + $0x130] sm:$0xff]
      %v296 = vld [vmem:[%s1 + $0x138] sm:$0xff]
      %v297 = vld [vmem:[%s1 + $0x140] sm:$0xff]
      %v298 = vld [vmem:[%s1 + $0x148] sm:$0xff]
      %v299 = vld [vmem:[%s1 + $0x150] sm:$0xff]
      %v300 = vld [vmem:[%s1 + $0x158] sm:$0xff]
      %v301 = vld [vmem:[%s1 + $0x160] sm:$0xff]
      %v302 = vld [vmem:[%s1 + $0x168] sm:$0xff]
      %v303 = vld [vmem:[%s1 + $0x170] sm:$0xff]
      %v304 = vld [vmem:[%s1 + $0x178] sm:$0xff]
      %v305 = vld [vmem:[%s1 + $0x180] sm:$0xff]
      %v306 = vld [vmem:[%s1 + $0x188] sm:$0xff]
      %v307 = vld [vmem:[%s1 + $0x190] sm:$0xff]
      %v308 = vld [vmem:[%s1 + $0x198] sm:$0xff]
      %v309 = vld [vmem:[%s1 + $0x1a0] sm:$0xff]
      %v310 = vld [vmem:[%s1 + $0x1a8] sm:$0xff]
      %v311 = vld [vmem:[%s1 + $0x1b0] sm:$0xff]
      %v312 = vld [vmem:[%s1 + $0x1b8] sm:$0xff]
      %v313 = vld [vmem:[%s1 + $0x1c0] sm:$0xff]
      %v314 = vld [vmem:[%s1 + $0x1c8] sm:$0xff]
      %v315 = vld [vmem:[%s1 + $0x1d0] sm:$0xff]
      %v316 = vld [vmem:[%s1 + $0x1d8] sm:$0xff]
      %v317 = vld [vmem:[%s1 + $0x1e0] sm:$0xff]
      %v318 = vld [vmem:[%s1 + $0x1e8] sm:$0xff]
      %v319 = vld [vmem:[%s1 + $0x1f0] sm:$0xff]
      %v320 = vld [vmem:[%s1 + $0x1f8] sm:$0xff]
      %322 = vset.pattern.permute.xlu0 0
      %323 = vperm.xlu0 %322, %v257
      %v324 = vpop.permute.xlu0 %323
      %327 = vset.pattern.permute.xlu0 0
      %328 = vperm.xlu0 %327, %v258
      %v329 = vpop.permute.xlu0 %328
      %332 = vset.pattern.permute.xlu0 0
      %333 = vperm.xlu0 %332, %v259
      %v334 = vpop.permute.xlu0 %333
      %337 = vset.pattern.permute.xlu0 0
      %338 = vperm.xlu0 %337, %v260
      %v339 = vpop.permute.xlu0 %338
      %342 = vset.pattern.permute.xlu0 0
      %343 = vperm.xlu0 %342, %v261
      %v344 = vpop.permute.xlu0 %343
      %347 = vset.pattern.permute.xlu0 0
      %348 = vperm.xlu0 %347, %v262
      %v349 = vpop.permute.xlu0 %348
      %352 = vset.pattern.permute.xlu0 0
      %353 = vperm.xlu0 %352, %v263
      %v354 = vpop.permute.xlu0 %353
      %357 = vset.pattern.permute.xlu0 0
      %358 = vperm.xlu0 %357, %v264
      %v359 = vpop.permute.xlu0 %358
      %362 = vset.pattern.permute.xlu0 0
      %363 = vperm.xlu0 %362, %v265
      %v364 = vpop.permute.xlu0 %363
      %367 = vset.pattern.permute.xlu0 0
      %368 = vperm.xlu0 %367, %v266
      %v369 = vpop.permute.xlu0 %368
      %372 = vset.pattern.permute.xlu0 0
      %373 = vperm.xlu0 %372, %v267
      %v374 = vpop.permute.xlu0 %373
      %377 = vset.pattern.permute.xlu0 0
      %378 = vperm.xlu0 %377, %v268
      %v379 = vpop.permute.xlu0 %378
      %382 = vset.pattern.permute.xlu0 0
      %383 = vperm.xlu0 %382, %v269
      %v384 = vpop.permute.xlu0 %383
      %387 = vset.pattern.permute.xlu0 0
      %388 = vperm.xlu0 %387, %v270
      %v389 = vpop.permute.xlu0 %388
      %392 = vset.pattern.permute.xlu0 0
      %393 = vperm.xlu0 %392, %v271
      %v394 = vpop.permute.xlu0 %393
      %397 = vset.pattern.permute.xlu0 0
      %398 = vperm.xlu0 %397, %v272
      %v399 = vpop.permute.xlu0 %398
      %402 = vset.pattern.permute.xlu0 0
      %403 = vperm.xlu0 %402, %v273
      %v404 = vpop.permute.xlu0 %403
      %407 = vset.pattern.permute.xlu0 0
      %408 = vperm.xlu0 %407, %v274
      %v409 = vpop.permute.xlu0 %408
      %412 = vset.pattern.permute.xlu0 0
      %413 = vperm.xlu0 %412, %v275
      %v414 = vpop.permute.xlu0 %413
      %417 = vset.pattern.permute.xlu0 0
      %418 = vperm.xlu0 %417, %v276
      %v419 = vpop.permute.xlu0 %418
      %422 = vset.pattern.permute.xlu0 0
      %423 = vperm.xlu0 %422, %v277
      %v424 = vpop.permute.xlu0 %423
      %427 = vset.pattern.permute.xlu0 0
      %428 = vperm.xlu0 %427, %v278
      %v429 = vpop.permute.xlu0 %428
      %432 = vset.pattern.permute.xlu0 0
      %433 = vperm.xlu0 %432, %v279
      %v434 = vpop.permute.xlu0 %433
      %437 = vset.pattern.permute.xlu0 0
      %438 = vperm.xlu0 %437, %v280
      %v439 = vpop.permute.xlu0 %438
      %442 = vset.pattern.permute.xlu0 0
      %443 = vperm.xlu0 %442, %v281
      %v444 = vpop.permute.xlu0 %443
      %447 = vset.pattern.permute.xlu0 0
      %448 = vperm.xlu0 %447, %v282
      %v449 = vpop.permute.xlu0 %448
      %452 = vset.pattern.permute.xlu0 0
      %453 = vperm.xlu0 %452, %v283
      %v454 = vpop.permute.xlu0 %453
      %457 = vset.pattern.permute.xlu0 0
      %458 = vperm.xlu0 %457, %v284
      %v459 = vpop.permute.xlu0 %458
      %462 = vset.pattern.permute.xlu0 0
      %463 = vperm.xlu0 %462, %v285
      %v464 = vpop.permute.xlu0 %463
      %467 = vset.pattern.permute.xlu0 0
      %468 = vperm.xlu0 %467, %v286
      %v469 = vpop.permute.xlu0 %468
      %472 = vset.pattern.permute.xlu0 0
      %473 = vperm.xlu0 %472, %v287
      %v474 = vpop.permute.xlu0 %473
      %477 = vset.pattern.permute.xlu0 0
      %478 = vperm.xlu0 %477, %v288
      %v479 = vpop.permute.xlu0 %478
      %482 = vset.pattern.permute.xlu0 0
      %483 = vperm.xlu0 %482, %v289
      %v484 = vpop.permute.xlu0 %483
      %487 = vset.pattern.permute.xlu0 0
      %488 = vperm.xlu0 %487, %v290
      %v489 = vpop.permute.xlu0 %488
      %492 = vset.pattern.permute.xlu0 0
      %493 = vperm.xlu0 %492, %v291
      %v494 = vpop.permute.xlu0 %493
      %497 = vset.pattern.permute.xlu0 0
      %498 = vperm.xlu0 %497, %v292
      %v499 = vpop.permute.xlu0 %498
      %502 = vset.pattern.permute.xlu0 0
      %503 = vperm.xlu0 %502, %v293
      %v504 = vpop.permute.xlu0 %503
      %507 = vset.pattern.permute.xlu0 0
      %508 = vperm.xlu0 %507, %v294
      %v509 = vpop.permute.xlu0 %508
      %512 = vset.pattern.permute.xlu0 0
      %513 = vperm.xlu0 %512, %v295
      %v514 = vpop.permute.xlu0 %513
      %517 = vset.pattern.permute.xlu0 0
      %518 = vperm.xlu0 %517, %v296
      %v519 = vpop.permute.xlu0 %518
      %522 = vset.pattern.permute.xlu0 0
      %523 = vperm.xlu0 %522, %v297
      %v524 = vpop.permute.xlu0 %523
      %527 = vset.pattern.permute.xlu0 0
      %528 = vperm.xlu0 %527, %v298
      %v529 = vpop.permute.xlu0 %528
      %532 = vset.pattern.permute.xlu0 0
      %533 = vperm.xlu0 %532, %v299
      %v534 = vpop.permute.xlu0 %533
      %537 = vset.pattern.permute.xlu0 0
      %538 = vperm.xlu0 %537, %v300
      %v539 = vpop.permute.xlu0 %538
      %542 = vset.pattern.permute.xlu0 0
      %543 = vperm.xlu0 %542, %v301
      %v544 = vpop.permute.xlu0 %543
      %547 = vset.pattern.permute.xlu0 0
      %548 = vperm.xlu0 %547, %v302
      %v549 = vpop.permute.xlu0 %548
      %552 = vset.pattern.permute.xlu0 0
      %553 = vperm.xlu0 %552, %v303
      %v554 = vpop.permute.xlu0 %553
      %557 = vset.pattern.permute.xlu0 0
      %558 = vperm.xlu0 %557, %v304
      %v559 = vpop.permute.xlu0 %558
      %562 = vset.pattern.permute.xlu0 0
      %563 = vperm.xlu0 %562, %v305
      %v564 = vpop.permute.xlu0 %563
      %567 = vset.pattern.permute.xlu0 0
      %568 = vperm.xlu0 %567, %v306
      %v569 = vpop.permute.xlu0 %568
      %572 = vset.pattern.permute.xlu0 0
      %573 = vperm.xlu0 %572, %v307
      %v574 = vpop.permute.xlu0 %573
      %577 = vset.pattern.permute.xlu0 0
      %578 = vperm.xlu0 %577, %v308
      %v579 = vpop.permute.xlu0 %578
      %582 = vset.pattern.permute.xlu0 0
      %583 = vperm.xlu0 %582, %v309
      %v584 = vpop.permute.xlu0 %583
      %587 = vset.pattern.permute.xlu0 0
      %588 = vperm.xlu0 %587, %v310
      %v589 = vpop.permute.xlu0 %588
      %592 = vset.pattern.permute.xlu0 0
      %593 = vperm.xlu0 %592, %v311
      %v594 = vpop.permute.xlu0 %593
      %597 = vset.pattern.permute.xlu0 0
      %598 = vperm.xlu0 %597, %v312
      %v599 = vpop.permute.xlu0 %598
      %602 = vset.pattern.permute.xlu0 0
      %603 = vperm.xlu0 %602, %v313
      %v604 = vpop.permute.xlu0 %603
      %607 = vset.pattern.permute.xlu0 0
      %608 = vperm.xlu0 %607, %v314
      %v609 = vpop.permute.xlu0 %608
      %612 = vset.pattern.permute.xlu0 0
      %613 = vperm.xlu0 %612, %v315
      %v614 = vpop.permute.xlu0 %613
      %617 = vset.pattern.permute.xlu0 0
      %618 = vperm.xlu0 %617, %v316
      %v619 = vpop.permute.xlu0 %618
      %622 = vset.pattern.permute.xlu0 0
      %623 = vperm.xlu0 %622, %v317
      %v624 = vpop.permute.xlu0 %623
      %627 = vset.pattern.permute.xlu0 0
      %628 = vperm.xlu0 %627, %v318
      %v629 = vpop.permute.xlu0 %628
      %632 = vset.pattern.permute.xlu0 0
      %633 = vperm.xlu0 %632, %v319
      %v634 = vpop.permute.xlu0 %633
      %637 = vset.pattern.permute.xlu0 0
      %638 = vperm.xlu0 %637, %v320
      %v639 = vpop.permute.xlu0 %638
      %v642 = vlaneseq
      %v643 = vshrl.u32 %v642, 7
      %v644 = vsub.s32 0, %v643
      %v645 = vrot.slane %v256, %v644
      %v646 = vlaneseq
      %v647 = vshrl.u32 %v646, 7
      %v648 = vsub.s32 4, %v647
      %v649 = vrot.slane %v256, %v648
      %v652 = vlaneseq
      %v653 = vshrl.u32 %v652, 7
      %v654 = vsub.s32 0, %v653
      %v655 = vrot.slane %v645, %v654
      %v656 = vlaneseq
      %v657 = vshrl.u32 %v656, 7
      %v658 = vsub.s32 0, %v657
      %v659 = vrot.slane %v649, %v658
      %v660 = vmul.f32 %v324, %v655
      %v661 = vmul.f32 %v324, %v659
      %v662 = vmul.f32 %v329, %v655
      %v663 = vmul.f32 %v329, %v659
      %v664 = vmul.f32 %v334, %v655
      %v665 = vmul.f32 %v334, %v659
      %v666 = vmul.f32 %v339, %v655
      %v667 = vmul.f32 %v339, %v659
      %v668 = vmul.f32 %v344, %v655
      %v669 = vmul.f32 %v344, %v659
      %v670 = vmul.f32 %v349, %v655
      %v671 = vmul.f32 %v349, %v659
      %v672 = vmul.f32 %v354, %v655
      %v673 = vmul.f32 %v354, %v659
      %v674 = vmul.f32 %v359, %v655
      %v675 = vmul.f32 %v359, %v659
      %v676 = vmul.f32 %v364, %v655
      %v677 = vmul.f32 %v364, %v659
      %v678 = vmul.f32 %v369, %v655
      %v679 = vmul.f32 %v369, %v659
      %v680 = vmul.f32 %v374, %v655
      %v681 = vmul.f32 %v374, %v659
      %v682 = vmul.f32 %v379, %v655
      %v683 = vmul.f32 %v379, %v659
      %v684 = vmul.f32 %v384, %v655
      %v685 = vmul.f32 %v384, %v659
      %v686 = vmul.f32 %v389, %v655
      %v687 = vmul.f32 %v389, %v659
      %v688 = vmul.f32 %v394, %v655
      %v689 = vmul.f32 %v394, %v659
      %v690 = vmul.f32 %v399, %v655
      %v691 = vmul.f32 %v399, %v659
      %v692 = vmul.f32 %v404, %v655
      %v693 = vmul.f32 %v404, %v659
      %v694 = vmul.f32 %v409, %v655
      %v695 = vmul.f32 %v409, %v659
      %v696 = vmul.f32 %v414, %v655
      %v697 = vmul.f32 %v414, %v659
      %v698 = vmul.f32 %v419, %v655
      %v699 = vmul.f32 %v419, %v659
      %v700 = vmul.f32 %v424, %v655
      %v701 = vmul.f32 %v424, %v659
      %v702 = vmul.f32 %v429, %v655
      %v703 = vmul.f32 %v429, %v659
      %v704 = vmul.f32 %v434, %v655
      %v705 = vmul.f32 %v434, %v659
      %v706 = vmul.f32 %v439, %v655
      %v707 = vmul.f32 %v439, %v659
      %v708 = vmul.f32 %v444, %v655
      %v709 = vmul.f32 %v444, %v659
      %v710 = vmul.f32 %v449, %v655
      %v711 = vmul.f32 %v449, %v659
      %v712 = vmul.f32 %v454, %v655
      %v713 = vmul.f32 %v454, %v659
      %v714 = vmul.f32 %v459, %v655
      %v715 = vmul.f32 %v459, %v659
      %v716 = vmul.f32 %v464, %v655
      %v717 = vmul.f32 %v464, %v659
      %v718 = vmul.f32 %v469, %v655
      %v719 = vmul.f32 %v469, %v659
      %v720 = vmul.f32 %v474, %v655
      %v721 = vmul.f32 %v474, %v659
      %v722 = vmul.f32 %v479, %v655
      %v723 = vmul.f32 %v479, %v659
      %v724 = vmul.f32 %v484, %v655
      %v725 = vmul.f32 %v484, %v659
      %v726 = vmul.f32 %v489, %v655
      %v727 = vmul.f32 %v489, %v659
      %v728 = vmul.f32 %v494, %v655
      %v729 = vmul.f32 %v494, %v659
      %v730 = vmul.f32 %v499, %v655
      %v731 = vmul.f32 %v499, %v659
      %v732 = vmul.f32 %v504, %v655
      %v733 = vmul.f32 %v504, %v659
      %v734 = vmul.f32 %v509, %v655
      %v735 = vmul.f32 %v509, %v659
      %v736 = vmul.f32 %v514, %v655
      %v737 = vmul.f32 %v514, %v659
      %v738 = vmul.f32 %v519, %v655
      %v739 = vmul.f32 %v519, %v659
      %v740 = vmul.f32 %v524, %v655
      %v741 = vmul.f32 %v524, %v659
      %v742 = vmul.f32 %v529, %v655
      %v743 = vmul.f32 %v529, %v659
      %v744 = vmul.f32 %v534, %v655
      %v745 = vmul.f32 %v534, %v659
      %v746 = vmul.f32 %v539, %v655
      %v747 = vmul.f32 %v539, %v659
      %v748 = vmul.f32 %v544, %v655
      %v749 = vmul.f32 %v544, %v659
      %v750 = vmul.f32 %v549, %v655
      %v751 = vmul.f32 %v549, %v659
      %v752 = vmul.f32 %v554, %v655
      %v753 = vmul.f32 %v554, %v659
      %v754 = vmul.f32 %v559, %v655
      %v755 = vmul.f32 %v559, %v659
      %v756 = vmul.f32 %v564, %v655
      %v757 = vmul.f32 %v564, %v659
      %v758 = vmul.f32 %v569, %v655
      %v759 = vmul.f32 %v569, %v659
      %v760 = vmul.f32 %v574, %v655
      %v761 = vmul.f32 %v574, %v659
      %v762 = vmul.f32 %v579, %v655
      %v763 = vmul.f32 %v579, %v659
      %v764 = vmul.f32 %v584, %v655
      %v765 = vmul.f32 %v584, %v659
      %v766 = vmul.f32 %v589, %v655
      %v767 = vmul.f32 %v589, %v659
      %v768 = vmul.f32 %v594, %v655
      %v769 = vmul.f32 %v594, %v659
      %v770 = vmul.f32 %v599, %v655
      %v771 = vmul.f32 %v599, %v659
      %v772 = vmul.f32 %v604, %v655
      %v773 = vmul.f32 %v604, %v659
      %v774 = vmul.f32 %v609, %v655
      %v775 = vmul.f32 %v609, %v659
      %v776 = vmul.f32 %v614, %v655
      %v777 = vmul.f32 %v614, %v659
      %v778 = vmul.f32 %v619, %v655
      %v779 = vmul.f32 %v619, %v659
      %v780 = vmul.f32 %v624, %v655
      %v781 = vmul.f32 %v624, %v659
      %v782 = vmul.f32 %v629, %v655
      %v783 = vmul.f32 %v629, %v659
      %v784 = vmul.f32 %v634, %v655
      %v785 = vmul.f32 %v634, %v659
      %v786 = vmul.f32 %v639, %v655
      %v787 = vmul.f32 %v639, %v659
      %788 = vset.pattern.permute.xlu0 1
      %789 = vperm.xlu0 %788, %v257
      %v790 = vpop.permute.xlu0 %789
      %792 = vset.pattern.permute.xlu0 1
      %793 = vperm.xlu0 %792, %v258
      %v794 = vpop.permute.xlu0 %793
      %796 = vset.pattern.permute.xlu0 1
      %797 = vperm.xlu0 %796, %v259
      %v798 = vpop.permute.xlu0 %797
      %800 = vset.pattern.permute.xlu0 1
      %801 = vperm.xlu0 %800, %v260
      %v802 = vpop.permute.xlu0 %801
      %804 = vset.pattern.permute.xlu0 1
      %805 = vperm.xlu0 %804, %v261
      %v806 = vpop.permute.xlu0 %805
      %808 = vset.pattern.permute.xlu0 1
      %809 = vperm.xlu0 %808, %v262
      %v810 = vpop.permute.xlu0 %809
      %812 = vset.pattern.permute.xlu0 1
      %813 = vperm.xlu0 %812, %v263
      %v814 = vpop.permute.xlu0 %813
      %816 = vset.pattern.permute.xlu0 1
      %817 = vperm.xlu0 %816, %v264
      %v818 = vpop.permute.xlu0 %817
      %820 = vset.pattern.permute.xlu0 1
      %821 = vperm.xlu0 %820, %v265
      %v822 = vpop.permute.xlu0 %821
      %824 = vset.pattern.permute.xlu0 1
      %825 = vperm.xlu0 %824, %v266
      %v826 = vpop.permute.xlu0 %825
      %828 = vset.pattern.permute.xlu0 1
      %829 = vperm.xlu0 %828, %v267
      %v830 = vpop.permute.xlu0 %829
      %832 = vset.pattern.permute.xlu0 1
      %833 = vperm.xlu0 %832, %v268
      %v834 = vpop.permute.xlu0 %833
      %836 = vset.pattern.permute.xlu0 1
      %837 = vperm.xlu0 %836, %v269
      %v838 = vpop.permute.xlu0 %837
      %840 = vset.pattern.permute.xlu0 1
      %841 = vperm.xlu0 %840, %v270
      %v842 = vpop.permute.xlu0 %841
      %844 = vset.pattern.permute.xlu0 1
      %845 = vperm.xlu0 %844, %v271
      %v846 = vpop.permute.xlu0 %845
      %848 = vset.pattern.permute.xlu0 1
      %849 = vperm.xlu0 %848, %v272
      %v850 = vpop.permute.xlu0 %849
      %852 = vset.pattern.permute.xlu0 1
      %853 = vperm.xlu0 %852, %v273
      %v854 = vpop.permute.xlu0 %853
      %856 = vset.pattern.permute.xlu0 1
      %857 = vperm.xlu0 %856, %v274
      %v858 = vpop.permute.xlu0 %857
      %860 = vset.pattern.permute.xlu0 1
      %861 = vperm.xlu0 %860, %v275
      %v862 = vpop.permute.xlu0 %861
      %864 = vset.pattern.permute.xlu0 1
      %865 = vperm.xlu0 %864, %v276
      %v866 = vpop.permute.xlu0 %865
      %868 = vset.pattern.permute.xlu0 1
      %869 = vperm.xlu0 %868, %v277
      %v870 = vpop.permute.xlu0 %869
      %872 = vset.pattern.permute.xlu0 1
      %873 = vperm.xlu0 %872, %v278
      %v874 = vpop.permute.xlu0 %873
      %876 = vset.pattern.permute.xlu0 1
      %877 = vperm.xlu0 %876, %v279
      %v878 = vpop.permute.xlu0 %877
      %880 = vset.pattern.permute.xlu0 1
      %881 = vperm.xlu0 %880, %v280
      %v882 = vpop.permute.xlu0 %881
      %884 = vset.pattern.permute.xlu0 1
      %885 = vperm.xlu0 %884, %v281
      %v886 = vpop.permute.xlu0 %885
      %888 = vset.pattern.permute.xlu0 1
      %889 = vperm.xlu0 %888, %v282
      %v890 = vpop.permute.xlu0 %889
      %892 = vset.pattern.permute.xlu0 1
      %893 = vperm.xlu0 %892, %v283
      %v894 = vpop.permute.xlu0 %893
      %896 = vset.pattern.permute.xlu0 1
      %897 = vperm.xlu0 %896, %v284
      %v898 = vpop.permute.xlu0 %897
      %900 = vset.pattern.permute.xlu0 1
      %901 = vperm.xlu0 %900, %v285
      %v902 = vpop.permute.xlu0 %901
      %904 = vset.pattern.permute.xlu0 1
      %905 = vperm.xlu0 %904, %v286
      %v906 = vpop.permute.xlu0 %905
      %908 = vset.pattern.permute.xlu0 1
      %909 = vperm.xlu0 %908, %v287
      %v910 = vpop.permute.xlu0 %909
      %912 = vset.pattern.permute.xlu0 1
      %913 = vperm.xlu0 %912, %v288
      %v914 = vpop.permute.xlu0 %913
      %916 = vset.pattern.permute.xlu0 1
      %917 = vperm.xlu0 %916, %v289
      %v918 = vpop.permute.xlu0 %917
      %920 = vset.pattern.permute.xlu0 1
      %921 = vperm.xlu0 %920, %v290
      %v922 = vpop.permute.xlu0 %921
      %924 = vset.pattern.permute.xlu0 1
      %925 = vperm.xlu0 %924, %v291
      %v926 = vpop.permute.xlu0 %925
      %928 = vset.pattern.permute.xlu0 1
      %929 = vperm.xlu0 %928, %v292
      %v930 = vpop.permute.xlu0 %929
      %932 = vset.pattern.permute.xlu0 1
      %933 = vperm.xlu0 %932, %v293
      %v934 = vpop.permute.xlu0 %933
      %936 = vset.pattern.permute.xlu0 1
      %937 = vperm.xlu0 %936, %v294
      %v938 = vpop.permute.xlu0 %937
      %940 = vset.pattern.permute.xlu0 1
      %941 = vperm.xlu0 %940, %v295
      %v942 = vpop.permute.xlu0 %941
      %944 = vset.pattern.permute.xlu0 1
      %945 = vperm.xlu0 %944, %v296
      %v946 = vpop.permute.xlu0 %945
      %948 = vset.pattern.permute.xlu0 1
      %949 = vperm.xlu0 %948, %v297
      %v950 = vpop.permute.xlu0 %949
      %952 = vset.pattern.permute.xlu0 1
      %953 = vperm.xlu0 %952, %v298
      %v954 = vpop.permute.xlu0 %953
      %956 = vset.pattern.permute.xlu0 1
      %957 = vperm.xlu0 %956, %v299
      %v958 = vpop.permute.xlu0 %957
      %960 = vset.pattern.permute.xlu0 1
      %961 = vperm.xlu0 %960, %v300
      %v962 = vpop.permute.xlu0 %961
      %964 = vset.pattern.permute.xlu0 1
      %965 = vperm.xlu0 %964, %v301
      %v966 = vpop.permute.xlu0 %965
      %968 = vset.pattern.permute.xlu0 1
      %969 = vperm.xlu0 %968, %v302
      %v970 = vpop.permute.xlu0 %969
      %972 = vset.pattern.permute.xlu0 1
      %973 = vperm.xlu0 %972, %v303
      %v974 = vpop.permute.xlu0 %973
      %976 = vset.pattern.permute.xlu0 1
      %977 = vperm.xlu0 %976, %v304
      %v978 = vpop.permute.xlu0 %977
      %980 = vset.pattern.permute.xlu0 1
      %981 = vperm.xlu0 %980, %v305
      %v982 = vpop.permute.xlu0 %981
      %984 = vset.pattern.permute.xlu0 1
      %985 = vperm.xlu0 %984, %v306
      %v986 = vpop.permute.xlu0 %985
      %988 = vset.pattern.permute.xlu0 1
      %989 = vperm.xlu0 %988, %v307
      %v990 = vpop.permute.xlu0 %989
      %992 = vset.pattern.permute.xlu0 1
      %993 = vperm.xlu0 %992, %v308
      %v994 = vpop.permute.xlu0 %993
      %996 = vset.pattern.permute.xlu0 1
      %997 = vperm.xlu0 %996, %v309
      %v998 = vpop.permute.xlu0 %997
      %1000 = vset.pattern.permute.xlu0 1
      %1001 = vperm.xlu0 %1000, %v310
      %v1002 = vpop.permute.xlu0 %1001
      %1004 = vset.pattern.permute.xlu0 1
      %1005 = vperm.xlu0 %1004, %v311
      %v1006 = vpop.permute.xlu0 %1005
      %1008 = vset.pattern.permute.xlu0 1
      %1009 = vperm.xlu0 %1008, %v312
      %v1010 = vpop.permute.xlu0 %1009
      %1012 = vset.pattern.permute.xlu0 1
      %1013 = vperm.xlu0 %1012, %v313
      %v1014 = vpop.permute.xlu0 %1013
      %1016 = vset.pattern.permute.xlu0 1
      %1017 = vperm.xlu0 %1016, %v314
      %v1018 = vpop.permute.xlu0 %1017
      %1020 = vset.pattern.permute.xlu0 1
      %1021 = vperm.xlu0 %1020, %v315
      %v1022 = vpop.permute.xlu0 %1021
      %1024 = vset.pattern.permute.xlu0 1
      %1025 = vperm.xlu0 %1024, %v316
      %v1026 = vpop.permute.xlu0 %1025
      %1028 = vset.pattern.permute.xlu0 1
      %1029 = vperm.xlu0 %1028, %v317
      %v1030 = vpop.permute.xlu0 %1029
      %1032 = vset.pattern.permute.xlu0 1
      %1033 = vperm.xlu0 %1032, %v318
      %v1034 = vpop.permute.xlu0 %1033
      %1036 = vset.pattern.permute.xlu0 1
      %1037 = vperm.xlu0 %1036, %v319
      %v1038 = vpop.permute.xlu0 %1037
      %1040 = vset.pattern.permute.xlu0 1
      %1041 = vperm.xlu0 %1040, %v320
      %v1042 = vpop.permute.xlu0 %1041
      %v1044 = vlaneseq
      %v1045 = vshrl.u32 %v1044, 7
      %v1046 = vsub.s32 1, %v1045
      %v1047 = vrot.slane %v256, %v1046
      %v1048 = vlaneseq
      %v1049 = vshrl.u32 %v1048, 7
      %v1050 = vsub.s32 5, %v1049
      %v1051 = vrot.slane %v256, %v1050
      %v1054 = vlaneseq
      %v1055 = vshrl.u32 %v1054, 7
      %v1056 = vsub.s32 1, %v1055
      %v1057 = vrot.slane %v1047, %v1056
      %v1058 = vlaneseq
      %v1059 = vshrl.u32 %v1058, 7
      %v1060 = vsub.s32 1, %v1059
      %v1061 = vrot.slane %v1051, %v1060
      %v1062 = vmul.f32 %v790, %v1057
      %v1063 = vmul.f32 %v790, %v1061
      %v1064 = vmul.f32 %v794, %v1057
      %v1065 = vmul.f32 %v794, %v1061
      %v1066 = vmul.f32 %v798, %v1057
      %v1067 = vmul.f32 %v798, %v1061
      %v1068 = vmul.f32 %v802, %v1057
      %v1069 = vmul.f32 %v802, %v1061
      %v1070 = vmul.f32 %v806, %v1057
      %v1071 = vmul.f32 %v806, %v1061
      %v1072 = vmul.f32 %v810, %v1057
      %v1073 = vmul.f32 %v810, %v1061
      %v1074 = vmul.f32 %v814, %v1057
      %v1075 = vmul.f32 %v814, %v1061
      %v1076 = vmul.f32 %v818, %v1057
      %v1077 = vmul.f32 %v818, %v1061
      %v1078 = vmul.f32 %v822, %v1057
      %v1079 = vmul.f32 %v822, %v1061
      %v1080 = vmul.f32 %v826, %v1057
      %v1081 = vmul.f32 %v826, %v1061
      %v1082 = vmul.f32 %v830, %v1057
      %v1083 = vmul.f32 %v830, %v1061
      %v1084 = vmul.f32 %v834, %v1057
      %v1085 = vmul.f32 %v834, %v1061
      %v1086 = vmul.f32 %v838, %v1057
      %v1087 = vmul.f32 %v838, %v1061
      %v1088 = vmul.f32 %v842, %v1057
      %v1089 = vmul.f32 %v842, %v1061
      %v1090 = vmul.f32 %v846, %v1057
      %v1091 = vmul.f32 %v846, %v1061
      %v1092 = vmul.f32 %v850, %v1057
      %v1093 = vmul.f32 %v850, %v1061
      %v1094 = vmul.f32 %v854, %v1057
      %v1095 = vmul.f32 %v854, %v1061
      %v1096 = vmul.f32 %v858, %v1057
      %v1097 = vmul.f32 %v858, %v1061
      %v1098 = vmul.f32 %v862, %v1057
      %v1099 = vmul.f32 %v862, %v1061
      %v1100 = vmul.f32 %v866, %v1057
      %v1101 = vmul.f32 %v866, %v1061
      %v1102 = vmul.f32 %v870, %v1057
      %v1103 = vmul.f32 %v870, %v1061
      %v1104 = vmul.f32 %v874, %v1057
      %v1105 = vmul.f32 %v874, %v1061
      %v1106 = vmul.f32 %v878, %v1057
      %v1107 = vmul.f32 %v878, %v1061
      %v1108 = vmul.f32 %v882, %v1057
      %v1109 = vmul.f32 %v882, %v1061
      %v1110 = vmul.f32 %v886, %v1057
      %v1111 = vmul.f32 %v886, %v1061
      %v1112 = vmul.f32 %v890, %v1057
      %v1113 = vmul.f32 %v890, %v1061
      %v1114 = vmul.f32 %v894, %v1057
      %v1115 = vmul.f32 %v894, %v1061
      %v1116 = vmul.f32 %v898, %v1057
      %v1117 = vmul.f32 %v898, %v1061
      %v1118 = vmul.f32 %v902, %v1057
      %v1119 = vmul.f32 %v902, %v1061
      %v1120 = vmul.f32 %v906, %v1057
      %v1121 = vmul.f32 %v906, %v1061
      %v1122 = vmul.f32 %v910, %v1057
      %v1123 = vmul.f32 %v910, %v1061
      %v1124 = vmul.f32 %v914, %v1057
      %v1125 = vmul.f32 %v914, %v1061
      %v1126 = vmul.f32 %v918, %v1057
      %v1127 = vmul.f32 %v918, %v1061
      %v1128 = vmul.f32 %v922, %v1057
      %v1129 = vmul.f32 %v922, %v1061
      %v1130 = vmul.f32 %v926, %v1057
      %v1131 = vmul.f32 %v926, %v1061
      %v1132 = vmul.f32 %v930, %v1057
      %v1133 = vmul.f32 %v930, %v1061
      %v1134 = vmul.f32 %v934, %v1057
      %v1135 = vmul.f32 %v934, %v1061
      %v1136 = vmul.f32 %v938, %v1057
      %v1137 = vmul.f32 %v938, %v1061
      %v1138 = vmul.f32 %v942, %v1057
      %v1139 = vmul.f32 %v942, %v1061
      %v1140 = vmul.f32 %v946, %v1057
      %v1141 = vmul.f32 %v946, %v1061
      %v1142 = vmul.f32 %v950, %v1057
      %v1143 = vmul.f32 %v950, %v1061
      %v1144 = vmul.f32 %v954, %v1057
      %v1145 = vmul.f32 %v954, %v1061
      %v1146 = vmul.f32 %v958, %v1057
      %v1147 = vmul.f32 %v958, %v1061
      %v1148 = vmul.f32 %v962, %v1057
      %v1149 = vmul.f32 %v962, %v1061
      %v1150 = vmul.f32 %v966, %v1057
      %v1151 = vmul.f32 %v966, %v1061
      %v1152 = vmul.f32 %v970, %v1057
      %v1153 = vmul.f32 %v970, %v1061
      %v1154 = vmul.f32 %v974, %v1057
      %v1155 = vmul.f32 %v974, %v1061
      %v1156 = vmul.f32 %v978, %v1057
      %v1157 = vmul.f32 %v978, %v1061
      %v1158 = vmul.f32 %v982, %v1057
      %v1159 = vmul.f32 %v982, %v1061
      %v1160 = vmul.f32 %v986, %v1057
      %v1161 = vmul.f32 %v986, %v1061
      %v1162 = vmul.f32 %v990, %v1057
      %v1163 = vmul.f32 %v990, %v1061
      %v1164 = vmul.f32 %v994, %v1057
      %v1165 = vmul.f32 %v994, %v1061
      %v1166 = vmul.f32 %v998, %v1057
      %v1167 = vmul.f32 %v998, %v1061
      %v1168 = vmul.f32 %v1002, %v1057
      %v1169 = vmul.f32 %v1002, %v1061
      %v1170 = vmul.f32 %v1006, %v1057
      %v1171 = vmul.f32 %v1006, %v1061
      %v1172 = vmul.f32 %v1010, %v1057
      %v1173 = vmul.f32 %v1010, %v1061
      %v1174 = vmul.f32 %v1014, %v1057
      %v1175 = vmul.f32 %v1014, %v1061
      %v1176 = vmul.f32 %v1018, %v1057
      %v1177 = vmul.f32 %v1018, %v1061
      %v1178 = vmul.f32 %v1022, %v1057
      %v1179 = vmul.f32 %v1022, %v1061
      %v1180 = vmul.f32 %v1026, %v1057
      %v1181 = vmul.f32 %v1026, %v1061
      %v1182 = vmul.f32 %v1030, %v1057
      %v1183 = vmul.f32 %v1030, %v1061
      %v1184 = vmul.f32 %v1034, %v1057
      %v1185 = vmul.f32 %v1034, %v1061
      %v1186 = vmul.f32 %v1038, %v1057
      %v1187 = vmul.f32 %v1038, %v1061
      %v1188 = vmul.f32 %v1042, %v1057
      %v1189 = vmul.f32 %v1042, %v1061
      %v1190 = vadd.f32 %v660, %v1062
      %v1191 = vadd.f32 %v661, %v1063
      %v1192 = vadd.f32 %v662, %v1064
      %v1193 = vadd.f32 %v663, %v1065
      %v1194 = vadd.f32 %v664, %v1066
      %v1195 = vadd.f32 %v665, %v1067
      %v1196 = vadd.f32 %v666, %v1068
      %v1197 = vadd.f32 %v667, %v1069
      %v1198 = vadd.f32 %v668, %v1070
      %v1199 = vadd.f32 %v669, %v1071
      %v1200 = vadd.f32 %v670, %v1072
      %v1201 = vadd.f32 %v671, %v1073
      %v1202 = vadd.f32 %v672, %v1074
      %v1203 = vadd.f32 %v673, %v1075
      %v1204 = vadd.f32 %v674, %v1076
      %v1205 = vadd.f32 %v675, %v1077
      %v1206 = vadd.f32 %v676, %v1078
      %v1207 = vadd.f32 %v677, %v1079
      %v1208 = vadd.f32 %v678, %v1080
      %v1209 = vadd.f32 %v679, %v1081
      %v1210 = vadd.f32 %v680, %v1082
      %v1211 = vadd.f32 %v681, %v1083
      %v1212 = vadd.f32 %v682, %v1084
      %v1213 = vadd.f32 %v683, %v1085
      %v1214 = vadd.f32 %v684, %v1086
      %v1215 = vadd.f32 %v685, %v1087
      %v1216 = vadd.f32 %v686, %v1088
      %v1217 = vadd.f32 %v687, %v1089
      %v1218 = vadd.f32 %v688, %v1090
      %v1219 = vadd.f32 %v689, %v1091
      %v1220 = vadd.f32 %v690, %v1092
      %v1221 = vadd.f32 %v691, %v1093
      %v1222 = vadd.f32 %v692, %v1094
      %v1223 = vadd.f32 %v693, %v1095
      %v1224 = vadd.f32 %v694, %v1096
      %v1225 = vadd.f32 %v695, %v1097
      %v1226 = vadd.f32 %v696, %v1098
      %v1227 = vadd.f32 %v697, %v1099
      %v1228 = vadd.f32 %v698, %v1100
      %v1229 = vadd.f32 %v699, %v1101
      %v1230 = vadd.f32 %v700, %v1102
      %v1231 = vadd.f32 %v701, %v1103
      %v1232 = vadd.f32 %v702, %v1104
      %v1233 = vadd.f32 %v703, %v1105
      %v1234 = vadd.f32 %v704, %v1106
      %v1235 = vadd.f32 %v705, %v1107
      %v1236 = vadd.f32 %v706, %v1108
      %v1237 = vadd.f32 %v707, %v1109
      %v1238 = vadd.f32 %v708, %v1110
      %v1239 = vadd.f32 %v709, %v1111
      %v1240 = vadd.f32 %v710, %v1112
      %v1241 = vadd.f32 %v711, %v1113
      %v1242 = vadd.f32 %v712, %v1114
      %v1243 = vadd.f32 %v713, %v1115
      %v1244 = vadd.f32 %v714, %v1116
      %v1245 = vadd.f32 %v715, %v1117
      %v1246 = vadd.f32 %v716, %v1118
      %v1247 = vadd.f32 %v717, %v1119
      %v1248 = vadd.f32 %v718, %v1120
      %v1249 = vadd.f32 %v719, %v1121
      %v1250 = vadd.f32 %v720, %v1122
      %v1251 = vadd.f32 %v721, %v1123
      %v1252 = vadd.f32 %v722, %v1124
      %v1253 = vadd.f32 %v723, %v1125
      %v1254 = vadd.f32 %v724, %v1126
      %v1255 = vadd.f32 %v725, %v1127
      %v1256 = vadd.f32 %v726, %v1128
      %v1257 = vadd.f32 %v727, %v1129
      %v1258 = vadd.f32 %v728, %v1130
      %v1259 = vadd.f32 %v729, %v1131
      %v1260 = vadd.f32 %v730, %v1132
      %v1261 = vadd.f32 %v731, %v1133
      %v1262 = vadd.f32 %v732, %v1134
      %v1263 = vadd.f32 %v733, %v1135
      %v1264 = vadd.f32 %v734, %v1136
      %v1265 = vadd.f32 %v735, %v1137
      %v1266 = vadd.f32 %v736, %v1138
      %v1267 = vadd.f32 %v737, %v1139
      %v1268 = vadd.f32 %v738, %v1140
      %v1269 = vadd.f32 %v739, %v1141
      %v1270 = vadd.f32 %v740, %v1142
      %v1271 = vadd.f32 %v741, %v1143
      %v1272 = vadd.f32 %v742, %v1144
      %v1273 = vadd.f32 %v743, %v1145
      %v1274 = vadd.f32 %v744, %v1146
      %v1275 = vadd.f32 %v745, %v1147
      %v1276 = vadd.f32 %v746, %v1148
      %v1277 = vadd.f32 %v747, %v1149
      %v1278 = vadd.f32 %v748, %v1150
      %v1279 = vadd.f32 %v749, %v1151
      %v1280 = vadd.f32 %v750, %v1152
      %v1281 = vadd.f32 %v751, %v1153
      %v1282 = vadd.f32 %v752, %v1154
      %v1283 = vadd.f32 %v753, %v1155
      %v1284 = vadd.f32 %v754, %v1156
      %v1285 = vadd.f32 %v755, %v1157
      %v1286 = vadd.f32 %v756, %v1158
      %v1287 = vadd.f32 %v757, %v1159
      %v1288 = vadd.f32 %v758, %v1160
      %v1289 = vadd.f32 %v759, %v1161
      %v1290 = vadd.f32 %v760, %v1162
      %v1291 = vadd.f32 %v761, %v1163
      %v1292 = vadd.f32 %v762, %v1164
      %v1293 = vadd.f32 %v763, %v1165
      %v1294 = vadd.f32 %v764, %v1166
      %v1295 = vadd.f32 %v765, %v1167
      %v1296 = vadd.f32 %v766, %v1168
      %v1297 = vadd.f32 %v767, %v1169
      %v1298 = vadd.f32 %v768, %v1170
      %v1299 = vadd.f32 %v769, %v1171
      %v1300 = vadd.f32 %v770, %v1172
      %v1301 = vadd.f32 %v771, %v1173
      %v1302 = vadd.f32 %v772, %v1174
      %v1303 = vadd.f32 %v773, %v1175
      %v1304 = vadd.f32 %v774, %v1176
      %v1305 = vadd.f32 %v775, %v1177
      %v1306 = vadd.f32 %v776, %v1178
      %v1307 = vadd.f32 %v777, %v1179
      %v1308 = vadd.f32 %v778, %v1180
      %v1309 = vadd.f32 %v779, %v1181
      %v1310 = vadd.f32 %v780, %v1182
      %v1311 = vadd.f32 %v781, %v1183
      %v1312 = vadd.f32 %v782, %v1184
      %v1313 = vadd.f32 %v783, %v1185
      %v1314 = vadd.f32 %v784, %v1186
      %v1315 = vadd.f32 %v785, %v1187
      %v1316 = vadd.f32 %v786, %v1188
      %v1317 = vadd.f32 %v787, %v1189
      %1318 = vset.pattern.permute.xlu0 2
      %1319 = vperm.xlu0 %1318, %v257
      %v1320 = vpop.permute.xlu0 %1319
      %1322 = vset.pattern.permute.xlu0 2
      %1323 = vperm.xlu0 %1322, %v258
      %v1324 = vpop.permute.xlu0 %1323
      %1326 = vset.pattern.permute.xlu0 2
      %1327 = vperm.xlu0 %1326, %v259
      %v1328 = vpop.permute.xlu0 %1327
      %1330 = vset.pattern.permute.xlu0 2
      %1331 = vperm.xlu0 %1330, %v260
      %v1332 = vpop.permute.xlu0 %1331
      %1334 = vset.pattern.permute.xlu0 2
      %1335 = vperm.xlu0 %1334, %v261
      %v1336 = vpop.permute.xlu0 %1335
      %1338 = vset.pattern.permute.xlu0 2
      %1339 = vperm.xlu0 %1338, %v262
      %v1340 = vpop.permute.xlu0 %1339
      %1342 = vset.pattern.permute.xlu0 2
      %1343 = vperm.xlu0 %1342, %v263
      %v1344 = vpop.permute.xlu0 %1343
      %1346 = vset.pattern.permute.xlu0 2
      %1347 = vperm.xlu0 %1346, %v264
      %v1348 = vpop.permute.xlu0 %1347
      %1350 = vset.pattern.permute.xlu0 2
      %1351 = vperm.xlu0 %1350, %v265
      %v1352 = vpop.permute.xlu0 %1351
      %1354 = vset.pattern.permute.xlu0 2
      %1355 = vperm.xlu0 %1354, %v266
      %v1356 = vpop.permute.xlu0 %1355
      %1358 = vset.pattern.permute.xlu0 2
      %1359 = vperm.xlu0 %1358, %v267
      %v1360 = vpop.permute.xlu0 %1359
      %1362 = vset.pattern.permute.xlu0 2
      %1363 = vperm.xlu0 %1362, %v268
      %v1364 = vpop.permute.xlu0 %1363
      %1366 = vset.pattern.permute.xlu0 2
      %1367 = vperm.xlu0 %1366, %v269
      %v1368 = vpop.permute.xlu0 %1367
      %1370 = vset.pattern.permute.xlu0 2
      %1371 = vperm.xlu0 %1370, %v270
      %v1372 = vpop.permute.xlu0 %1371
      %1374 = vset.pattern.permute.xlu0 2
      %1375 = vperm.xlu0 %1374, %v271
      %v1376 = vpop.permute.xlu0 %1375
      %1378 = vset.pattern.permute.xlu0 2
      %1379 = vperm.xlu0 %1378, %v272
      %v1380 = vpop.permute.xlu0 %1379
      %1382 = vset.pattern.permute.xlu0 2
      %1383 = vperm.xlu0 %1382, %v273
      %v1384 = vpop.permute.xlu0 %1383
      %1386 = vset.pattern.permute.xlu0 2
      %1387 = vperm.xlu0 %1386, %v274
      %v1388 = vpop.permute.xlu0 %1387
      %1390 = vset.pattern.permute.xlu0 2
      %1391 = vperm.xlu0 %1390, %v275
      %v1392 = vpop.permute.xlu0 %1391
      %1394 = vset.pattern.permute.xlu0 2
      %1395 = vperm.xlu0 %1394, %v276
      %v1396 = vpop.permute.xlu0 %1395
      %1398 = vset.pattern.permute.xlu0 2
      %1399 = vperm.xlu0 %1398, %v277
      %v1400 = vpop.permute.xlu0 %1399
      %1402 = vset.pattern.permute.xlu0 2
      %1403 = vperm.xlu0 %1402, %v278
      %v1404 = vpop.permute.xlu0 %1403
      %1406 = vset.pattern.permute.xlu0 2
      %1407 = vperm.xlu0 %1406, %v279
      %v1408 = vpop.permute.xlu0 %1407
      %1410 = vset.pattern.permute.xlu0 2
      %1411 = vperm.xlu0 %1410, %v280
      %v1412 = vpop.permute.xlu0 %1411
      %1414 = vset.pattern.permute.xlu0 2
      %1415 = vperm.xlu0 %1414, %v281
      %v1416 = vpop.permute.xlu0 %1415
      %1418 = vset.pattern.permute.xlu0 2
      %1419 = vperm.xlu0 %1418, %v282
      %v1420 = vpop.permute.xlu0 %1419
      %1422 = vset.pattern.permute.xlu0 2
      %1423 = vperm.xlu0 %1422, %v283
      %v1424 = vpop.permute.xlu0 %1423
      %1426 = vset.pattern.permute.xlu0 2
      %1427 = vperm.xlu0 %1426, %v284
      %v1428 = vpop.permute.xlu0 %1427
      %1430 = vset.pattern.permute.xlu0 2
      %1431 = vperm.xlu0 %1430, %v285
      %v1432 = vpop.permute.xlu0 %1431
      %1434 = vset.pattern.permute.xlu0 2
      %1435 = vperm.xlu0 %1434, %v286
      %v1436 = vpop.permute.xlu0 %1435
      %1438 = vset.pattern.permute.xlu0 2
      %1439 = vperm.xlu0 %1438, %v287
      %v1440 = vpop.permute.xlu0 %1439
      %1442 = vset.pattern.permute.xlu0 2
      %1443 = vperm.xlu0 %1442, %v288
      %v1444 = vpop.permute.xlu0 %1443
      %1446 = vset.pattern.permute.xlu0 2
      %1447 = vperm.xlu0 %1446, %v289
      %v1448 = vpop.permute.xlu0 %1447
      %1450 = vset.pattern.permute.xlu0 2
      %1451 = vperm.xlu0 %1450, %v290
      %v1452 = vpop.permute.xlu0 %1451
      %1454 = vset.pattern.permute.xlu0 2
      %1455 = vperm.xlu0 %1454, %v291
      %v1456 = vpop.permute.xlu0 %1455
      %1458 = vset.pattern.permute.xlu0 2
      %1459 = vperm.xlu0 %1458, %v292
      %v1460 = vpop.permute.xlu0 %1459
      %1462 = vset.pattern.permute.xlu0 2
      %1463 = vperm.xlu0 %1462, %v293
      %v1464 = vpop.permute.xlu0 %1463
      %1466 = vset.pattern.permute.xlu0 2
      %1467 = vperm.xlu0 %1466, %v294
      %v1468 = vpop.permute.xlu0 %1467
      %1470 = vset.pattern.permute.xlu0 2
      %1471 = vperm.xlu0 %1470, %v295
      %v1472 = vpop.permute.xlu0 %1471
      %1474 = vset.pattern.permute.xlu0 2
      %1475 = vperm.xlu0 %1474, %v296
      %v1476 = vpop.permute.xlu0 %1475
      %1478 = vset.pattern.permute.xlu0 2
      %1479 = vperm.xlu0 %1478, %v297
      %v1480 = vpop.permute.xlu0 %1479
      %1482 = vset.pattern.permute.xlu0 2
      %1483 = vperm.xlu0 %1482, %v298
      %v1484 = vpop.permute.xlu0 %1483
      %1486 = vset.pattern.permute.xlu0 2
      %1487 = vperm.xlu0 %1486, %v299
      %v1488 = vpop.permute.xlu0 %1487
      %1490 = vset.pattern.permute.xlu0 2
      %1491 = vperm.xlu0 %1490, %v300
      %v1492 = vpop.permute.xlu0 %1491
      %1494 = vset.pattern.permute.xlu0 2
      %1495 = vperm.xlu0 %1494, %v301
      %v1496 = vpop.permute.xlu0 %1495
      %1498 = vset.pattern.permute.xlu0 2
      %1499 = vperm.xlu0 %1498, %v302
      %v1500 = vpop.permute.xlu0 %1499
      %1502 = vset.pattern.permute.xlu0 2
      %1503 = vperm.xlu0 %1502, %v303
      %v1504 = vpop.permute.xlu0 %1503
      %1506 = vset.pattern.permute.xlu0 2
      %1507 = vperm.xlu0 %1506, %v304
      %v1508 = vpop.permute.xlu0 %1507
      %1510 = vset.pattern.permute.xlu0 2
      %1511 = vperm.xlu0 %1510, %v305
      %v1512 = vpop.permute.xlu0 %1511
      %1514 = vset.pattern.permute.xlu0 2
      %1515 = vperm.xlu0 %1514, %v306
      %v1516 = vpop.permute.xlu0 %1515
      %1518 = vset.pattern.permute.xlu0 2
      %1519 = vperm.xlu0 %1518, %v307
      %v1520 = vpop.permute.xlu0 %1519
      %1522 = vset.pattern.permute.xlu0 2
      %1523 = vperm.xlu0 %1522, %v308
      %v1524 = vpop.permute.xlu0 %1523
      %1526 = vset.pattern.permute.xlu0 2
      %1527 = vperm.xlu0 %1526, %v309
      %v1528 = vpop.permute.xlu0 %1527
      %1530 = vset.pattern.permute.xlu0 2
      %1531 = vperm.xlu0 %1530, %v310
      %v1532 = vpop.permute.xlu0 %1531
      %1534 = vset.pattern.permute.xlu0 2
      %1535 = vperm.xlu0 %1534, %v311
      %v1536 = vpop.permute.xlu0 %1535
      %1538 = vset.pattern.permute.xlu0 2
      %1539 = vperm.xlu0 %1538, %v312
      %v1540 = vpop.permute.xlu0 %1539
      %1542 = vset.pattern.permute.xlu0 2
      %1543 = vperm.xlu0 %1542, %v313
      %v1544 = vpop.permute.xlu0 %1543
      %1546 = vset.pattern.permute.xlu0 2
      %1547 = vperm.xlu0 %1546, %v314
      %v1548 = vpop.permute.xlu0 %1547
      %1550 = vset.pattern.permute.xlu0 2
      %1551 = vperm.xlu0 %1550, %v315
      %v1552 = vpop.permute.xlu0 %1551
      %1554 = vset.pattern.permute.xlu0 2
      %1555 = vperm.xlu0 %1554, %v316
      %v1556 = vpop.permute.xlu0 %1555
      %1558 = vset.pattern.permute.xlu0 2
      %1559 = vperm.xlu0 %1558, %v317
      %v1560 = vpop.permute.xlu0 %1559
      %1562 = vset.pattern.permute.xlu0 2
      %1563 = vperm.xlu0 %1562, %v318
      %v1564 = vpop.permute.xlu0 %1563
      %1566 = vset.pattern.permute.xlu0 2
      %1567 = vperm.xlu0 %1566, %v319
      %v1568 = vpop.permute.xlu0 %1567
      %1570 = vset.pattern.permute.xlu0 2
      %1571 = vperm.xlu0 %1570, %v320
      %v1572 = vpop.permute.xlu0 %1571
      %v1574 = vlaneseq
      %v1575 = vshrl.u32 %v1574, 7
      %v1576 = vsub.s32 2, %v1575
      %v1577 = vrot.slane %v256, %v1576
      %v1578 = vlaneseq
      %v1579 = vshrl.u32 %v1578, 7
      %v1580 = vsub.s32 6, %v1579
      %v1581 = vrot.slane %v256, %v1580
      %v1584 = vlaneseq
      %v1585 = vshrl.u32 %v1584, 7
      %v1586 = vsub.s32 2, %v1585
      %v1587 = vrot.slane %v1577, %v1586
      %v1588 = vlaneseq
      %v1589 = vshrl.u32 %v1588, 7
      %v1590 = vsub.s32 2, %v1589
      %v1591 = vrot.slane %v1581, %v1590
      %v1592 = vmul.f32 %v1320, %v1587
      %v1593 = vmul.f32 %v1320, %v1591
      %v1594 = vmul.f32 %v1324, %v1587
      %v1595 = vmul.f32 %v1324, %v1591
      %v1596 = vmul.f32 %v1328, %v1587
      %v1597 = vmul.f32 %v1328, %v1591
      %v1598 = vmul.f32 %v1332, %v1587
      %v1599 = vmul.f32 %v1332, %v1591
      %v1600 = vmul.f32 %v1336, %v1587
      %v1601 = vmul.f32 %v1336, %v1591
      %v1602 = vmul.f32 %v1340, %v1587
      %v1603 = vmul.f32 %v1340, %v1591
      %v1604 = vmul.f32 %v1344, %v1587
      %v1605 = vmul.f32 %v1344, %v1591
      %v1606 = vmul.f32 %v1348, %v1587
      %v1607 = vmul.f32 %v1348, %v1591
      %v1608 = vmul.f32 %v1352, %v1587
      %v1609 = vmul.f32 %v1352, %v1591
      %v1610 = vmul.f32 %v1356, %v1587
      %v1611 = vmul.f32 %v1356, %v1591
      %v1612 = vmul.f32 %v1360, %v1587
      %v1613 = vmul.f32 %v1360, %v1591
      %v1614 = vmul.f32 %v1364, %v1587
      %v1615 = vmul.f32 %v1364, %v1591
      %v1616 = vmul.f32 %v1368, %v1587
      %v1617 = vmul.f32 %v1368, %v1591
      %v1618 = vmul.f32 %v1372, %v1587
      %v1619 = vmul.f32 %v1372, %v1591
      %v1620 = vmul.f32 %v1376, %v1587
      %v1621 = vmul.f32 %v1376, %v1591
      %v1622 = vmul.f32 %v1380, %v1587
      %v1623 = vmul.f32 %v1380, %v1591
      %v1624 = vmul.f32 %v1384, %v1587
      %v1625 = vmul.f32 %v1384, %v1591
      %v1626 = vmul.f32 %v1388, %v1587
      %v1627 = vmul.f32 %v1388, %v1591
      %v1628 = vmul.f32 %v1392, %v1587
      %v1629 = vmul.f32 %v1392, %v1591
      %v1630 = vmul.f32 %v1396, %v1587
      %v1631 = vmul.f32 %v1396, %v1591
      %v1632 = vmul.f32 %v1400, %v1587
      %v1633 = vmul.f32 %v1400, %v1591
      %v1634 = vmul.f32 %v1404, %v1587
      %v1635 = vmul.f32 %v1404, %v1591
      %v1636 = vmul.f32 %v1408, %v1587
      %v1637 = vmul.f32 %v1408, %v1591
      %v1638 = vmul.f32 %v1412, %v1587
      %v1639 = vmul.f32 %v1412, %v1591
      %v1640 = vmul.f32 %v1416, %v1587
      %v1641 = vmul.f32 %v1416, %v1591
      %v1642 = vmul.f32 %v1420, %v1587
      %v1643 = vmul.f32 %v1420, %v1591
      %v1644 = vmul.f32 %v1424, %v1587
      %v1645 = vmul.f32 %v1424, %v1591
      %v1646 = vmul.f32 %v1428, %v1587
      %v1647 = vmul.f32 %v1428, %v1591
      %v1648 = vmul.f32 %v1432, %v1587
      %v1649 = vmul.f32 %v1432, %v1591
      %v1650 = vmul.f32 %v1436, %v1587
      %v1651 = vmul.f32 %v1436, %v1591
      %v1652 = vmul.f32 %v1440, %v1587
      %v1653 = vmul.f32 %v1440, %v1591
      %v1654 = vmul.f32 %v1444, %v1587
      %v1655 = vmul.f32 %v1444, %v1591
      %v1656 = vmul.f32 %v1448, %v1587
      %v1657 = vmul.f32 %v1448, %v1591
      %v1658 = vmul.f32 %v1452, %v1587
      %v1659 = vmul.f32 %v1452, %v1591
      %v1660 = vmul.f32 %v1456, %v1587
      %v1661 = vmul.f32 %v1456, %v1591
      %v1662 = vmul.f32 %v1460, %v1587
      %v1663 = vmul.f32 %v1460, %v1591
      %v1664 = vmul.f32 %v1464, %v1587
      %v1665 = vmul.f32 %v1464, %v1591
      %v1666 = vmul.f32 %v1468, %v1587
      %v1667 = vmul.f32 %v1468, %v1591
      %v1668 = vmul.f32 %v1472, %v1587
      %v1669 = vmul.f32 %v1472, %v1591
      %v1670 = vmul.f32 %v1476, %v1587
      %v1671 = vmul.f32 %v1476, %v1591
      %v1672 = vmul.f32 %v1480, %v1587
      %v1673 = vmul.f32 %v1480, %v1591
      %v1674 = vmul.f32 %v1484, %v1587
      %v1675 = vmul.f32 %v1484, %v1591
      %v1676 = vmul.f32 %v1488, %v1587
      %v1677 = vmul.f32 %v1488, %v1591
      %v1678 = vmul.f32 %v1492, %v1587
      %v1679 = vmul.f32 %v1492, %v1591
      %v1680 = vmul.f32 %v1496, %v1587
      %v1681 = vmul.f32 %v1496, %v1591
      %v1682 = vmul.f32 %v1500, %v1587
      %v1683 = vmul.f32 %v1500, %v1591
      %v1684 = vmul.f32 %v1504, %v1587
      %v1685 = vmul.f32 %v1504, %v1591
      %v1686 = vmul.f32 %v1508, %v1587
      %v1687 = vmul.f32 %v1508, %v1591
      %v1688 = vmul.f32 %v1512, %v1587
      %v1689 = vmul.f32 %v1512, %v1591
      %v1690 = vmul.f32 %v1516, %v1587
      %v1691 = vmul.f32 %v1516, %v1591
      %v1692 = vmul.f32 %v1520, %v1587
      %v1693 = vmul.f32 %v1520, %v1591
      %v1694 = vmul.f32 %v1524, %v1587
      %v1695 = vmul.f32 %v1524, %v1591
      %v1696 = vmul.f32 %v1528, %v1587
      %v1697 = vmul.f32 %v1528, %v1591
      %v1698 = vmul.f32 %v1532, %v1587
      %v1699 = vmul.f32 %v1532, %v1591
      %v1700 = vmul.f32 %v1536, %v1587
      %v1701 = vmul.f32 %v1536, %v1591
      %v1702 = vmul.f32 %v1540, %v1587
      %v1703 = vmul.f32 %v1540, %v1591
      %v1704 = vmul.f32 %v1544, %v1587
      %v1705 = vmul.f32 %v1544, %v1591
      %v1706 = vmul.f32 %v1548, %v1587
      %v1707 = vmul.f32 %v1548, %v1591
      %v1708 = vmul.f32 %v1552, %v1587
      %v1709 = vmul.f32 %v1552, %v1591
      %v1710 = vmul.f32 %v1556, %v1587
      %v1711 = vmul.f32 %v1556, %v1591
      %v1712 = vmul.f32 %v1560, %v1587
      %v1713 = vmul.f32 %v1560, %v1591
      %v1714 = vmul.f32 %v1564, %v1587
      %v1715 = vmul.f32 %v1564, %v1591
      %v1716 = vmul.f32 %v1568, %v1587
      %v1717 = vmul.f32 %v1568, %v1591
      %v1718 = vmul.f32 %v1572, %v1587
      %v1719 = vmul.f32 %v1572, %v1591
      %v1720 = vadd.f32 %v1190, %v1592
      %v1721 = vadd.f32 %v1191, %v1593
      %v1722 = vadd.f32 %v1192, %v1594
      %v1723 = vadd.f32 %v1193, %v1595
      %v1724 = vadd.f32 %v1194, %v1596
      %v1725 = vadd.f32 %v1195, %v1597
      %v1726 = vadd.f32 %v1196, %v1598
      %v1727 = vadd.f32 %v1197, %v1599
      %v1728 = vadd.f32 %v1198, %v1600
      %v1729 = vadd.f32 %v1199, %v1601
      %v1730 = vadd.f32 %v1200, %v1602
      %v1731 = vadd.f32 %v1201, %v1603
      %v1732 = vadd.f32 %v1202, %v1604
      %v1733 = vadd.f32 %v1203, %v1605
      %v1734 = vadd.f32 %v1204, %v1606
      %v1735 = vadd.f32 %v1205, %v1607
      %v1736 = vadd.f32 %v1206, %v1608
      %v1737 = vadd.f32 %v1207, %v1609
      %v1738 = vadd.f32 %v1208, %v1610
      %v1739 = vadd.f32 %v1209, %v1611
      %v1740 = vadd.f32 %v1210, %v1612
      %v1741 = vadd.f32 %v1211, %v1613
      %v1742 = vadd.f32 %v1212, %v1614
      %v1743 = vadd.f32 %v1213, %v1615
      %v1744 = vadd.f32 %v1214, %v1616
      %v1745 = vadd.f32 %v1215, %v1617
      %v1746 = vadd.f32 %v1216, %v1618
      %v1747 = vadd.f32 %v1217, %v1619
      %v1748 = vadd.f32 %v1218, %v1620
      %v1749 = vadd.f32 %v1219, %v1621
      %v1750 = vadd.f32 %v1220, %v1622
      %v1751 = vadd.f32 %v1221, %v1623
      %v1752 = vadd.f32 %v1222, %v1624
      %v1753 = vadd.f32 %v1223, %v1625
      %v1754 = vadd.f32 %v1224, %v1626
      %v1755 = vadd.f32 %v1225, %v1627
      %v1756 = vadd.f32 %v1226, %v1628
      %v1757 = vadd.f32 %v1227, %v1629
      %v1758 = vadd.f32 %v1228, %v1630
      %v1759 = vadd.f32 %v1229, %v1631
      %v1760 = vadd.f32 %v1230, %v1632
      %v1761 = vadd.f32 %v1231, %v1633
      %v1762 = vadd.f32 %v1232, %v1634
      %v1763 = vadd.f32 %v1233, %v1635
      %v1764 = vadd.f32 %v1234, %v1636
      %v1765 = vadd.f32 %v1235, %v1637
      %v1766 = vadd.f32 %v1236, %v1638
      %v1767 = vadd.f32 %v1237, %v1639
      %v1768 = vadd.f32 %v1238, %v1640
      %v1769 = vadd.f32 %v1239, %v1641
      %v1770 = vadd.f32 %v1240, %v1642
      %v1771 = vadd.f32 %v1241, %v1643
      %v1772 = vadd.f32 %v1242, %v1644
      %v1773 = vadd.f32 %v1243, %v1645
      %v1774 = vadd.f32 %v1244, %v1646
      %v1775 = vadd.f32 %v1245, %v1647
      %v1776 = vadd.f32 %v1246, %v1648
      %v1777 = vadd.f32 %v1247, %v1649
      %v1778 = vadd.f32 %v1248, %v1650
      %v1779 = vadd.f32 %v1249, %v1651
      %v1780 = vadd.f32 %v1250, %v1652
      %v1781 = vadd.f32 %v1251, %v1653
      %v1782 = vadd.f32 %v1252, %v1654
      %v1783 = vadd.f32 %v1253, %v1655
      %v1784 = vadd.f32 %v1254, %v1656
      %v1785 = vadd.f32 %v1255, %v1657
      %v1786 = vadd.f32 %v1256, %v1658
      %v1787 = vadd.f32 %v1257, %v1659
      %v1788 = vadd.f32 %v1258, %v1660
      %v1789 = vadd.f32 %v1259, %v1661
      %v1790 = vadd.f32 %v1260, %v1662
      %v1791 = vadd.f32 %v1261, %v1663
      %v1792 = vadd.f32 %v1262, %v1664
      %v1793 = vadd.f32 %v1263, %v1665
      %v1794 = vadd.f32 %v1264, %v1666
      %v1795 = vadd.f32 %v1265, %v1667
      %v1796 = vadd.f32 %v1266, %v1668
      %v1797 = vadd.f32 %v1267, %v1669
      %v1798 = vadd.f32 %v1268, %v1670
      %v1799 = vadd.f32 %v1269, %v1671
      %v1800 = vadd.f32 %v1270, %v1672
      %v1801 = vadd.f32 %v1271, %v1673
      %v1802 = vadd.f32 %v1272, %v1674
      %v1803 = vadd.f32 %v1273, %v1675
      %v1804 = vadd.f32 %v1274, %v1676
      %v1805 = vadd.f32 %v1275, %v1677
      %v1806 = vadd.f32 %v1276, %v1678
      %v1807 = vadd.f32 %v1277, %v1679
      %v1808 = vadd.f32 %v1278, %v1680
      %v1809 = vadd.f32 %v1279, %v1681
      %v1810 = vadd.f32 %v1280, %v1682
      %v1811 = vadd.f32 %v1281, %v1683
      %v1812 = vadd.f32 %v1282, %v1684
      %v1813 = vadd.f32 %v1283, %v1685
      %v1814 = vadd.f32 %v1284, %v1686
      %v1815 = vadd.f32 %v1285, %v1687
      %v1816 = vadd.f32 %v1286, %v1688
      %v1817 = vadd.f32 %v1287, %v1689
      %v1818 = vadd.f32 %v1288, %v1690
      %v1819 = vadd.f32 %v1289, %v1691
      %v1820 = vadd.f32 %v1290, %v1692
      %v1821 = vadd.f32 %v1291, %v1693
      %v1822 = vadd.f32 %v1292, %v1694
      %v1823 = vadd.f32 %v1293, %v1695
      %v1824 = vadd.f32 %v1294, %v1696
      %v1825 = vadd.f32 %v1295, %v1697
      %v1826 = vadd.f32 %v1296, %v1698
      %v1827 = vadd.f32 %v1297, %v1699
      %v1828 = vadd.f32 %v1298, %v1700
      %v1829 = vadd.f32 %v1299, %v1701
      %v1830 = vadd.f32 %v1300, %v1702
      %v1831 = vadd.f32 %v1301, %v1703
      %v1832 = vadd.f32 %v1302, %v1704
      %v1833 = vadd.f32 %v1303, %v1705
      %v1834 = vadd.f32 %v1304, %v1706
      %v1835 = vadd.f32 %v1305, %v1707
      %v1836 = vadd.f32 %v1306, %v1708
      %v1837 = vadd.f32 %v1307, %v1709
      %v1838 = vadd.f32 %v1308, %v1710
      %v1839 = vadd.f32 %v1309, %v1711
      %v1840 = vadd.f32 %v1310, %v1712
      %v1841 = vadd.f32 %v1311, %v1713
      %v1842 = vadd.f32 %v1312, %v1714
      %v1843 = vadd.f32 %v1313, %v1715
      %v1844 = vadd.f32 %v1314, %v1716
      %v1845 = vadd.f32 %v1315, %v1717
      %v1846 = vadd.f32 %v1316, %v1718
      %v1847 = vadd.f32 %v1317, %v1719
      %v1848 = vld [vmem:[%s2] sm:$0xff]
      %v1849 = vld [vmem:[%s2 + $0x8] sm:$0xff]
      %v1850 = vld [vmem:[%s2 + $0x10] sm:$0xff]
      %v1851 = vld [vmem:[%s2 + $0x18] sm:$0xff]
      %v1852 = vld [vmem:[%s2 + $0x20] sm:$0xff]
      %v1853 = vld [vmem:[%s2 + $0x28] sm:$0xff]
      %v1854 = vld [vmem:[%s2 + $0x30] sm:$0xff]
      %v1855 = vld [vmem:[%s2 + $0x38] sm:$0xff]
      %v1856 = vld [vmem:[%s2 + $0x40] sm:$0xff]
      %v1857 = vld [vmem:[%s2 + $0x48] sm:$0xff]
      %v1858 = vld [vmem:[%s2 + $0x50] sm:$0xff]
      %v1859 = vld [vmem:[%s2 + $0x58] sm:$0xff]
      %v1860 = vld [vmem:[%s2 + $0x60] sm:$0xff]
      %v1861 = vld [vmem:[%s2 + $0x68] sm:$0xff]
      %v1862 = vld [vmem:[%s2 + $0x70] sm:$0xff]
      %v1863 = vld [vmem:[%s2 + $0x78] sm:$0xff]
      %v1864 = vld [vmem:[%s2 + $0x80] sm:$0xff]
      %v1865 = vld [vmem:[%s2 + $0x88] sm:$0xff]
      %v1866 = vld [vmem:[%s2 + $0x90] sm:$0xff]
      %v1867 = vld [vmem:[%s2 + $0x98] sm:$0xff]
      %v1868 = vld [vmem:[%s2 + $0xa0] sm:$0xff]
      %v1869 = vld [vmem:[%s2 + $0xa8] sm:$0xff]
      %v1870 = vld [vmem:[%s2 + $0xb0] sm:$0xff]
      %v1871 = vld [vmem:[%s2 + $0xb8] sm:$0xff]
      %v1872 = vld [vmem:[%s2 + $0xc0] sm:$0xff]
      %v1873 = vld [vmem:[%s2 + $0xc8] sm:$0xff]
      %v1874 = vld [vmem:[%s2 + $0xd0] sm:$0xff]
      %v1875 = vld [vmem:[%s2 + $0xd8] sm:$0xff]
      %v1876 = vld [vmem:[%s2 + $0xe0] sm:$0xff]
      %v1877 = vld [vmem:[%s2 + $0xe8] sm:$0xff]
      %v1878 = vld [vmem:[%s2 + $0xf0] sm:$0xff]
      %v1879 = vld [vmem:[%s2 + $0xf8] sm:$0xff]
      %v1880 = vld [vmem:[%s2 + $0x100] sm:$0xff]
      %v1881 = vld [vmem:[%s2 + $0x108] sm:$0xff]
      %v1882 = vld [vmem:[%s2 + $0x110] sm:$0xff]
      %v1883 = vld [vmem:[%s2 + $0x118] sm:$0xff]
      %v1884 = vld [vmem:[%s2 + $0x120] sm:$0xff]
      %v1885 = vld [vmem:[%s2 + $0x128] sm:$0xff]
      %v1886 = vld [vmem:[%s2 + $0x130] sm:$0xff]
      %v1887 = vld [vmem:[%s2 + $0x138] sm:$0xff]
      %v1888 = vld [vmem:[%s2 + $0x140] sm:$0xff]
      %v1889 = vld [vmem:[%s2 + $0x148] sm:$0xff]
      %v1890 = vld [vmem:[%s2 + $0x150] sm:$0xff]
      %v1891 = vld [vmem:[%s2 + $0x158] sm:$0xff]
      %v1892 = vld [vmem:[%s2 + $0x160] sm:$0xff]
      %v1893 = vld [vmem:[%s2 + $0x168] sm:$0xff]
      %v1894 = vld [vmem:[%s2 + $0x170] sm:$0xff]
      %v1895 = vld [vmem:[%s2 + $0x178] sm:$0xff]
      %v1896 = vld [vmem:[%s2 + $0x180] sm:$0xff]
      %v1897 = vld [vmem:[%s2 + $0x188] sm:$0xff]
      %v1898 = vld [vmem:[%s2 + $0x190] sm:$0xff]
      %v1899 = vld [vmem:[%s2 + $0x198] sm:$0xff]
      %v1900 = vld [vmem:[%s2 + $0x1a0] sm:$0xff]
      %v1901 = vld [vmem:[%s2 + $0x1a8] sm:$0xff]
      %v1902 = vld [vmem:[%s2 + $0x1b0] sm:$0xff]
      %v1903 = vld [vmem:[%s2 + $0x1b8] sm:$0xff]
      %v1904 = vld [vmem:[%s2 + $0x1c0] sm:$0xff]
      %v1905 = vld [vmem:[%s2 + $0x1c8] sm:$0xff]
      %v1906 = vld [vmem:[%s2 + $0x1d0] sm:$0xff]
      %v1907 = vld [vmem:[%s2 + $0x1d8] sm:$0xff]
      %v1908 = vld [vmem:[%s2 + $0x1e0] sm:$0xff]
      %v1909 = vld [vmem:[%s2 + $0x1e8] sm:$0xff]
      %v1910 = vld [vmem:[%s2 + $0x1f0] sm:$0xff]
      %v1911 = vld [vmem:[%s2 + $0x1f8] sm:$0xff]
      %1913 = vset.pattern.permute.xlu0 0
      %1914 = vperm.xlu0 %1913, %v1848
      %v1915 = vpop.permute.xlu0 %1914
      %1918 = vset.pattern.permute.xlu0 0
      %1919 = vperm.xlu0 %1918, %v1849
      %v1920 = vpop.permute.xlu0 %1919
      %1923 = vset.pattern.permute.xlu0 0
      %1924 = vperm.xlu0 %1923, %v1850
      %v1925 = vpop.permute.xlu0 %1924
      %1928 = vset.pattern.permute.xlu0 0
      %1929 = vperm.xlu0 %1928, %v1851
      %v1930 = vpop.permute.xlu0 %1929
      %1933 = vset.pattern.permute.xlu0 0
      %1934 = vperm.xlu0 %1933, %v1852
      %v1935 = vpop.permute.xlu0 %1934
      %1938 = vset.pattern.permute.xlu0 0
      %1939 = vperm.xlu0 %1938, %v1853
      %v1940 = vpop.permute.xlu0 %1939
      %1943 = vset.pattern.permute.xlu0 0
      %1944 = vperm.xlu0 %1943, %v1854
      %v1945 = vpop.permute.xlu0 %1944
      %1948 = vset.pattern.permute.xlu0 0
      %1949 = vperm.xlu0 %1948, %v1855
      %v1950 = vpop.permute.xlu0 %1949
      %1953 = vset.pattern.permute.xlu0 0
      %1954 = vperm.xlu0 %1953, %v1856
      %v1955 = vpop.permute.xlu0 %1954
      %1958 = vset.pattern.permute.xlu0 0
      %1959 = vperm.xlu0 %1958, %v1857
      %v1960 = vpop.permute.xlu0 %1959
      %1963 = vset.pattern.permute.xlu0 0
      %1964 = vperm.xlu0 %1963, %v1858
      %v1965 = vpop.permute.xlu0 %1964
      %1968 = vset.pattern.permute.xlu0 0
      %1969 = vperm.xlu0 %1968, %v1859
      %v1970 = vpop.permute.xlu0 %1969
      %1973 = vset.pattern.permute.xlu0 0
      %1974 = vperm.xlu0 %1973, %v1860
      %v1975 = vpop.permute.xlu0 %1974
      %1978 = vset.pattern.permute.xlu0 0
      %1979 = vperm.xlu0 %1978, %v1861
      %v1980 = vpop.permute.xlu0 %1979
      %1983 = vset.pattern.permute.xlu0 0
      %1984 = vperm.xlu0 %1983, %v1862
      %v1985 = vpop.permute.xlu0 %1984
      %1988 = vset.pattern.permute.xlu0 0
      %1989 = vperm.xlu0 %1988, %v1863
      %v1990 = vpop.permute.xlu0 %1989
      %1993 = vset.pattern.permute.xlu0 0
      %1994 = vperm.xlu0 %1993, %v1864
      %v1995 = vpop.permute.xlu0 %1994
      %1998 = vset.pattern.permute.xlu0 0
      %1999 = vperm.xlu0 %1998, %v1865
      %v2000 = vpop.permute.xlu0 %1999
      %2003 = vset.pattern.permute.xlu0 0
      %2004 = vperm.xlu0 %2003, %v1866
      %v2005 = vpop.permute.xlu0 %2004
      %2008 = vset.pattern.permute.xlu0 0
      %2009 = vperm.xlu0 %2008, %v1867
      %v2010 = vpop.permute.xlu0 %2009
      %2013 = vset.pattern.permute.xlu0 0
      %2014 = vperm.xlu0 %2013, %v1868
      %v2015 = vpop.permute.xlu0 %2014
      %2018 = vset.pattern.permute.xlu0 0
      %2019 = vperm.xlu0 %2018, %v1869
      %v2020 = vpop.permute.xlu0 %2019
      %2023 = vset.pattern.permute.xlu0 0
      %2024 = vperm.xlu0 %2023, %v1870
      %v2025 = vpop.permute.xlu0 %2024
      %2028 = vset.pattern.permute.xlu0 0
      %2029 = vperm.xlu0 %2028, %v1871
      %v2030 = vpop.permute.xlu0 %2029
      %2033 = vset.pattern.permute.xlu0 0
      %2034 = vperm.xlu0 %2033, %v1872
      %v2035 = vpop.permute.xlu0 %2034
      %2038 = vset.pattern.permute.xlu0 0
      %2039 = vperm.xlu0 %2038, %v1873
      %v2040 = vpop.permute.xlu0 %2039
      %2043 = vset.pattern.permute.xlu0 0
      %2044 = vperm.xlu0 %2043, %v1874
      %v2045 = vpop.permute.xlu0 %2044
      %2048 = vset.pattern.permute.xlu0 0
      %2049 = vperm.xlu0 %2048, %v1875
      %v2050 = vpop.permute.xlu0 %2049
      %2053 = vset.pattern.permute.xlu0 0
      %2054 = vperm.xlu0 %2053, %v1876
      %v2055 = vpop.permute.xlu0 %2054
      %2058 = vset.pattern.permute.xlu0 0
      %2059 = vperm.xlu0 %2058, %v1877
      %v2060 = vpop.permute.xlu0 %2059
      %2063 = vset.pattern.permute.xlu0 0
      %2064 = vperm.xlu0 %2063, %v1878
      %v2065 = vpop.permute.xlu0 %2064
      %2068 = vset.pattern.permute.xlu0 0
      %2069 = vperm.xlu0 %2068, %v1879
      %v2070 = vpop.permute.xlu0 %2069
      %2073 = vset.pattern.permute.xlu0 0
      %2074 = vperm.xlu0 %2073, %v1880
      %v2075 = vpop.permute.xlu0 %2074
      %2078 = vset.pattern.permute.xlu0 0
      %2079 = vperm.xlu0 %2078, %v1881
      %v2080 = vpop.permute.xlu0 %2079
      %2083 = vset.pattern.permute.xlu0 0
      %2084 = vperm.xlu0 %2083, %v1882
      %v2085 = vpop.permute.xlu0 %2084
      %2088 = vset.pattern.permute.xlu0 0
      %2089 = vperm.xlu0 %2088, %v1883
      %v2090 = vpop.permute.xlu0 %2089
      %2093 = vset.pattern.permute.xlu0 0
      %2094 = vperm.xlu0 %2093, %v1884
      %v2095 = vpop.permute.xlu0 %2094
      %2098 = vset.pattern.permute.xlu0 0
      %2099 = vperm.xlu0 %2098, %v1885
      %v2100 = vpop.permute.xlu0 %2099
      %2103 = vset.pattern.permute.xlu0 0
      %2104 = vperm.xlu0 %2103, %v1886
      %v2105 = vpop.permute.xlu0 %2104
      %2108 = vset.pattern.permute.xlu0 0
      %2109 = vperm.xlu0 %2108, %v1887
      %v2110 = vpop.permute.xlu0 %2109
      %2113 = vset.pattern.permute.xlu0 0
      %2114 = vperm.xlu0 %2113, %v1888
      %v2115 = vpop.permute.xlu0 %2114
      %2118 = vset.pattern.permute.xlu0 0
      %2119 = vperm.xlu0 %2118, %v1889
      %v2120 = vpop.permute.xlu0 %2119
      %2123 = vset.pattern.permute.xlu0 0
      %2124 = vperm.xlu0 %2123, %v1890
      %v2125 = vpop.permute.xlu0 %2124
      %2128 = vset.pattern.permute.xlu0 0
      %2129 = vperm.xlu0 %2128, %v1891
      %v2130 = vpop.permute.xlu0 %2129
      %2133 = vset.pattern.permute.xlu0 0
      %2134 = vperm.xlu0 %2133, %v1892
      %v2135 = vpop.permute.xlu0 %2134
      %2138 = vset.pattern.permute.xlu0 0
      %2139 = vperm.xlu0 %2138, %v1893
      %v2140 = vpop.permute.xlu0 %2139
      %2143 = vset.pattern.permute.xlu0 0
      %2144 = vperm.xlu0 %2143, %v1894
      %v2145 = vpop.permute.xlu0 %2144
      %2148 = vset.pattern.permute.xlu0 0
      %2149 = vperm.xlu0 %2148, %v1895
      %v2150 = vpop.permute.xlu0 %2149
      %2153 = vset.pattern.permute.xlu0 0
      %2154 = vperm.xlu0 %2153, %v1896
      %v2155 = vpop.permute.xlu0 %2154
      %2158 = vset.pattern.permute.xlu0 0
      %2159 = vperm.xlu0 %2158, %v1897
      %v2160 = vpop.permute.xlu0 %2159
      %2163 = vset.pattern.permute.xlu0 0
      %2164 = vperm.xlu0 %2163, %v1898
      %v2165 = vpop.permute.xlu0 %2164
      %2168 = vset.pattern.permute.xlu0 0
      %2169 = vperm.xlu0 %2168, %v1899
      %v2170 = vpop.permute.xlu0 %2169
      %2173 = vset.pattern.permute.xlu0 0
      %2174 = vperm.xlu0 %2173, %v1900
      %v2175 = vpop.permute.xlu0 %2174
      %2178 = vset.pattern.permute.xlu0 0
      %2179 = vperm.xlu0 %2178, %v1901
      %v2180 = vpop.permute.xlu0 %2179
      %2183 = vset.pattern.permute.xlu0 0
      %2184 = vperm.xlu0 %2183, %v1902
      %v2185 = vpop.permute.xlu0 %2184
      %2188 = vset.pattern.permute.xlu0 0
      %2189 = vperm.xlu0 %2188, %v1903
      %v2190 = vpop.permute.xlu0 %2189
      %2193 = vset.pattern.permute.xlu0 0
      %2194 = vperm.xlu0 %2193, %v1904
      %v2195 = vpop.permute.xlu0 %2194
      %2198 = vset.pattern.permute.xlu0 0
      %2199 = vperm.xlu0 %2198, %v1905
      %v2200 = vpop.permute.xlu0 %2199
      %2203 = vset.pattern.permute.xlu0 0
      %2204 = vperm.xlu0 %2203, %v1906
      %v2205 = vpop.permute.xlu0 %2204
      %2208 = vset.pattern.permute.xlu0 0
      %2209 = vperm.xlu0 %2208, %v1907
      %v2210 = vpop.permute.xlu0 %2209
      %2213 = vset.pattern.permute.xlu0 0
      %2214 = vperm.xlu0 %2213, %v1908
      %v2215 = vpop.permute.xlu0 %2214
      %2218 = vset.pattern.permute.xlu0 0
      %2219 = vperm.xlu0 %2218, %v1909
      %v2220 = vpop.permute.xlu0 %2219
      %2223 = vset.pattern.permute.xlu0 0
      %2224 = vperm.xlu0 %2223, %v1910
      %v2225 = vpop.permute.xlu0 %2224
      %2228 = vset.pattern.permute.xlu0 0
      %2229 = vperm.xlu0 %2228, %v1911
      %v2230 = vpop.permute.xlu0 %2229
      %v2232 = vadd.f32 %v1720, %v1915
      %v2233 = vadd.f32 %v1721, %v1915
      %v2234 = vadd.f32 %v1722, %v1920
      %v2235 = vadd.f32 %v1723, %v1920
      %v2236 = vadd.f32 %v1724, %v1925
      %v2237 = vadd.f32 %v1725, %v1925
      %v2238 = vadd.f32 %v1726, %v1930
      %v2239 = vadd.f32 %v1727, %v1930
      %v2240 = vadd.f32 %v1728, %v1935
      %v2241 = vadd.f32 %v1729, %v1935
      %v2242 = vadd.f32 %v1730, %v1940
      %v2243 = vadd.f32 %v1731, %v1940
      %v2244 = vadd.f32 %v1732, %v1945
      %v2245 = vadd.f32 %v1733, %v1945
      %v2246 = vadd.f32 %v1734, %v1950
      %v2247 = vadd.f32 %v1735, %v1950
      %v2248 = vadd.f32 %v1736, %v1955
      %v2249 = vadd.f32 %v1737, %v1955
      %v2250 = vadd.f32 %v1738, %v1960
      %v2251 = vadd.f32 %v1739, %v1960
      %v2252 = vadd.f32 %v1740, %v1965
      %v2253 = vadd.f32 %v1741, %v1965
      %v2254 = vadd.f32 %v1742, %v1970
      %v2255 = vadd.f32 %v1743, %v1970
      %v2256 = vadd.f32 %v1744, %v1975
      %v2257 = vadd.f32 %v1745, %v1975
      %v2258 = vadd.f32 %v1746, %v1980
      %v2259 = vadd.f32 %v1747, %v1980
      %v2260 = vadd.f32 %v1748, %v1985
      %v2261 = vadd.f32 %v1749, %v1985
      %v2262 = vadd.f32 %v1750, %v1990
      %v2263 = vadd.f32 %v1751, %v1990
      %v2264 = vadd.f32 %v1752, %v1995
      %v2265 = vadd.f32 %v1753, %v1995
      %v2266 = vadd.f32 %v1754, %v2000
      %v2267 = vadd.f32 %v1755, %v2000
      %v2268 = vadd.f32 %v1756, %v2005
      %v2269 = vadd.f32 %v1757, %v2005
      %v2270 = vadd.f32 %v1758, %v2010
      %v2271 = vadd.f32 %v1759, %v2010
      %v2272 = vadd.f32 %v1760, %v2015
      %v2273 = vadd.f32 %v1761, %v2015
      %v2274 = vadd.f32 %v1762, %v2020
      %v2275 = vadd.f32 %v1763, %v2020
      %v2276 = vadd.f32 %v1764, %v2025
      %v2277 = vadd.f32 %v1765, %v2025
      %v2278 = vadd.f32 %v1766, %v2030
      %v2279 = vadd.f32 %v1767, %v2030
      %v2280 = vadd.f32 %v1768, %v2035
      %v2281 = vadd.f32 %v1769, %v2035
      %v2282 = vadd.f32 %v1770, %v2040
      %v2283 = vadd.f32 %v1771, %v2040
      %v2284 = vadd.f32 %v1772, %v2045
      %v2285 = vadd.f32 %v1773, %v2045
      %v2286 = vadd.f32 %v1774, %v2050
      %v2287 = vadd.f32 %v1775, %v2050
      %v2288 = vadd.f32 %v1776, %v2055
      %v2289 = vadd.f32 %v1777, %v2055
      %v2290 = vadd.f32 %v1778, %v2060
      %v2291 = vadd.f32 %v1779, %v2060
      %v2292 = vadd.f32 %v1780, %v2065
      %v2293 = vadd.f32 %v1781, %v2065
      %v2294 = vadd.f32 %v1782, %v2070
      %v2295 = vadd.f32 %v1783, %v2070
      %v2296 = vadd.f32 %v1784, %v2075
      %v2297 = vadd.f32 %v1785, %v2075
      %v2298 = vadd.f32 %v1786, %v2080
      %v2299 = vadd.f32 %v1787, %v2080
      %v2300 = vadd.f32 %v1788, %v2085
      %v2301 = vadd.f32 %v1789, %v2085
      %v2302 = vadd.f32 %v1790, %v2090
      %v2303 = vadd.f32 %v1791, %v2090
      %v2304 = vadd.f32 %v1792, %v2095
      %v2305 = vadd.f32 %v1793, %v2095
      %v2306 = vadd.f32 %v1794, %v2100
      %v2307 = vadd.f32 %v1795, %v2100
      %v2308 = vadd.f32 %v1796, %v2105
      %v2309 = vadd.f32 %v1797, %v2105
      %v2310 = vadd.f32 %v1798, %v2110
      %v2311 = vadd.f32 %v1799, %v2110
      %v2312 = vadd.f32 %v1800, %v2115
      %v2313 = vadd.f32 %v1801, %v2115
      %v2314 = vadd.f32 %v1802, %v2120
      %v2315 = vadd.f32 %v1803, %v2120
      %v2316 = vadd.f32 %v1804, %v2125
      %v2317 = vadd.f32 %v1805, %v2125
      %v2318 = vadd.f32 %v1806, %v2130
      %v2319 = vadd.f32 %v1807, %v2130
      %v2320 = vadd.f32 %v1808, %v2135
      %v2321 = vadd.f32 %v1809, %v2135
      %v2322 = vadd.f32 %v1810, %v2140
      %v2323 = vadd.f32 %v1811, %v2140
      %v2324 = vadd.f32 %v1812, %v2145
      %v2325 = vadd.f32 %v1813, %v2145
      %v2326 = vadd.f32 %v1814, %v2150
      %v2327 = vadd.f32 %v1815, %v2150
      %v2328 = vadd.f32 %v1816, %v2155
      %v2329 = vadd.f32 %v1817, %v2155
      %v2330 = vadd.f32 %v1818, %v2160
      %v2331 = vadd.f32 %v1819, %v2160
      %v2332 = vadd.f32 %v1820, %v2165
      %v2333 = vadd.f32 %v1821, %v2165
      %v2334 = vadd.f32 %v1822, %v2170
      %v2335 = vadd.f32 %v1823, %v2170
      %v2336 = vadd.f32 %v1824, %v2175
      %v2337 = vadd.f32 %v1825, %v2175
      %v2338 = vadd.f32 %v1826, %v2180
      %v2339 = vadd.f32 %v1827, %v2180
      %v2340 = vadd.f32 %v1828, %v2185
      %v2341 = vadd.f32 %v1829, %v2185
      %v2342 = vadd.f32 %v1830, %v2190
      %v2343 = vadd.f32 %v1831, %v2190
      %v2344 = vadd.f32 %v1832, %v2195
      %v2345 = vadd.f32 %v1833, %v2195
      %v2346 = vadd.f32 %v1834, %v2200
      %v2347 = vadd.f32 %v1835, %v2200
      %v2348 = vadd.f32 %v1836, %v2205
      %v2349 = vadd.f32 %v1837, %v2205
      %v2350 = vadd.f32 %v1838, %v2210
      %v2351 = vadd.f32 %v1839, %v2210
      %v2352 = vadd.f32 %v1840, %v2215
      %v2353 = vadd.f32 %v1841, %v2215
      %v2354 = vadd.f32 %v1842, %v2220
      %v2355 = vadd.f32 %v1843, %v2220
      %v2356 = vadd.f32 %v1844, %v2225
      %v2357 = vadd.f32 %v1845, %v2225
      %v2358 = vadd.f32 %v1846, %v2230
      %v2359 = vadd.f32 %v1847, %v2230
      %v2360 = vmax.f32 %v2232, 0.0
      %v2361 = vmax.f32 %v2233, 0.0
      %v2362 = vmax.f32 %v2234, 0.0
      %v2363 = vmax.f32 %v2235, 0.0
      %v2364 = vmax.f32 %v2236, 0.0
      %v2365 = vmax.f32 %v2237, 0.0
      %v2366 = vmax.f32 %v2238, 0.0
      %v2367 = vmax.f32 %v2239, 0.0
      %v2368 = vmax.f32 %v2240, 0.0
      %v2369 = vmax.f32 %v2241, 0.0
      %v2370 = vmax.f32 %v2242, 0.0
      %v2371 = vmax.f32 %v2243, 0.0
      %v2372 = vmax.f32 %v2244, 0.0
      %v2373 = vmax.f32 %v2245, 0.0
      %v2374 = vmax.f32 %v2246, 0.0
      %v2375 = vmax.f32 %v2247, 0.0
      %v2376 = vmax.f32 %v2248, 0.0
      %v2377 = vmax.f32 %v2249, 0.0
      %v2378 = vmax.f32 %v2250, 0.0
      %v2379 = vmax.f32 %v2251, 0.0
      %v2380 = vmax.f32 %v2252, 0.0
      %v2381 = vmax.f32 %v2253, 0.0
      %v2382 = vmax.f32 %v2254, 0.0
      %v2383 = vmax.f32 %v2255, 0.0
      %v2384 = vmax.f32 %v2256, 0.0
      %v2385 = vmax.f32 %v2257, 0.0
      %v2386 = vmax.f32 %v2258, 0.0
      %v2387 = vmax.f32 %v2259, 0.0
      %v2388 = vmax.f32 %v2260, 0.0
      %v2389 = vmax.f32 %v2261, 0.0
      %v2390 = vmax.f32 %v2262, 0.0
      %v2391 = vmax.f32 %v2263, 0.0
      %v2392 = vmax.f32 %v2264, 0.0
      %v2393 = vmax.f32 %v2265, 0.0
      %v2394 = vmax.f32 %v2266, 0.0
      %v2395 = vmax.f32 %v2267, 0.0
      %v2396 = vmax.f32 %v2268, 0.0
      %v2397 = vmax.f32 %v2269, 0.0
      %v2398 = vmax.f32 %v2270, 0.0
      %v2399 = vmax.f32 %v2271, 0.0
      %v2400 = vmax.f32 %v2272, 0.0
      %v2401 = vmax.f32 %v2273, 0.0
      %v2402 = vmax.f32 %v2274, 0.0
      %v2403 = vmax.f32 %v2275, 0.0
      %v2404 = vmax.f32 %v2276, 0.0
      %v2405 = vmax.f32 %v2277, 0.0
      %v2406 = vmax.f32 %v2278, 0.0
      %v2407 = vmax.f32 %v2279, 0.0
      %v2408 = vmax.f32 %v2280, 0.0
      %v2409 = vmax.f32 %v2281, 0.0
      %v2410 = vmax.f32 %v2282, 0.0
      %v2411 = vmax.f32 %v2283, 0.0
      %v2412 = vmax.f32 %v2284, 0.0
      %v2413 = vmax.f32 %v2285, 0.0
      %v2414 = vmax.f32 %v2286, 0.0
      %v2415 = vmax.f32 %v2287, 0.0
      %v2416 = vmax.f32 %v2288, 0.0
      %v2417 = vmax.f32 %v2289, 0.0
      %v2418 = vmax.f32 %v2290, 0.0
      %v2419 = vmax.f32 %v2291, 0.0
      %v2420 = vmax.f32 %v2292, 0.0
      %v2421 = vmax.f32 %v2293, 0.0
      %v2422 = vmax.f32 %v2294, 0.0
      %v2423 = vmax.f32 %v2295, 0.0
      %v2424 = vmax.f32 %v2296, 0.0
      %v2425 = vmax.f32 %v2297, 0.0
      %v2426 = vmax.f32 %v2298, 0.0
      %v2427 = vmax.f32 %v2299, 0.0
      %v2428 = vmax.f32 %v2300, 0.0
      %v2429 = vmax.f32 %v2301, 0.0
      %v2430 = vmax.f32 %v2302, 0.0
      %v2431 = vmax.f32 %v2303, 0.0
      %v2432 = vmax.f32 %v2304, 0.0
      %v2433 = vmax.f32 %v2305, 0.0
      %v2434 = vmax.f32 %v2306, 0.0
      %v2435 = vmax.f32 %v2307, 0.0
      %v2436 = vmax.f32 %v2308, 0.0
      %v2437 = vmax.f32 %v2309, 0.0
      %v2438 = vmax.f32 %v2310, 0.0
      %v2439 = vmax.f32 %v2311, 0.0
      %v2440 = vmax.f32 %v2312, 0.0
      %v2441 = vmax.f32 %v2313, 0.0
      %v2442 = vmax.f32 %v2314, 0.0
      %v2443 = vmax.f32 %v2315, 0.0
      %v2444 = vmax.f32 %v2316, 0.0
      %v2445 = vmax.f32 %v2317, 0.0
      %v2446 = vmax.f32 %v2318, 0.0
      %v2447 = vmax.f32 %v2319, 0.0
      %v2448 = vmax.f32 %v2320, 0.0
      %v2449 = vmax.f32 %v2321, 0.0
      %v2450 = vmax.f32 %v2322, 0.0
      %v2451 = vmax.f32 %v2323, 0.0
      %v2452 = vmax.f32 %v2324, 0.0
      %v2453 = vmax.f32 %v2325, 0.0
      %v2454 = vmax.f32 %v2326, 0.0
      %v2455 = vmax.f32 %v2327, 0.0
      %v2456 = vmax.f32 %v2328, 0.0
      %v2457 = vmax.f32 %v2329, 0.0
      %v2458 = vmax.f32 %v2330, 0.0
      %v2459 = vmax.f32 %v2331, 0.0
      %v2460 = vmax.f32 %v2332, 0.0
      %v2461 = vmax.f32 %v2333, 0.0
      %v2462 = vmax.f32 %v2334, 0.0
      %v2463 = vmax.f32 %v2335, 0.0
      %v2464 = vmax.f32 %v2336, 0.0
      %v2465 = vmax.f32 %v2337, 0.0
      %v2466 = vmax.f32 %v2338, 0.0
      %v2467 = vmax.f32 %v2339, 0.0
      %v2468 = vmax.f32 %v2340, 0.0
      %v2469 = vmax.f32 %v2341, 0.0
      %v2470 = vmax.f32 %v2342, 0.0
      %v2471 = vmax.f32 %v2343, 0.0
      %v2472 = vmax.f32 %v2344, 0.0
      %v2473 = vmax.f32 %v2345, 0.0
      %v2474 = vmax.f32 %v2346, 0.0
      %v2475 = vmax.f32 %v2347, 0.0
      %v2476 = vmax.f32 %v2348, 0.0
      %v2477 = vmax.f32 %v2349, 0.0
      %v2478 = vmax.f32 %v2350, 0.0
      %v2479 = vmax.f32 %v2351, 0.0
      %v2480 = vmax.f32 %v2352, 0.0
      %v2481 = vmax.f32 %v2353, 0.0
      %v2482 = vmax.f32 %v2354, 0.0
      %v2483 = vmax.f32 %v2355, 0.0
      %v2484 = vmax.f32 %v2356, 0.0
      %v2485 = vmax.f32 %v2357, 0.0
      %v2486 = vmax.f32 %v2358, 0.0
      %v2487 = vmax.f32 %v2359, 0.0
      %v2488 = vadd.f32 %v2360, %v2361
      %2489 = vadd.xlane.f32.xlu0 %v2488
      %v2490 = vpop.xlane.xlu0 %2489
      %v2491 = vadd.f32 %v2362, %v2363
      %2492 = vadd.xlane.f32.xlu0 %v2491
      %v2493 = vpop.xlane.xlu0 %2492
      %v2494 = vadd.f32 %v2364, %v2365
      %2495 = vadd.xlane.f32.xlu0 %v2494
      %v2496 = vpop.xlane.xlu0 %2495
      %v2497 = vadd.f32 %v2366, %v2367
      %2498 = vadd.xlane.f32.xlu0 %v2497
      %v2499 = vpop.xlane.xlu0 %2498
      %v2500 = vadd.f32 %v2368, %v2369
      %2501 = vadd.xlane.f32.xlu0 %v2500
      %v2502 = vpop.xlane.xlu0 %2501
      %v2503 = vadd.f32 %v2370, %v2371
      %2504 = vadd.xlane.f32.xlu0 %v2503
      %v2505 = vpop.xlane.xlu0 %2504
      %v2506 = vadd.f32 %v2372, %v2373
      %2507 = vadd.xlane.f32.xlu0 %v2506
      %v2508 = vpop.xlane.xlu0 %2507
      %v2509 = vadd.f32 %v2374, %v2375
      %2510 = vadd.xlane.f32.xlu0 %v2509
      %v2511 = vpop.xlane.xlu0 %2510
      %v2512 = vadd.f32 %v2376, %v2377
      %2513 = vadd.xlane.f32.xlu0 %v2512
      %v2514 = vpop.xlane.xlu0 %2513
      %v2515 = vadd.f32 %v2378, %v2379
      %2516 = vadd.xlane.f32.xlu0 %v2515
      %v2517 = vpop.xlane.xlu0 %2516
      %v2518 = vadd.f32 %v2380, %v2381
      %2519 = vadd.xlane.f32.xlu0 %v2518
      %v2520 = vpop.xlane.xlu0 %2519
      %v2521 = vadd.f32 %v2382, %v2383
      %2522 = vadd.xlane.f32.xlu0 %v2521
      %v2523 = vpop.xlane.xlu0 %2522
      %v2524 = vadd.f32 %v2384, %v2385
      %2525 = vadd.xlane.f32.xlu0 %v2524
      %v2526 = vpop.xlane.xlu0 %2525
      %v2527 = vadd.f32 %v2386, %v2387
      %2528 = vadd.xlane.f32.xlu0 %v2527
      %v2529 = vpop.xlane.xlu0 %2528
      %v2530 = vadd.f32 %v2388, %v2389
      %2531 = vadd.xlane.f32.xlu0 %v2530
      %v2532 = vpop.xlane.xlu0 %2531
      %v2533 = vadd.f32 %v2390, %v2391
      %2534 = vadd.xlane.f32.xlu0 %v2533
      %v2535 = vpop.xlane.xlu0 %2534
      %v2536 = vadd.f32 %v2392, %v2393
      %2537 = vadd.xlane.f32.xlu0 %v2536
      %v2538 = vpop.xlane.xlu0 %2537
      %v2539 = vadd.f32 %v2394, %v2395
      %2540 = vadd.xlane.f32.xlu0 %v2539
      %v2541 = vpop.xlane.xlu0 %2540
      %v2542 = vadd.f32 %v2396, %v2397
      %2543 = vadd.xlane.f32.xlu0 %v2542
      %v2544 = vpop.xlane.xlu0 %2543
      %v2545 = vadd.f32 %v2398, %v2399
      %2546 = vadd.xlane.f32.xlu0 %v2545
      %v2547 = vpop.xlane.xlu0 %2546
      %v2548 = vadd.f32 %v2400, %v2401
      %2549 = vadd.xlane.f32.xlu0 %v2548
      %v2550 = vpop.xlane.xlu0 %2549
      %v2551 = vadd.f32 %v2402, %v2403
      %2552 = vadd.xlane.f32.xlu0 %v2551
      %v2553 = vpop.xlane.xlu0 %2552
      %v2554 = vadd.f32 %v2404, %v2405
      %2555 = vadd.xlane.f32.xlu0 %v2554
      %v2556 = vpop.xlane.xlu0 %2555
      %v2557 = vadd.f32 %v2406, %v2407
      %2558 = vadd.xlane.f32.xlu0 %v2557
      %v2559 = vpop.xlane.xlu0 %2558
      %v2560 = vadd.f32 %v2408, %v2409
      %2561 = vadd.xlane.f32.xlu0 %v2560
      %v2562 = vpop.xlane.xlu0 %2561
      %v2563 = vadd.f32 %v2410, %v2411
      %2564 = vadd.xlane.f32.xlu0 %v2563
      %v2565 = vpop.xlane.xlu0 %2564
      %v2566 = vadd.f32 %v2412, %v2413
      %2567 = vadd.xlane.f32.xlu0 %v2566
      %v2568 = vpop.xlane.xlu0 %2567
      %v2569 = vadd.f32 %v2414, %v2415
      %2570 = vadd.xlane.f32.xlu0 %v2569
      %v2571 = vpop.xlane.xlu0 %2570
      %v2572 = vadd.f32 %v2416, %v2417
      %2573 = vadd.xlane.f32.xlu0 %v2572
      %v2574 = vpop.xlane.xlu0 %2573
      %v2575 = vadd.f32 %v2418, %v2419
      %2576 = vadd.xlane.f32.xlu0 %v2575
      %v2577 = vpop.xlane.xlu0 %2576
      %v2578 = vadd.f32 %v2420, %v2421
      %2579 = vadd.xlane.f32.xlu0 %v2578
      %v2580 = vpop.xlane.xlu0 %2579
      %v2581 = vadd.f32 %v2422, %v2423
      %2582 = vadd.xlane.f32.xlu0 %v2581
      %v2583 = vpop.xlane.xlu0 %2582
      %v2584 = vadd.f32 %v2424, %v2425
      %2585 = vadd.xlane.f32.xlu0 %v2584
      %v2586 = vpop.xlane.xlu0 %2585
      %v2587 = vadd.f32 %v2426, %v2427
      %2588 = vadd.xlane.f32.xlu0 %v2587
      %v2589 = vpop.xlane.xlu0 %2588
      %v2590 = vadd.f32 %v2428, %v2429
      %2591 = vadd.xlane.f32.xlu0 %v2590
      %v2592 = vpop.xlane.xlu0 %2591
      %v2593 = vadd.f32 %v2430, %v2431
      %2594 = vadd.xlane.f32.xlu0 %v2593
      %v2595 = vpop.xlane.xlu0 %2594
      %v2596 = vadd.f32 %v2432, %v2433
      %2597 = vadd.xlane.f32.xlu0 %v2596
      %v2598 = vpop.xlane.xlu0 %2597
      %v2599 = vadd.f32 %v2434, %v2435
      %2600 = vadd.xlane.f32.xlu0 %v2599
      %v2601 = vpop.xlane.xlu0 %2600
      %v2602 = vadd.f32 %v2436, %v2437
      %2603 = vadd.xlane.f32.xlu0 %v2602
      %v2604 = vpop.xlane.xlu0 %2603
      %v2605 = vadd.f32 %v2438, %v2439
      %2606 = vadd.xlane.f32.xlu0 %v2605
      %v2607 = vpop.xlane.xlu0 %2606
      %v2608 = vadd.f32 %v2440, %v2441
      %2609 = vadd.xlane.f32.xlu0 %v2608
      %v2610 = vpop.xlane.xlu0 %2609
      %v2611 = vadd.f32 %v2442, %v2443
      %2612 = vadd.xlane.f32.xlu0 %v2611
      %v2613 = vpop.xlane.xlu0 %2612
      %v2614 = vadd.f32 %v2444, %v2445
      %2615 = vadd.xlane.f32.xlu0 %v2614
      %v2616 = vpop.xlane.xlu0 %2615
      %v2617 = vadd.f32 %v2446, %v2447
      %2618 = vadd.xlane.f32.xlu0 %v2617
      %v2619 = vpop.xlane.xlu0 %2618
      %v2620 = vadd.f32 %v2448, %v2449
      %2621 = vadd.xlane.f32.xlu0 %v2620
      %v2622 = vpop.xlane.xlu0 %2621
      %v2623 = vadd.f32 %v2450, %v2451
      %2624 = vadd.xlane.f32.xlu0 %v2623
      %v2625 = vpop.xlane.xlu0 %2624
      %v2626 = vadd.f32 %v2452, %v2453
      %2627 = vadd.xlane.f32.xlu0 %v2626
      %v2628 = vpop.xlane.xlu0 %2627
      %v2629 = vadd.f32 %v2454, %v2455
      %2630 = vadd.xlane.f32.xlu0 %v2629
      %v2631 = vpop.xlane.xlu0 %2630
      %v2632 = vadd.f32 %v2456, %v2457
      %2633 = vadd.xlane.f32.xlu0 %v2632
      %v2634 = vpop.xlane.xlu0 %2633
      %v2635 = vadd.f32 %v2458, %v2459
      %2636 = vadd.xlane.f32.xlu0 %v2635
      %v2637 = vpop.xlane.xlu0 %2636
      %v2638 = vadd.f32 %v2460, %v2461
      %2639 = vadd.xlane.f32.xlu0 %v2638
      %v2640 = vpop.xlane.xlu0 %2639
      %v2641 = vadd.f32 %v2462, %v2463
      %2642 = vadd.xlane.f32.xlu0 %v2641
      %v2643 = vpop.xlane.xlu0 %2642
      %v2644 = vadd.f32 %v2464, %v2465
      %2645 = vadd.xlane.f32.xlu0 %v2644
      %v2646 = vpop.xlane.xlu0 %2645
      %v2647 = vadd.f32 %v2466, %v2467
      %2648 = vadd.xlane.f32.xlu0 %v2647
      %v2649 = vpop.xlane.xlu0 %2648
      %v2650 = vadd.f32 %v2468, %v2469
      %2651 = vadd.xlane.f32.xlu0 %v2650
      %v2652 = vpop.xlane.xlu0 %2651
      %v2653 = vadd.f32 %v2470, %v2471
      %2654 = vadd.xlane.f32.xlu0 %v2653
      %v2655 = vpop.xlane.xlu0 %2654
      %v2656 = vadd.f32 %v2472, %v2473
      %2657 = vadd.xlane.f32.xlu0 %v2656
      %v2658 = vpop.xlane.xlu0 %2657
      %v2659 = vadd.f32 %v2474, %v2475
      %2660 = vadd.xlane.f32.xlu0 %v2659
      %v2661 = vpop.xlane.xlu0 %2660
      %v2662 = vadd.f32 %v2476, %v2477
      %2663 = vadd.xlane.f32.xlu0 %v2662
      %v2664 = vpop.xlane.xlu0 %2663
      %v2665 = vadd.f32 %v2478, %v2479
      %2666 = vadd.xlane.f32.xlu0 %v2665
      %v2667 = vpop.xlane.xlu0 %2666
      %v2668 = vadd.f32 %v2480, %v2481
      %2669 = vadd.xlane.f32.xlu0 %v2668
      %v2670 = vpop.xlane.xlu0 %2669
      %v2671 = vadd.f32 %v2482, %v2483
      %2672 = vadd.xlane.f32.xlu0 %v2671
      %v2673 = vpop.xlane.xlu0 %2672
      %v2674 = vadd.f32 %v2484, %v2485
      %2675 = vadd.xlane.f32.xlu0 %v2674
      %v2676 = vpop.xlane.xlu0 %2675
      %v2677 = vadd.f32 %v2486, %v2487
      %2678 = vadd.xlane.f32.xlu0 %v2677
      %v2679 = vpop.xlane.xlu0 %2678
      %v2680 = vmul.f32 %v2490, 0.00390625
      %v2681 = vmul.f32 %v2493, 0.00390625
      %v2682 = vmul.f32 %v2496, 0.00390625
      %v2683 = vmul.f32 %v2499, 0.00390625
      %v2684 = vmul.f32 %v2502, 0.00390625
      %v2685 = vmul.f32 %v2505, 0.00390625
      %v2686 = vmul.f32 %v2508, 0.00390625
      %v2687 = vmul.f32 %v2511, 0.00390625
      %v2688 = vmul.f32 %v2514, 0.00390625
      %v2689 = vmul.f32 %v2517, 0.00390625
      %v2690 = vmul.f32 %v2520, 0.00390625
      %v2691 = vmul.f32 %v2523, 0.00390625
      %v2692 = vmul.f32 %v2526, 0.00390625
      %v2693 = vmul.f32 %v2529, 0.00390625
      %v2694 = vmul.f32 %v2532, 0.00390625
      %v2695 = vmul.f32 %v2535, 0.00390625
      %v2696 = vmul.f32 %v2538, 0.00390625
      %v2697 = vmul.f32 %v2541, 0.00390625
      %v2698 = vmul.f32 %v2544, 0.00390625
      %v2699 = vmul.f32 %v2547, 0.00390625
      %v2700 = vmul.f32 %v2550, 0.00390625
      %v2701 = vmul.f32 %v2553, 0.00390625
      %v2702 = vmul.f32 %v2556, 0.00390625
      %v2703 = vmul.f32 %v2559, 0.00390625
      %v2704 = vmul.f32 %v2562, 0.00390625
      %v2705 = vmul.f32 %v2565, 0.00390625
      %v2706 = vmul.f32 %v2568, 0.00390625
      %v2707 = vmul.f32 %v2571, 0.00390625
      %v2708 = vmul.f32 %v2574, 0.00390625
      %v2709 = vmul.f32 %v2577, 0.00390625
      %v2710 = vmul.f32 %v2580, 0.00390625
      %v2711 = vmul.f32 %v2583, 0.00390625
      %v2712 = vmul.f32 %v2586, 0.00390625
      %v2713 = vmul.f32 %v2589, 0.00390625
      %v2714 = vmul.f32 %v2592, 0.00390625
      %v2715 = vmul.f32 %v2595, 0.00390625
      %v2716 = vmul.f32 %v2598, 0.00390625
      %v2717 = vmul.f32 %v2601, 0.00390625
      %v2718 = vmul.f32 %v2604, 0.00390625
      %v2719 = vmul.f32 %v2607, 0.00390625
      %v2720 = vmul.f32 %v2610, 0.00390625
      %v2721 = vmul.f32 %v2613, 0.00390625
      %v2722 = vmul.f32 %v2616, 0.00390625
      %v2723 = vmul.f32 %v2619, 0.00390625
      %v2724 = vmul.f32 %v2622, 0.00390625
      %v2725 = vmul.f32 %v2625, 0.00390625
      %v2726 = vmul.f32 %v2628, 0.00390625
      %v2727 = vmul.f32 %v2631, 0.00390625
      %v2728 = vmul.f32 %v2634, 0.00390625
      %v2729 = vmul.f32 %v2637, 0.00390625
      %v2730 = vmul.f32 %v2640, 0.00390625
      %v2731 = vmul.f32 %v2643, 0.00390625
      %v2732 = vmul.f32 %v2646, 0.00390625
      %v2733 = vmul.f32 %v2649, 0.00390625
      %v2734 = vmul.f32 %v2652, 0.00390625
      %v2735 = vmul.f32 %v2655, 0.00390625
      %v2736 = vmul.f32 %v2658, 0.00390625
      %v2737 = vmul.f32 %v2661, 0.00390625
      %v2738 = vmul.f32 %v2664, 0.00390625
      %v2739 = vmul.f32 %v2667, 0.00390625
      %v2740 = vmul.f32 %v2670, 0.00390625
      %v2741 = vmul.f32 %v2673, 0.00390625
      %v2742 = vmul.f32 %v2676, 0.00390625
      %v2743 = vmul.f32 %v2679, 0.00390625
      // Predicated region
      $region37: #{tpu_custom_call.1} parent=31 // pred_check
        %p2744 = pneg %p186
      $region38: #{tpu_custom_call.1} parent=31 // pred_check_branch
        %2746 = sbr.rel (%p2744) target = $region40
      $region39: #{tpu_custom_call.1} parent=31 // pred_region
        %vm2747 = vcmask 7168
        %2748 = vst.msk [vmem:[#allocation2] sm:$0xff] %vm2747, 0.0
        %2749 = vst.msk [vmem:[#allocation2 + $0x8] sm:$0xff] %vm2747, 0.0
        %2750 = vst.msk [vmem:[#allocation2 + $0x10] sm:$0xff] %vm2747, 0.0
        %2751 = vst.msk [vmem:[#allocation2 + $0x18] sm:$0xff] %vm2747, 0.0
        %2752 = vst.msk [vmem:[#allocation2 + $0x20] sm:$0xff] %vm2747, 0.0
        %2753 = vst.msk [vmem:[#allocation2 + $0x28] sm:$0xff] %vm2747, 0.0
        %2754 = vst.msk [vmem:[#allocation2 + $0x30] sm:$0xff] %vm2747, 0.0
        %2755 = vst.msk [vmem:[#allocation2 + $0x38] sm:$0xff] %vm2747, 0.0
        %2756 = vst.msk [vmem:[#allocation2 + $0x40] sm:$0xff] %vm2747, 0.0
        %2757 = vst.msk [vmem:[#allocation2 + $0x48] sm:$0xff] %vm2747, 0.0
        %2758 = vst.msk [vmem:[#allocation2 + $0x50] sm:$0xff] %vm2747, 0.0
        %2759 = vst.msk [vmem:[#allocation2 + $0x58] sm:$0xff] %vm2747, 0.0
        %2760 = vst.msk [vmem:[#allocation2 + $0x60] sm:$0xff] %vm2747, 0.0
        %2761 = vst.msk [vmem:[#allocation2 + $0x68] sm:$0xff] %vm2747, 0.0
        %2762 = vst.msk [vmem:[#allocation2 + $0x70] sm:$0xff] %vm2747, 0.0
        %2763 = vst.msk [vmem:[#allocation2 + $0x78] sm:$0xff] %vm2747, 0.0
        %2764 = vst.msk [vmem:[#allocation2 + $0x80] sm:$0xff] %vm2747, 0.0
        %2765 = vst.msk [vmem:[#allocation2 + $0x88] sm:$0xff] %vm2747, 0.0
        %2766 = vst.msk [vmem:[#allocation2 + $0x90] sm:$0xff] %vm2747, 0.0
        %2767 = vst.msk [vmem:[#allocation2 + $0x98] sm:$0xff] %vm2747, 0.0
        %2768 = vst.msk [vmem:[#allocation2 + $0xa0] sm:$0xff] %vm2747, 0.0
        %2769 = vst.msk [vmem:[#allocation2 + $0xa8] sm:$0xff] %vm2747, 0.0
        %2770 = vst.msk [vmem:[#allocation2 + $0xb0] sm:$0xff] %vm2747, 0.0
        %2771 = vst.msk [vmem:[#allocation2 + $0xb8] sm:$0xff] %vm2747, 0.0
        %2772 = vst.msk [vmem:[#allocation2 + $0xc0] sm:$0xff] %vm2747, 0.0
        %2773 = vst.msk [vmem:[#allocation2 + $0xc8] sm:$0xff] %vm2747, 0.0
        %2774 = vst.msk [vmem:[#allocation2 + $0xd0] sm:$0xff] %vm2747, 0.0
        %2775 = vst.msk [vmem:[#allocation2 + $0xd8] sm:$0xff] %vm2747, 0.0
        %2776 = vst.msk [vmem:[#allocation2 + $0xe0] sm:$0xff] %vm2747, 0.0
        %2777 = vst.msk [vmem:[#allocation2 + $0xe8] sm:$0xff] %vm2747, 0.0
        %2778 = vst.msk [vmem:[#allocation2 + $0xf0] sm:$0xff] %vm2747, 0.0
        %2779 = vst.msk [vmem:[#allocation2 + $0xf8] sm:$0xff] %vm2747, 0.0
        %2780 = vst.msk [vmem:[#allocation2 + $0x100] sm:$0xff] %vm2747, 0.0
        %2781 = vst.msk [vmem:[#allocation2 + $0x108] sm:$0xff] %vm2747, 0.0
        %2782 = vst.msk [vmem:[#allocation2 + $0x110] sm:$0xff] %vm2747, 0.0
        %2783 = vst.msk [vmem:[#allocation2 + $0x118] sm:$0xff] %vm2747, 0.0
        %2784 = vst.msk [vmem:[#allocation2 + $0x120] sm:$0xff] %vm2747, 0.0
        %2785 = vst.msk [vmem:[#allocation2 + $0x128] sm:$0xff] %vm2747, 0.0
        %2786 = vst.msk [vmem:[#allocation2 + $0x130] sm:$0xff] %vm2747, 0.0
        %2787 = vst.msk [vmem:[#allocation2 + $0x138] sm:$0xff] %vm2747, 0.0
        %2788 = vst.msk [vmem:[#allocation2 + $0x140] sm:$0xff] %vm2747, 0.0
        %2789 = vst.msk [vmem:[#allocation2 + $0x148] sm:$0xff] %vm2747, 0.0
        %2790 = vst.msk [vmem:[#allocation2 + $0x150] sm:$0xff] %vm2747, 0.0
        %2791 = vst.msk [vmem:[#allocation2 + $0x158] sm:$0xff] %vm2747, 0.0
        %2792 = vst.msk [vmem:[#allocation2 + $0x160] sm:$0xff] %vm2747, 0.0
        %2793 = vst.msk [vmem:[#allocation2 + $0x168] sm:$0xff] %vm2747, 0.0
        %2794 = vst.msk [vmem:[#allocation2 + $0x170] sm:$0xff] %vm2747, 0.0
        %2795 = vst.msk [vmem:[#allocation2 + $0x178] sm:$0xff] %vm2747, 0.0
        %2796 = vst.msk [vmem:[#allocation2 + $0x180] sm:$0xff] %vm2747, 0.0
        %2797 = vst.msk [vmem:[#allocation2 + $0x188] sm:$0xff] %vm2747, 0.0
        %2798 = vst.msk [vmem:[#allocation2 + $0x190] sm:$0xff] %vm2747, 0.0
        %2799 = vst.msk [vmem:[#allocation2 + $0x198] sm:$0xff] %vm2747, 0.0
        %2800 = vst.msk [vmem:[#allocation2 + $0x1a0] sm:$0xff] %vm2747, 0.0
        %2801 = vst.msk [vmem:[#allocation2 + $0x1a8] sm:$0xff] %vm2747, 0.0
        %2802 = vst.msk [vmem:[#allocation2 + $0x1b0] sm:$0xff] %vm2747, 0.0
        %2803 = vst.msk [vmem:[#allocation2 + $0x1b8] sm:$0xff] %vm2747, 0.0
        %2804 = vst.msk [vmem:[#allocation2 + $0x1c0] sm:$0xff] %vm2747, 0.0
        %2805 = vst.msk [vmem:[#allocation2 + $0x1c8] sm:$0xff] %vm2747, 0.0
        %2806 = vst.msk [vmem:[#allocation2 + $0x1d0] sm:$0xff] %vm2747, 0.0
        %2807 = vst.msk [vmem:[#allocation2 + $0x1d8] sm:$0xff] %vm2747, 0.0
        %2808 = vst.msk [vmem:[#allocation2 + $0x1e0] sm:$0xff] %vm2747, 0.0
        %2809 = vst.msk [vmem:[#allocation2 + $0x1e8] sm:$0xff] %vm2747, 0.0
        %2810 = vst.msk [vmem:[#allocation2 + $0x1f0] sm:$0xff] %vm2747, 0.0
        %2811 = vst.msk [vmem:[#allocation2 + $0x1f8] sm:$0xff] %vm2747, 0.0
      $region40: #{tpu_custom_call.1} parent=31 // pred_fallthru
        _
      %v2812 = vld [vmem:[#allocation2] sm:$0xff]
      %v2813 = vld [vmem:[#allocation2 + $0x8] sm:$0xff]
      %v2814 = vld [vmem:[#allocation2 + $0x10] sm:$0xff]
      %v2815 = vld [vmem:[#allocation2 + $0x18] sm:$0xff]
      %v2816 = vld [vmem:[#allocation2 + $0x20] sm:$0xff]
      %v2817 = vld [vmem:[#allocation2 + $0x28] sm:$0xff]
      %v2818 = vld [vmem:[#allocation2 + $0x30] sm:$0xff]
      %v2819 = vld [vmem:[#allocation2 + $0x38] sm:$0xff]
      %v2820 = vld [vmem:[#allocation2 + $0x40] sm:$0xff]
      %v2821 = vld [vmem:[#allocation2 + $0x48] sm:$0xff]
      %v2822 = vld [vmem:[#allocation2 + $0x50] sm:$0xff]
      %v2823 = vld [vmem:[#allocation2 + $0x58] sm:$0xff]
      %v2824 = vld [vmem:[#allocation2 + $0x60] sm:$0xff]
      %v2825 = vld [vmem:[#allocation2 + $0x68] sm:$0xff]
      %v2826 = vld [vmem:[#allocation2 + $0x70] sm:$0xff]
      %v2827 = vld [vmem:[#allocation2 + $0x78] sm:$0xff]
      %v2828 = vld [vmem:[#allocation2 + $0x80] sm:$0xff]
      %v2829 = vld [vmem:[#allocation2 + $0x88] sm:$0xff]
      %v2830 = vld [vmem:[#allocation2 + $0x90] sm:$0xff]
      %v2831 = vld [vmem:[#allocation2 + $0x98] sm:$0xff]
      %v2832 = vld [vmem:[#allocation2 + $0xa0] sm:$0xff]
      %v2833 = vld [vmem:[#allocation2 + $0xa8] sm:$0xff]
      %v2834 = vld [vmem:[#allocation2 + $0xb0] sm:$0xff]
      %v2835 = vld [vmem:[#allocation2 + $0xb8] sm:$0xff]
      %v2836 = vld [vmem:[#allocation2 + $0xc0] sm:$0xff]
      %v2837 = vld [vmem:[#allocation2 + $0xc8] sm:$0xff]
      %v2838 = vld [vmem:[#allocation2 + $0xd0] sm:$0xff]
      %v2839 = vld [vmem:[#allocation2 + $0xd8] sm:$0xff]
      %v2840 = vld [vmem:[#allocation2 + $0xe0] sm:$0xff]
      %v2841 = vld [vmem:[#allocation2 + $0xe8] sm:$0xff]
      %v2842 = vld [vmem:[#allocation2 + $0xf0] sm:$0xff]
      %v2843 = vld [vmem:[#allocation2 + $0xf8] sm:$0xff]
      %v2844 = vld [vmem:[#allocation2 + $0x100] sm:$0xff]
      %v2845 = vld [vmem:[#allocation2 + $0x108] sm:$0xff]
      %v2846 = vld [vmem:[#allocation2 + $0x110] sm:$0xff]
      %v2847 = vld [vmem:[#allocation2 + $0x118] sm:$0xff]
      %v2848 = vld [vmem:[#allocation2 + $0x120] sm:$0xff]
      %v2849 = vld [vmem:[#allocation2 + $0x128] sm:$0xff]
      %v2850 = vld [vmem:[#allocation2 + $0x130] sm:$0xff]
      %v2851 = vld [vmem:[#allocation2 + $0x138] sm:$0xff]
      %v2852 = vld [vmem:[#allocation2 + $0x140] sm:$0xff]
      %v2853 = vld [vmem:[#allocation2 + $0x148] sm:$0xff]
      %v2854 = vld [vmem:[#allocation2 + $0x150] sm:$0xff]
      %v2855 = vld [vmem:[#allocation2 + $0x158] sm:$0xff]
      %v2856 = vld [vmem:[#allocation2 + $0x160] sm:$0xff]
      %v2857 = vld [vmem:[#allocation2 + $0x168] sm:$0xff]
      %v2858 = vld [vmem:[#allocation2 + $0x170] sm:$0xff]
      %v2859 = vld [vmem:[#allocation2 + $0x178] sm:$0xff]
      %v2860 = vld [vmem:[#allocation2 + $0x180] sm:$0xff]
      %v2861 = vld [vmem:[#allocation2 + $0x188] sm:$0xff]
      %v2862 = vld [vmem:[#allocation2 + $0x190] sm:$0xff]
      %v2863 = vld [vmem:[#allocation2 + $0x198] sm:$0xff]
      %v2864 = vld [vmem:[#allocation2 + $0x1a0] sm:$0xff]
      %v2865 = vld [vmem:[#allocation2 + $0x1a8] sm:$0xff]
      %v2866 = vld [vmem:[#allocation2 + $0x1b0] sm:$0xff]
      %v2867 = vld [vmem:[#allocation2 + $0x1b8] sm:$0xff]
      %v2868 = vld [vmem:[#allocation2 + $0x1c0] sm:$0xff]
      %v2869 = vld [vmem:[#allocation2 + $0x1c8] sm:$0xff]
      %v2870 = vld [vmem:[#allocation2 + $0x1d0] sm:$0xff]
      %v2871 = vld [vmem:[#allocation2 + $0x1d8] sm:$0xff]
      %v2872 = vld [vmem:[#allocation2 + $0x1e0] sm:$0xff]
      %v2873 = vld [vmem:[#allocation2 + $0x1e8] sm:$0xff]
      %v2874 = vld [vmem:[#allocation2 + $0x1f0] sm:$0xff]
      %v2875 = vld [vmem:[#allocation2 + $0x1f8] sm:$0xff]
      %v2876 = vadd.f32 %v2812, %v2680
      %v2877 = vadd.f32 %v2813, %v2681
      %v2878 = vadd.f32 %v2814, %v2682
      %v2879 = vadd.f32 %v2815, %v2683
      %v2880 = vadd.f32 %v2816, %v2684
      %v2881 = vadd.f32 %v2817, %v2685
      %v2882 = vadd.f32 %v2818, %v2686
      %v2883 = vadd.f32 %v2819, %v2687
      %v2884 = vadd.f32 %v2820, %v2688
      %v2885 = vadd.f32 %v2821, %v2689
      %v2886 = vadd.f32 %v2822, %v2690
      %v2887 = vadd.f32 %v2823, %v2691
      %v2888 = vadd.f32 %v2824, %v2692
      %v2889 = vadd.f32 %v2825, %v2693
      %v2890 = vadd.f32 %v2826, %v2694
      %v2891 = vadd.f32 %v2827, %v2695
      %v2892 = vadd.f32 %v2828, %v2696
      %v2893 = vadd.f32 %v2829, %v2697
      %v2894 = vadd.f32 %v2830, %v2698
      %v2895 = vadd.f32 %v2831, %v2699
      %v2896 = vadd.f32 %v2832, %v2700
      %v2897 = vadd.f32 %v2833, %v2701
      %v2898 = vadd.f32 %v2834, %v2702
      %v2899 = vadd.f32 %v2835, %v2703
      %v2900 = vadd.f32 %v2836, %v2704
      %v2901 = vadd.f32 %v2837, %v2705
      %v2902 = vadd.f32 %v2838, %v2706
      %v2903 = vadd.f32 %v2839, %v2707
      %v2904 = vadd.f32 %v2840, %v2708
      %v2905 = vadd.f32 %v2841, %v2709
      %v2906 = vadd.f32 %v2842, %v2710
      %v2907 = vadd.f32 %v2843, %v2711
      %v2908 = vadd.f32 %v2844, %v2712
      %v2909 = vadd.f32 %v2845, %v2713
      %v2910 = vadd.f32 %v2846, %v2714
      %v2911 = vadd.f32 %v2847, %v2715
      %v2912 = vadd.f32 %v2848, %v2716
      %v2913 = vadd.f32 %v2849, %v2717
      %v2914 = vadd.f32 %v2850, %v2718
      %v2915 = vadd.f32 %v2851, %v2719
      %v2916 = vadd.f32 %v2852, %v2720
      %v2917 = vadd.f32 %v2853, %v2721
      %v2918 = vadd.f32 %v2854, %v2722
      %v2919 = vadd.f32 %v2855, %v2723
      %v2920 = vadd.f32 %v2856, %v2724
      %v2921 = vadd.f32 %v2857, %v2725
      %v2922 = vadd.f32 %v2858, %v2726
      %v2923 = vadd.f32 %v2859, %v2727
      %v2924 = vadd.f32 %v2860, %v2728
      %v2925 = vadd.f32 %v2861, %v2729
      %v2926 = vadd.f32 %v2862, %v2730
      %v2927 = vadd.f32 %v2863, %v2731
      %v2928 = vadd.f32 %v2864, %v2732
      %v2929 = vadd.f32 %v2865, %v2733
      %v2930 = vadd.f32 %v2866, %v2734
      %v2931 = vadd.f32 %v2867, %v2735
      %v2932 = vadd.f32 %v2868, %v2736
      %v2933 = vadd.f32 %v2869, %v2737
      %v2934 = vadd.f32 %v2870, %v2738
      %v2935 = vadd.f32 %v2871, %v2739
      %v2936 = vadd.f32 %v2872, %v2740
      %v2937 = vadd.f32 %v2873, %v2741
      %v2938 = vadd.f32 %v2874, %v2742
      %v2939 = vadd.f32 %v2875, %v2743
      %vm2940 = vcmask 7168
      %2941 = vst.msk [vmem:[#allocation2] sm:$0xff] %vm2940, %v2876
      %2942 = vst.msk [vmem:[#allocation2 + $0x8] sm:$0xff] %vm2940, %v2877
      %2943 = vst.msk [vmem:[#allocation2 + $0x10] sm:$0xff] %vm2940, %v2878
      %2944 = vst.msk [vmem:[#allocation2 + $0x18] sm:$0xff] %vm2940, %v2879
      %2945 = vst.msk [vmem:[#allocation2 + $0x20] sm:$0xff] %vm2940, %v2880
      %2946 = vst.msk [vmem:[#allocation2 + $0x28] sm:$0xff] %vm2940, %v2881
      %2947 = vst.msk [vmem:[#allocation2 + $0x30] sm:$0xff] %vm2940, %v2882
      %2948 = vst.msk [vmem:[#allocation2 + $0x38] sm:$0xff] %vm2940, %v2883
      %2949 = vst.msk [vmem:[#allocation2 + $0x40] sm:$0xff] %vm2940, %v2884
      %2950 = vst.msk [vmem:[#allocation2 + $0x48] sm:$0xff] %vm2940, %v2885
      %2951 = vst.msk [vmem:[#allocation2 + $0x50] sm:$0xff] %vm2940, %v2886
      %2952 = vst.msk [vmem:[#allocation2 + $0x58] sm:$0xff] %vm2940, %v2887
      %2953 = vst.msk [vmem:[#allocation2 + $0x60] sm:$0xff] %vm2940, %v2888
      %2954 = vst.msk [vmem:[#allocation2 + $0x68] sm:$0xff] %vm2940, %v2889
      %2955 = vst.msk [vmem:[#allocation2 + $0x70] sm:$0xff] %vm2940, %v2890
      %2956 = vst.msk [vmem:[#allocation2 + $0x78] sm:$0xff] %vm2940, %v2891
      %2957 = vst.msk [vmem:[#allocation2 + $0x80] sm:$0xff] %vm2940, %v2892
      %2958 = vst.msk [vmem:[#allocation2 + $0x88] sm:$0xff] %vm2940, %v2893
      %2959 = vst.msk [vmem:[#allocation2 + $0x90] sm:$0xff] %vm2940, %v2894
      %2960 = vst.msk [vmem:[#allocation2 + $0x98] sm:$0xff] %vm2940, %v2895
      %2961 = vst.msk [vmem:[#allocation2 + $0xa0] sm:$0xff] %vm2940, %v2896
      %2962 = vst.msk [vmem:[#allocation2 + $0xa8] sm:$0xff] %vm2940, %v2897
      %2963 = vst.msk [vmem:[#allocation2 + $0xb0] sm:$0xff] %vm2940, %v2898
      %2964 = vst.msk [vmem:[#allocation2 + $0xb8] sm:$0xff] %vm2940, %v2899
      %2965 = vst.msk [vmem:[#allocation2 + $0xc0] sm:$0xff] %vm2940, %v2900
      %2966 = vst.msk [vmem:[#allocation2 + $0xc8] sm:$0xff] %vm2940, %v2901
      %2967 = vst.msk [vmem:[#allocation2 + $0xd0] sm:$0xff] %vm2940, %v2902
      %2968 = vst.msk [vmem:[#allocation2 + $0xd8] sm:$0xff] %vm2940, %v2903
      %2969 = vst.msk [vmem:[#allocation2 + $0xe0] sm:$0xff] %vm2940, %v2904
      %2970 = vst.msk [vmem:[#allocation2 + $0xe8] sm:$0xff] %vm2940, %v2905
      %2971 = vst.msk [vmem:[#allocation2 + $0xf0] sm:$0xff] %vm2940, %v2906
      %2972 = vst.msk [vmem:[#allocation2 + $0xf8] sm:$0xff] %vm2940, %v2907
      %2973 = vst.msk [vmem:[#allocation2 + $0x100] sm:$0xff] %vm2940, %v2908
      %2974 = vst.msk [vmem:[#allocation2 + $0x108] sm:$0xff] %vm2940, %v2909
      %2975 = vst.msk [vmem:[#allocation2 + $0x110] sm:$0xff] %vm2940, %v2910
      %2976 = vst.msk [vmem:[#allocation2 + $0x118] sm:$0xff] %vm2940, %v2911
      %2977 = vst.msk [vmem:[#allocation2 + $0x120] sm:$0xff] %vm2940, %v2912
      %2978 = vst.msk [vmem:[#allocation2 + $0x128] sm:$0xff] %vm2940, %v2913
      %2979 = vst.msk [vmem:[#allocation2 + $0x130] sm:$0xff] %vm2940, %v2914
      %2980 = vst.msk [vmem:[#allocation2 + $0x138] sm:$0xff] %vm2940, %v2915
      %2981 = vst.msk [vmem:[#allocation2 + $0x140] sm:$0xff] %vm2940, %v2916
      %2982 = vst.msk [vmem:[#allocation2 + $0x148] sm:$0xff] %vm2940, %v2917
      %2983 = vst.msk [vmem:[#allocation2 + $0x150] sm:$0xff] %vm2940, %v2918
      %2984 = vst.msk [vmem:[#allocation2 + $0x158] sm:$0xff] %vm2940, %v2919
      %2985 = vst.msk [vmem:[#allocation2 + $0x160] sm:$0xff] %vm2940, %v2920
      %2986 = vst.msk [vmem:[#allocation2 + $0x168] sm:$0xff] %vm2940, %v2921
      %2987 = vst.msk [vmem:[#allocation2 + $0x170] sm:$0xff] %vm2940, %v2922
      %2988 = vst.msk [vmem:[#allocation2 + $0x178] sm:$0xff] %vm2940, %v2923
      %2989 = vst.msk [vmem:[#allocation2 + $0x180] sm:$0xff] %vm2940, %v2924
      %2990 = vst.msk [vmem:[#allocation2 + $0x188] sm:$0xff] %vm2940, %v2925
      %2991 = vst.msk [vmem:[#allocation2 + $0x190] sm:$0xff] %vm2940, %v2926
      %2992 = vst.msk [vmem:[#allocation2 + $0x198] sm:$0xff] %vm2940, %v2927
      %2993 = vst.msk [vmem:[#allocation2 + $0x1a0] sm:$0xff] %vm2940, %v2928
      %2994 = vst.msk [vmem:[#allocation2 + $0x1a8] sm:$0xff] %vm2940, %v2929
      %2995 = vst.msk [vmem:[#allocation2 + $0x1b0] sm:$0xff] %vm2940, %v2930
      %2996 = vst.msk [vmem:[#allocation2 + $0x1b8] sm:$0xff] %vm2940, %v2931
      %2997 = vst.msk [vmem:[#allocation2 + $0x1c0] sm:$0xff] %vm2940, %v2932
      %2998 = vst.msk [vmem:[#allocation2 + $0x1c8] sm:$0xff] %vm2940, %v2933
      %2999 = vst.msk [vmem:[#allocation2 + $0x1d0] sm:$0xff] %vm2940, %v2934
      %3000 = vst.msk [vmem:[#allocation2 + $0x1d8] sm:$0xff] %vm2940, %v2935
      %3001 = vst.msk [vmem:[#allocation2 + $0x1e0] sm:$0xff] %vm2940, %v2936
      %3002 = vst.msk [vmem:[#allocation2 + $0x1e8] sm:$0xff] %vm2940, %v2937
      %3003 = vst.msk [vmem:[#allocation2 + $0x1f0] sm:$0xff] %vm2940, %v2938
      %3004 = vst.msk [vmem:[#allocation2 + $0x1f8] sm:$0xff] %vm2940, %v2939
      // Predicated region
      $region41: #{tpu_custom_call.1} parent=31 // pred_check
        %p3005 = pneg %p186
      $region42: #{tpu_custom_call.1} parent=31 // pred_check_branch
        %3007 = sbr.rel (%p3005) target = $region44
      $region43: #{tpu_custom_call.1} parent=31 // pred_region
        %v3008 = vlaneseq
        %v3009 = vand.u32 %v3008, 127
        %v3010 = vstv %s18
        %vm3011 = vcmp.eq.s32.totalorder %v3009, %v3010
        %v3012 = vld [vmem:[#allocation2] sm:$0xff]
        %v3013 = vld [vmem:[#allocation2 + $0x8] sm:$0xff]
        %v3014 = vld [vmem:[#allocation2 + $0x10] sm:$0xff]
        %v3015 = vld [vmem:[#allocation2 + $0x18] sm:$0xff]
        %v3016 = vld [vmem:[#allocation2 + $0x20] sm:$0xff]
        %v3017 = vld [vmem:[#allocation2 + $0x28] sm:$0xff]
        %v3018 = vld [vmem:[#allocation2 + $0x30] sm:$0xff]
        %v3019 = vld [vmem:[#allocation2 + $0x38] sm:$0xff]
        %v3020 = vld [vmem:[#allocation2 + $0x40] sm:$0xff]
        %v3021 = vld [vmem:[#allocation2 + $0x48] sm:$0xff]
        %v3022 = vld [vmem:[#allocation2 + $0x50] sm:$0xff]
        %v3023 = vld [vmem:[#allocation2 + $0x58] sm:$0xff]
        %v3024 = vld [vmem:[#allocation2 + $0x60] sm:$0xff]
        %v3025 = vld [vmem:[#allocation2 + $0x68] sm:$0xff]
        %v3026 = vld [vmem:[#allocation2 + $0x70] sm:$0xff]
        %v3027 = vld [vmem:[#allocation2 + $0x78] sm:$0xff]
        %v3028 = vld [vmem:[#allocation2 + $0x80] sm:$0xff]
        %v3029 = vld [vmem:[#allocation2 + $0x88] sm:$0xff]
        %v3030 = vld [vmem:[#allocation2 + $0x90] sm:$0xff]
        %v3031 = vld [vmem:[#allocation2 + $0x98] sm:$0xff]
        %v3032 = vld [vmem:[#allocation2 + $0xa0] sm:$0xff]
        %v3033 = vld [vmem:[#allocation2 + $0xa8] sm:$0xff]
        %v3034 = vld [vmem:[#allocation2 + $0xb0] sm:$0xff]
        %v3035 = vld [vmem:[#allocation2 + $0xb8] sm:$0xff]
        %v3036 = vld [vmem:[#allocation2 + $0xc0] sm:$0xff]
        %v3037 = vld [vmem:[#allocation2 + $0xc8] sm:$0xff]
        %v3038 = vld [vmem:[#allocation2 + $0xd0] sm:$0xff]
        %v3039 = vld [vmem:[#allocation2 + $0xd8] sm:$0xff]
        %v3040 = vld [vmem:[#allocation2 + $0xe0] sm:$0xff]
        %v3041 = vld [vmem:[#allocation2 + $0xe8] sm:$0xff]
        %v3042 = vld [vmem:[#allocation2 + $0xf0] sm:$0xff]
        %v3043 = vld [vmem:[#allocation2 + $0xf8] sm:$0xff]
        %v3044 = vld [vmem:[#allocation2 + $0x100] sm:$0xff]
        %v3045 = vld [vmem:[#allocation2 + $0x108] sm:$0xff]
        %v3046 = vld [vmem:[#allocation2 + $0x110] sm:$0xff]
        %v3047 = vld [vmem:[#allocation2 + $0x118] sm:$0xff]
        %v3048 = vld [vmem:[#allocation2 + $0x120] sm:$0xff]
        %v3049 = vld [vmem:[#allocation2 + $0x128] sm:$0xff]
        %v3050 = vld [vmem:[#allocation2 + $0x130] sm:$0xff]
        %v3051 = vld [vmem:[#allocation2 + $0x138] sm:$0xff]
        %v3052 = vld [vmem:[#allocation2 + $0x140] sm:$0xff]
        %v3053 = vld [vmem:[#allocation2 + $0x148] sm:$0xff]
        %v3054 = vld [vmem:[#allocation2 + $0x150] sm:$0xff]
        %v3055 = vld [vmem:[#allocation2 + $0x158] sm:$0xff]
        %v3056 = vld [vmem:[#allocation2 + $0x160] sm:$0xff]
        %v3057 = vld [vmem:[#allocation2 + $0x168] sm:$0xff]
        %v3058 = vld [vmem:[#allocation2 + $0x170] sm:$0xff]
        %v3059 = vld [vmem:[#allocation2 + $0x178] sm:$0xff]
        %v3060 = vld [vmem:[#allocation2 + $0x180] sm:$0xff]
        %v3061 = vld [vmem:[#allocation2 + $0x188] sm:$0xff]
        %v3062 = vld [vmem:[#allocation2 + $0x190] sm:$0xff]
        %v3063 = vld [vmem:[#allocation2 + $0x198] sm:$0xff]
        %v3064 = vld [vmem:[#allocation2 + $0x1a0] sm:$0xff]
        %v3065 = vld [vmem:[#allocation2 + $0x1a8] sm:$0xff]
        %v3066 = vld [vmem:[#allocation2 + $0x1b0] sm:$0xff]
        %v3067 = vld [vmem:[#allocation2 + $0x1b8] sm:$0xff]
        %v3068 = vld [vmem:[#allocation2 + $0x1c0] sm:$0xff]
        %v3069 = vld [vmem:[#allocation2 + $0x1c8] sm:$0xff]
        %v3070 = vld [vmem:[#allocation2 + $0x1d0] sm:$0xff]
        %v3071 = vld [vmem:[#allocation2 + $0x1d8] sm:$0xff]
        %v3072 = vld [vmem:[#allocation2 + $0x1e0] sm:$0xff]
        %v3073 = vld [vmem:[#allocation2 + $0x1e8] sm:$0xff]
        %v3074 = vld [vmem:[#allocation2 + $0x1f0] sm:$0xff]
        %v3075 = vld [vmem:[#allocation2 + $0x1f8] sm:$0xff]
        %v3076 = vld [vmem:[%s3] sm:$0xf]
        %v3077 = vld [vmem:[%s3 + $0x4] sm:$0xf]
        %v3078 = vld [vmem:[%s3 + $0x8] sm:$0xf]
        %v3079 = vld [vmem:[%s3 + $0xc] sm:$0xf]
        %v3080 = vld [vmem:[%s3 + $0x10] sm:$0xf]
        %v3081 = vld [vmem:[%s3 + $0x14] sm:$0xf]
        %v3082 = vld [vmem:[%s3 + $0x18] sm:$0xf]
        %v3083 = vld [vmem:[%s3 + $0x1c] sm:$0xf]
        %v3084 = vld [vmem:[%s3 + $0x20] sm:$0xf]
        %v3085 = vld [vmem:[%s3 + $0x24] sm:$0xf]
        %v3086 = vld [vmem:[%s3 + $0x28] sm:$0xf]
        %v3087 = vld [vmem:[%s3 + $0x2c] sm:$0xf]
        %v3088 = vld [vmem:[%s3 + $0x30] sm:$0xf]
        %v3089 = vld [vmem:[%s3 + $0x34] sm:$0xf]
        %v3090 = vld [vmem:[%s3 + $0x38] sm:$0xf]
        %v3091 = vld [vmem:[%s3 + $0x3c] sm:$0xf]
        %v3092 = vld [vmem:[%s3 + $0x40] sm:$0xf]
        %v3093 = vld [vmem:[%s3 + $0x44] sm:$0xf]
        %v3094 = vld [vmem:[%s3 + $0x48] sm:$0xf]
        %v3095 = vld [vmem:[%s3 + $0x4c] sm:$0xf]
        %v3096 = vld [vmem:[%s3 + $0x50] sm:$0xf]
        %v3097 = vld [vmem:[%s3 + $0x54] sm:$0xf]
        %v3098 = vld [vmem:[%s3 + $0x58] sm:$0xf]
        %v3099 = vld [vmem:[%s3 + $0x5c] sm:$0xf]
        %v3100 = vld [vmem:[%s3 + $0x60] sm:$0xf]
        %v3101 = vld [vmem:[%s3 + $0x64] sm:$0xf]
        %v3102 = vld [vmem:[%s3 + $0x68] sm:$0xf]
        %v3103 = vld [vmem:[%s3 + $0x6c] sm:$0xf]
        %v3104 = vld [vmem:[%s3 + $0x70] sm:$0xf]
        %v3105 = vld [vmem:[%s3 + $0x74] sm:$0xf]
        %v3106 = vld [vmem:[%s3 + $0x78] sm:$0xf]
        %v3107 = vld [vmem:[%s3 + $0x7c] sm:$0xf]
        %v3108 = vld [vmem:[%s3 + $0x80] sm:$0xf]
        %v3109 = vld [vmem:[%s3 + $0x84] sm:$0xf]
        %v3110 = vld [vmem:[%s3 + $0x88] sm:$0xf]
        %v3111 = vld [vmem:[%s3 + $0x8c] sm:$0xf]
        %v3112 = vld [vmem:[%s3 + $0x90] sm:$0xf]
        %v3113 = vld [vmem:[%s3 + $0x94] sm:$0xf]
        %v3114 = vld [vmem:[%s3 + $0x98] sm:$0xf]
        %v3115 = vld [vmem:[%s3 + $0x9c] sm:$0xf]
        %v3116 = vld [vmem:[%s3 + $0xa0] sm:$0xf]
        %v3117 = vld [vmem:[%s3 + $0xa4] sm:$0xf]
        %v3118 = vld [vmem:[%s3 + $0xa8] sm:$0xf]
        %v3119 = vld [vmem:[%s3 + $0xac] sm:$0xf]
        %v3120 = vld [vmem:[%s3 + $0xb0] sm:$0xf]
        %v3121 = vld [vmem:[%s3 + $0xb4] sm:$0xf]
        %v3122 = vld [vmem:[%s3 + $0xb8] sm:$0xf]
        %v3123 = vld [vmem:[%s3 + $0xbc] sm:$0xf]
        %v3124 = vld [vmem:[%s3 + $0xc0] sm:$0xf]
        %v3125 = vld [vmem:[%s3 + $0xc4] sm:$0xf]
        %v3126 = vld [vmem:[%s3 + $0xc8] sm:$0xf]
        %v3127 = vld [vmem:[%s3 + $0xcc] sm:$0xf]
        %v3128 = vld [vmem:[%s3 + $0xd0] sm:$0xf]
        %v3129 = vld [vmem:[%s3 + $0xd4] sm:$0xf]
        %v3130 = vld [vmem:[%s3 + $0xd8] sm:$0xf]
        %v3131 = vld [vmem:[%s3 + $0xdc] sm:$0xf]
        %v3132 = vld [vmem:[%s3 + $0xe0] sm:$0xf]
        %v3133 = vld [vmem:[%s3 + $0xe4] sm:$0xf]
        %v3134 = vld [vmem:[%s3 + $0xe8] sm:$0xf]
        %v3135 = vld [vmem:[%s3 + $0xec] sm:$0xf]
        %v3136 = vld [vmem:[%s3 + $0xf0] sm:$0xf]
        %v3137 = vld [vmem:[%s3 + $0xf4] sm:$0xf]
        %v3138 = vld [vmem:[%s3 + $0xf8] sm:$0xf]
        %v3139 = vld [vmem:[%s3 + $0xfc] sm:$0xf]
        %v3140 = vunpack.c.l.bf16 %v3076
        %v3141 = vunpack.c.l.bf16 %v3077
        %v3142 = vunpack.c.l.bf16 %v3078
        %v3143 = vunpack.c.l.bf16 %v3079
        %v3144 = vunpack.c.l.bf16 %v3080
        %v3145 = vunpack.c.l.bf16 %v3081
        %v3146 = vunpack.c.l.bf16 %v3082
        %v3147 = vunpack.c.l.bf16 %v3083
        %v3148 = vunpack.c.l.bf16 %v3084
        %v3149 = vunpack.c.l.bf16 %v3085
        %v3150 = vunpack.c.l.bf16 %v3086
        %v3151 = vunpack.c.l.bf16 %v3087
        %v3152 = vunpack.c.l.bf16 %v3088
        %v3153 = vunpack.c.l.bf16 %v3089
        %v3154 = vunpack.c.l.bf16 %v3090
        %v3155 = vunpack.c.l.bf16 %v3091
        %v3156 = vunpack.c.l.bf16 %v3092
        %v3157 = vunpack.c.l.bf16 %v3093
        %v3158 = vunpack.c.l.bf16 %v3094
        %v3159 = vunpack.c.l.bf16 %v3095
        %v3160 = vunpack.c.l.bf16 %v3096
        %v3161 = vunpack.c.l.bf16 %v3097
        %v3162 = vunpack.c.l.bf16 %v3098
        %v3163 = vunpack.c.l.bf16 %v3099
        %v3164 = vunpack.c.l.bf16 %v3100
        %v3165 = vunpack.c.l.bf16 %v3101
        %v3166 = vunpack.c.l.bf16 %v3102
        %v3167 = vunpack.c.l.bf16 %v3103
        %v3168 = vunpack.c.l.bf16 %v3104
        %v3169 = vunpack.c.l.bf16 %v3105
        %v3170 = vunpack.c.l.bf16 %v3106
        %v3171 = vunpack.c.l.bf16 %v3107
        %v3172 = vunpack.c.l.bf16 %v3108
        %v3173 = vunpack.c.l.bf16 %v3109
        %v3174 = vunpack.c.l.bf16 %v3110
        %v3175 = vunpack.c.l.bf16 %v3111
        %v3176 = vunpack.c.l.bf16 %v3112
        %v3177 = vunpack.c.l.bf16 %v3113
        %v3178 = vunpack.c.l.bf16 %v3114
        %v3179 = vunpack.c.l.bf16 %v3115
        %v3180 = vunpack.c.l.bf16 %v3116
        %v3181 = vunpack.c.l.bf16 %v3117
        %v3182 = vunpack.c.l.bf16 %v3118
        %v3183 = vunpack.c.l.bf16 %v3119
        %v3184 = vunpack.c.l.bf16 %v3120
        %v3185 = vunpack.c.l.bf16 %v3121
        %v3186 = vunpack.c.l.bf16 %v3122
        %v3187 = vunpack.c.l.bf16 %v3123
        %v3188 = vunpack.c.l.bf16 %v3124
        %v3189 = vunpack.c.l.bf16 %v3125
        %v3190 = vunpack.c.l.bf16 %v3126
        %v3191 = vunpack.c.l.bf16 %v3127
        %v3192 = vunpack.c.l.bf16 %v3128
        %v3193 = vunpack.c.l.bf16 %v3129
        %v3194 = vunpack.c.l.bf16 %v3130
        %v3195 = vunpack.c.l.bf16 %v3131
        %v3196 = vunpack.c.l.bf16 %v3132
        %v3197 = vunpack.c.l.bf16 %v3133
        %v3198 = vunpack.c.l.bf16 %v3134
        %v3199 = vunpack.c.l.bf16 %v3135
        %v3200 = vunpack.c.l.bf16 %v3136
        %v3201 = vunpack.c.l.bf16 %v3137
        %v3202 = vunpack.c.l.bf16 %v3138
        %v3203 = vunpack.c.l.bf16 %v3139
        %3205 = vset.pattern.permute.xlu0 0
        %3206 = vperm.xlu0 %3205, %v3012
        %v3207 = vpop.permute.xlu0 %3206
        %3210 = vset.pattern.permute.xlu0 0
        %3211 = vperm.xlu0 %3210, %v3013
        %v3212 = vpop.permute.xlu0 %3211
        %3215 = vset.pattern.permute.xlu0 0
        %3216 = vperm.xlu0 %3215, %v3014
        %v3217 = vpop.permute.xlu0 %3216
        %3220 = vset.pattern.permute.xlu0 0
        %3221 = vperm.xlu0 %3220, %v3015
        %v3222 = vpop.permute.xlu0 %3221
        %3225 = vset.pattern.permute.xlu0 0
        %3226 = vperm.xlu0 %3225, %v3016
        %v3227 = vpop.permute.xlu0 %3226
        %3230 = vset.pattern.permute.xlu0 0
        %3231 = vperm.xlu0 %3230, %v3017
        %v3232 = vpop.permute.xlu0 %3231
        %3235 = vset.pattern.permute.xlu0 0
        %3236 = vperm.xlu0 %3235, %v3018
        %v3237 = vpop.permute.xlu0 %3236
        %3240 = vset.pattern.permute.xlu0 0
        %3241 = vperm.xlu0 %3240, %v3019
        %v3242 = vpop.permute.xlu0 %3241
        %3245 = vset.pattern.permute.xlu0 0
        %3246 = vperm.xlu0 %3245, %v3020
        %v3247 = vpop.permute.xlu0 %3246
        %3250 = vset.pattern.permute.xlu0 0
        %3251 = vperm.xlu0 %3250, %v3021
        %v3252 = vpop.permute.xlu0 %3251
        %3255 = vset.pattern.permute.xlu0 0
        %3256 = vperm.xlu0 %3255, %v3022
        %v3257 = vpop.permute.xlu0 %3256
        %3260 = vset.pattern.permute.xlu0 0
        %3261 = vperm.xlu0 %3260, %v3023
        %v3262 = vpop.permute.xlu0 %3261
        %3265 = vset.pattern.permute.xlu0 0
        %3266 = vperm.xlu0 %3265, %v3024
        %v3267 = vpop.permute.xlu0 %3266
        %3270 = vset.pattern.permute.xlu0 0
        %3271 = vperm.xlu0 %3270, %v3025
        %v3272 = vpop.permute.xlu0 %3271
        %3275 = vset.pattern.permute.xlu0 0
        %3276 = vperm.xlu0 %3275, %v3026
        %v3277 = vpop.permute.xlu0 %3276
        %3280 = vset.pattern.permute.xlu0 0
        %3281 = vperm.xlu0 %3280, %v3027
        %v3282 = vpop.permute.xlu0 %3281
        %3285 = vset.pattern.permute.xlu0 0
        %3286 = vperm.xlu0 %3285, %v3028
        %v3287 = vpop.permute.xlu0 %3286
        %3290 = vset.pattern.permute.xlu0 0
        %3291 = vperm.xlu0 %3290, %v3029
        %v3292 = vpop.permute.xlu0 %3291
        %3295 = vset.pattern.permute.xlu0 0
        %3296 = vperm.xlu0 %3295, %v3030
        %v3297 = vpop.permute.xlu0 %3296
        %3300 = vset.pattern.permute.xlu0 0
        %3301 = vperm.xlu0 %3300, %v3031
        %v3302 = vpop.permute.xlu0 %3301
        %3305 = vset.pattern.permute.xlu0 0
        %3306 = vperm.xlu0 %3305, %v3032
        %v3307 = vpop.permute.xlu0 %3306
        %3310 = vset.pattern.permute.xlu0 0
        %3311 = vperm.xlu0 %3310, %v3033
        %v3312 = vpop.permute.xlu0 %3311
        %3315 = vset.pattern.permute.xlu0 0
        %3316 = vperm.xlu0 %3315, %v3034
        %v3317 = vpop.permute.xlu0 %3316
        %3320 = vset.pattern.permute.xlu0 0
        %3321 = vperm.xlu0 %3320, %v3035
        %v3322 = vpop.permute.xlu0 %3321
        %3325 = vset.pattern.permute.xlu0 0
        %3326 = vperm.xlu0 %3325, %v3036
        %v3327 = vpop.permute.xlu0 %3326
        %3330 = vset.pattern.permute.xlu0 0
        %3331 = vperm.xlu0 %3330, %v3037
        %v3332 = vpop.permute.xlu0 %3331
        %3335 = vset.pattern.permute.xlu0 0
        %3336 = vperm.xlu0 %3335, %v3038
        %v3337 = vpop.permute.xlu0 %3336
        %3340 = vset.pattern.permute.xlu0 0
        %3341 = vperm.xlu0 %3340, %v3039
        %v3342 = vpop.permute.xlu0 %3341
        %3345 = vset.pattern.permute.xlu0 0
        %3346 = vperm.xlu0 %3345, %v3040
        %v3347 = vpop.permute.xlu0 %3346
        %3350 = vset.pattern.permute.xlu0 0
        %3351 = vperm.xlu0 %3350, %v3041
        %v3352 = vpop.permute.xlu0 %3351
        %3355 = vset.pattern.permute.xlu0 0
        %3356 = vperm.xlu0 %3355, %v3042
        %v3357 = vpop.permute.xlu0 %3356
        %3360 = vset.pattern.permute.xlu0 0
        %3361 = vperm.xlu0 %3360, %v3043
        %v3362 = vpop.permute.xlu0 %3361
        %3365 = vset.pattern.permute.xlu0 0
        %3366 = vperm.xlu0 %3365, %v3044
        %v3367 = vpop.permute.xlu0 %3366
        %3370 = vset.pattern.permute.xlu0 0
        %3371 = vperm.xlu0 %3370, %v3045
        %v3372 = vpop.permute.xlu0 %3371
        %3375 = vset.pattern.permute.xlu0 0
        %3376 = vperm.xlu0 %3375, %v3046
        %v3377 = vpop.permute.xlu0 %3376
        %3380 = vset.pattern.permute.xlu0 0
        %3381 = vperm.xlu0 %3380, %v3047
        %v3382 = vpop.permute.xlu0 %3381
        %3385 = vset.pattern.permute.xlu0 0
        %3386 = vperm.xlu0 %3385, %v3048
        %v3387 = vpop.permute.xlu0 %3386
        %3390 = vset.pattern.permute.xlu0 0
        %3391 = vperm.xlu0 %3390, %v3049
        %v3392 = vpop.permute.xlu0 %3391
        %3395 = vset.pattern.permute.xlu0 0
        %3396 = vperm.xlu0 %3395, %v3050
        %v3397 = vpop.permute.xlu0 %3396
        %3400 = vset.pattern.permute.xlu0 0
        %3401 = vperm.xlu0 %3400, %v3051
        %v3402 = vpop.permute.xlu0 %3401
        %3405 = vset.pattern.permute.xlu0 0
        %3406 = vperm.xlu0 %3405, %v3052
        %v3407 = vpop.permute.xlu0 %3406
        %3410 = vset.pattern.permute.xlu0 0
        %3411 = vperm.xlu0 %3410, %v3053
        %v3412 = vpop.permute.xlu0 %3411
        %3415 = vset.pattern.permute.xlu0 0
        %3416 = vperm.xlu0 %3415, %v3054
        %v3417 = vpop.permute.xlu0 %3416
        %3420 = vset.pattern.permute.xlu0 0
        %3421 = vperm.xlu0 %3420, %v3055
        %v3422 = vpop.permute.xlu0 %3421
        %3425 = vset.pattern.permute.xlu0 0
        %3426 = vperm.xlu0 %3425, %v3056
        %v3427 = vpop.permute.xlu0 %3426
        %3430 = vset.pattern.permute.xlu0 0
        %3431 = vperm.xlu0 %3430, %v3057
        %v3432 = vpop.permute.xlu0 %3431
        %3435 = vset.pattern.permute.xlu0 0
        %3436 = vperm.xlu0 %3435, %v3058
        %v3437 = vpop.permute.xlu0 %3436
        %3440 = vset.pattern.permute.xlu0 0
        %3441 = vperm.xlu0 %3440, %v3059
        %v3442 = vpop.permute.xlu0 %3441
        %3445 = vset.pattern.permute.xlu0 0
        %3446 = vperm.xlu0 %3445, %v3060
        %v3447 = vpop.permute.xlu0 %3446
        %3450 = vset.pattern.permute.xlu0 0
        %3451 = vperm.xlu0 %3450, %v3061
        %v3452 = vpop.permute.xlu0 %3451
        %3455 = vset.pattern.permute.xlu0 0
        %3456 = vperm.xlu0 %3455, %v3062
        %v3457 = vpop.permute.xlu0 %3456
        %3460 = vset.pattern.permute.xlu0 0
        %3461 = vperm.xlu0 %3460, %v3063
        %v3462 = vpop.permute.xlu0 %3461
        %3465 = vset.pattern.permute.xlu0 0
        %3466 = vperm.xlu0 %3465, %v3064
        %v3467 = vpop.permute.xlu0 %3466
        %3470 = vset.pattern.permute.xlu0 0
        %3471 = vperm.xlu0 %3470, %v3065
        %v3472 = vpop.permute.xlu0 %3471
        %3475 = vset.pattern.permute.xlu0 0
        %3476 = vperm.xlu0 %3475, %v3066
        %v3477 = vpop.permute.xlu0 %3476
        %3480 = vset.pattern.permute.xlu0 0
        %3481 = vperm.xlu0 %3480, %v3067
        %v3482 = vpop.permute.xlu0 %3481
        %3485 = vset.pattern.permute.xlu0 0
        %3486 = vperm.xlu0 %3485, %v3068
        %v3487 = vpop.permute.xlu0 %3486
        %3490 = vset.pattern.permute.xlu0 0
        %3491 = vperm.xlu0 %3490, %v3069
        %v3492 = vpop.permute.xlu0 %3491
        %3495 = vset.pattern.permute.xlu0 0
        %3496 = vperm.xlu0 %3495, %v3070
        %v3497 = vpop.permute.xlu0 %3496
        %3500 = vset.pattern.permute.xlu0 0
        %3501 = vperm.xlu0 %3500, %v3071
        %v3502 = vpop.permute.xlu0 %3501
        %3505 = vset.pattern.permute.xlu0 0
        %3506 = vperm.xlu0 %3505, %v3072
        %v3507 = vpop.permute.xlu0 %3506
        %3510 = vset.pattern.permute.xlu0 0
        %3511 = vperm.xlu0 %3510, %v3073
        %v3512 = vpop.permute.xlu0 %3511
        %3515 = vset.pattern.permute.xlu0 0
        %3516 = vperm.xlu0 %3515, %v3074
        %v3517 = vpop.permute.xlu0 %3516
        %3520 = vset.pattern.permute.xlu0 0
        %3521 = vperm.xlu0 %3520, %v3075
        %v3522 = vpop.permute.xlu0 %3521
        %v3524 = vsel %vm3011, %v3207, %v3140
        %v3525 = vsel %vm3011, %v3212, %v3141
        %v3526 = vsel %vm3011, %v3217, %v3142
        %v3527 = vsel %vm3011, %v3222, %v3143
        %v3528 = vsel %vm3011, %v3227, %v3144
        %v3529 = vsel %vm3011, %v3232, %v3145
        %v3530 = vsel %vm3011, %v3237, %v3146
        %v3531 = vsel %vm3011, %v3242, %v3147
        %v3532 = vsel %vm3011, %v3247, %v3148
        %v3533 = vsel %vm3011, %v3252, %v3149
        %v3534 = vsel %vm3011, %v3257, %v3150
        %v3535 = vsel %vm3011, %v3262, %v3151
        %v3536 = vsel %vm3011, %v3267, %v3152
        %v3537 = vsel %vm3011, %v3272, %v3153
        %v3538 = vsel %vm3011, %v3277, %v3154
        %v3539 = vsel %vm3011, %v3282, %v3155
        %v3540 = vsel %vm3011, %v3287, %v3156
        %v3541 = vsel %vm3011, %v3292, %v3157
        %v3542 = vsel %vm3011, %v3297, %v3158
        %v3543 = vsel %vm3011, %v3302, %v3159
        %v3544 = vsel %vm3011, %v3307, %v3160
        %v3545 = vsel %vm3011, %v3312, %v3161
        %v3546 = vsel %vm3011, %v3317, %v3162
        %v3547 = vsel %vm3011, %v3322, %v3163
        %v3548 = vsel %vm3011, %v3327, %v3164
        %v3549 = vsel %vm3011, %v3332, %v3165
        %v3550 = vsel %vm3011, %v3337, %v3166
        %v3551 = vsel %vm3011, %v3342, %v3167
        %v3552 = vsel %vm3011, %v3347, %v3168
        %v3553 = vsel %vm3011, %v3352, %v3169
        %v3554 = vsel %vm3011, %v3357, %v3170
        %v3555 = vsel %vm3011, %v3362, %v3171
        %v3556 = vsel %vm3011, %v3367, %v3172
        %v3557 = vsel %vm3011, %v3372, %v3173
        %v3558 = vsel %vm3011, %v3377, %v3174
        %v3559 = vsel %vm3011, %v3382, %v3175
        %v3560 = vsel %vm3011, %v3387, %v3176
        %v3561 = vsel %vm3011, %v3392, %v3177
        %v3562 = vsel %vm3011, %v3397, %v3178
        %v3563 = vsel %vm3011, %v3402, %v3179
        %v3564 = vsel %vm3011, %v3407, %v3180
        %v3565 = vsel %vm3011, %v3412, %v3181
        %v3566 = vsel %vm3011, %v3417, %v3182
        %v3567 = vsel %vm3011, %v3422, %v3183
        %v3568 = vsel %vm3011, %v3427, %v3184
        %v3569 = vsel %vm3011, %v3432, %v3185
        %v3570 = vsel %vm3011, %v3437, %v3186
        %v3571 = vsel %vm3011, %v3442, %v3187
        %v3572 = vsel %vm3011, %v3447, %v3188
        %v3573 = vsel %vm3011, %v3452, %v3189
        %v3574 = vsel %vm3011, %v3457, %v3190
        %v3575 = vsel %vm3011, %v3462, %v3191
        %v3576 = vsel %vm3011, %v3467, %v3192
        %v3577 = vsel %vm3011, %v3472, %v3193
        %v3578 = vsel %vm3011, %v3477, %v3194
        %v3579 = vsel %vm3011, %v3482, %v3195
        %v3580 = vsel %vm3011, %v3487, %v3196
        %v3581 = vsel %vm3011, %v3492, %v3197
        %v3582 = vsel %vm3011, %v3497, %v3198
        %v3583 = vsel %vm3011, %v3502, %v3199
        %v3584 = vsel %vm3011, %v3507, %v3200
        %v3585 = vsel %vm3011, %v3512, %v3201
        %v3586 = vsel %vm3011, %v3517, %v3202
        %v3587 = vsel %vm3011, %v3522, %v3203
        %v3588 = vpack.c.bf16 %v3525, %v3524
        %v3589 = vpack.c.bf16 %v3527, %v3526
        %v3590 = vpack.c.bf16 %v3529, %v3528
        %v3591 = vpack.c.bf16 %v3531, %v3530
        %v3592 = vpack.c.bf16 %v3533, %v3532
        %v3593 = vpack.c.bf16 %v3535, %v3534
        %v3594 = vpack.c.bf16 %v3537, %v3536
        %v3595 = vpack.c.bf16 %v3539, %v3538
        %v3596 = vpack.c.bf16 %v3541, %v3540
        %v3597 = vpack.c.bf16 %v3543, %v3542
        %v3598 = vpack.c.bf16 %v3545, %v3544
        %v3599 = vpack.c.bf16 %v3547, %v3546
        %v3600 = vpack.c.bf16 %v3549, %v3548
        %v3601 = vpack.c.bf16 %v3551, %v3550
        %v3602 = vpack.c.bf16 %v3553, %v3552
        %v3603 = vpack.c.bf16 %v3555, %v3554
        %v3604 = vpack.c.bf16 %v3557, %v3556
        %v3605 = vpack.c.bf16 %v3559, %v3558
        %v3606 = vpack.c.bf16 %v3561, %v3560
        %v3607 = vpack.c.bf16 %v3563, %v3562
        %v3608 = vpack.c.bf16 %v3565, %v3564
        %v3609 = vpack.c.bf16 %v3567, %v3566
        %v3610 = vpack.c.bf16 %v3569, %v3568
        %v3611 = vpack.c.bf16 %v3571, %v3570
        %v3612 = vpack.c.bf16 %v3573, %v3572
        %v3613 = vpack.c.bf16 %v3575, %v3574
        %v3614 = vpack.c.bf16 %v3577, %v3576
        %v3615 = vpack.c.bf16 %v3579, %v3578
        %v3616 = vpack.c.bf16 %v3581, %v3580
        %v3617 = vpack.c.bf16 %v3583, %v3582
        %v3618 = vpack.c.bf16 %v3585, %v3584
        %v3619 = vpack.c.bf16 %v3587, %v3586
        %v3652 = vunpack.c.l.b16 %v3588
        %v3653 = vunpack.c.h.b16 %v3588
        %v3654 = vunpack.c.l.b16 %v3589
        %v3655 = vunpack.c.h.b16 %v3589
        %v3656 = vunpack.c.l.b16 %v3590
        %v3657 = vunpack.c.h.b16 %v3590
        %v3658 = vunpack.c.l.b16 %v3591
        %v3659 = vunpack.c.h.b16 %v3591
        %v3660 = vunpack.c.l.b16 %v3592
        %v3661 = vunpack.c.h.b16 %v3592
        %v3662 = vunpack.c.l.b16 %v3593
        %v3663 = vunpack.c.h.b16 %v3593
        %v3664 = vunpack.c.l.b16 %v3594
        %v3665 = vunpack.c.h.b16 %v3594
        %v3666 = vunpack.c.l.b16 %v3595
        %v3667 = vunpack.c.h.b16 %v3595
        %v3668 = vunpack.c.l.b16 %v3596
        %v3669 = vunpack.c.h.b16 %v3596
        %v3670 = vunpack.c.l.b16 %v3597
        %v3671 = vunpack.c.h.b16 %v3597
        %v3672 = vunpack.c.l.b16 %v3598
        %v3673 = vunpack.c.h.b16 %v3598
        %v3674 = vunpack.c.l.b16 %v3599
        %v3675 = vunpack.c.h.b16 %v3599
        %v3676 = vunpack.c.l.b16 %v3600
        %v3677 = vunpack.c.h.b16 %v3600
        %v3678 = vunpack.c.l.b16 %v3601
        %v3679 = vunpack.c.h.b16 %v3601
        %v3680 = vunpack.c.l.b16 %v3602
        %v3681 = vunpack.c.h.b16 %v3602
        %v3682 = vunpack.c.l.b16 %v3603
        %v3683 = vunpack.c.h.b16 %v3603
        %v3684 = vunpack.c.l.b16 %v3604
        %v3685 = vunpack.c.h.b16 %v3604
        %v3686 = vunpack.c.l.b16 %v3605
        %v3687 = vunpack.c.h.b16 %v3605
        %v3688 = vunpack.c.l.b16 %v3606
        %v3689 = vunpack.c.h.b16 %v3606
        %v3690 = vunpack.c.l.b16 %v3607
        %v3691 = vunpack.c.h.b16 %v3607
        %v3692 = vunpack.c.l.b16 %v3608
        %v3693 = vunpack.c.h.b16 %v3608
        %v3694 = vunpack.c.l.b16 %v3609
        %v3695 = vunpack.c.h.b16 %v3609
        %v3696 = vunpack.c.l.b16 %v3610
        %v3697 = vunpack.c.h.b16 %v3610
        %v3698 = vunpack.c.l.b16 %v3611
        %v3699 = vunpack.c.h.b16 %v3611
        %v3700 = vunpack.c.l.b16 %v3612
        %v3701 = vunpack.c.h.b16 %v3612
        %v3702 = vunpack.c.l.b16 %v3613
        %v3703 = vunpack.c.h.b16 %v3613
        %v3704 = vunpack.c.l.b16 %v3614
        %v3705 = vunpack.c.h.b16 %v3614
        %v3706 = vunpack.c.l.b16 %v3615
        %v3707 = vunpack.c.h.b16 %v3615
        %v3708 = vunpack.c.l.b16 %v3616
        %v3709 = vunpack.c.h.b16 %v3616
        %v3710 = vunpack.c.l.b16 %v3617
        %v3711 = vunpack.c.h.b16 %v3617
        %v3712 = vunpack.c.l.b16 %v3618
        %v3713 = vunpack.c.h.b16 %v3618
        %v3714 = vunpack.c.l.b16 %v3619
        %v3715 = vunpack.c.h.b16 %v3619
        %v3716 = vpack.c.b16 %v3652, %v3652
        %v3717 = vpack.c.b16 %v3653, %v3653
        %v3718 = vpack.c.b16 %v3654, %v3654
        %v3719 = vpack.c.b16 %v3655, %v3655
        %v3720 = vpack.c.b16 %v3656, %v3656
        %v3721 = vpack.c.b16 %v3657, %v3657
        %v3722 = vpack.c.b16 %v3658, %v3658
        %v3723 = vpack.c.b16 %v3659, %v3659
        %v3724 = vpack.c.b16 %v3660, %v3660
        %v3725 = vpack.c.b16 %v3661, %v3661
        %v3726 = vpack.c.b16 %v3662, %v3662
        %v3727 = vpack.c.b16 %v3663, %v3663
        %v3728 = vpack.c.b16 %v3664, %v3664
        %v3729 = vpack.c.b16 %v3665, %v3665
        %v3730 = vpack.c.b16 %v3666, %v3666
        %v3731 = vpack.c.b16 %v3667, %v3667
        %v3732 = vpack.c.b16 %v3668, %v3668
        %v3733 = vpack.c.b16 %v3669, %v3669
        %v3734 = vpack.c.b16 %v3670, %v3670
        %v3735 = vpack.c.b16 %v3671, %v3671
        %v3736 = vpack.c.b16 %v3672, %v3672
        %v3737 = vpack.c.b16 %v3673, %v3673
        %v3738 = vpack.c.b16 %v3674, %v3674
        %v3739 = vpack.c.b16 %v3675, %v3675
        %v3740 = vpack.c.b16 %v3676, %v3676
        %v3741 = vpack.c.b16 %v3677, %v3677
        %v3742 = vpack.c.b16 %v3678, %v3678
        %v3743 = vpack.c.b16 %v3679, %v3679
        %v3744 = vpack.c.b16 %v3680, %v3680
        %v3745 = vpack.c.b16 %v3681, %v3681
        %v3746 = vpack.c.b16 %v3682, %v3682
        %v3747 = vpack.c.b16 %v3683, %v3683
        %v3748 = vpack.c.b16 %v3684, %v3684
        %v3749 = vpack.c.b16 %v3685, %v3685
        %v3750 = vpack.c.b16 %v3686, %v3686
        %v3751 = vpack.c.b16 %v3687, %v3687
        %v3752 = vpack.c.b16 %v3688, %v3688
        %v3753 = vpack.c.b16 %v3689, %v3689
        %v3754 = vpack.c.b16 %v3690, %v3690
        %v3755 = vpack.c.b16 %v3691, %v3691
        %v3756 = vpack.c.b16 %v3692, %v3692
        %v3757 = vpack.c.b16 %v3693, %v3693
        %v3758 = vpack.c.b16 %v3694, %v3694
        %v3759 = vpack.c.b16 %v3695, %v3695
        %v3760 = vpack.c.b16 %v3696, %v3696
        %v3761 = vpack.c.b16 %v3697, %v3697
        %v3762 = vpack.c.b16 %v3698, %v3698
        %v3763 = vpack.c.b16 %v3699, %v3699
        %v3764 = vpack.c.b16 %v3700, %v3700
        %v3765 = vpack.c.b16 %v3701, %v3701
        %v3766 = vpack.c.b16 %v3702, %v3702
        %v3767 = vpack.c.b16 %v3703, %v3703
        %v3768 = vpack.c.b16 %v3704, %v3704
        %v3769 = vpack.c.b16 %v3705, %v3705
        %v3770 = vpack.c.b16 %v3706, %v3706
        %v3771 = vpack.c.b16 %v3707, %v3707
        %v3772 = vpack.c.b16 %v3708, %v3708
        %v3773 = vpack.c.b16 %v3709, %v3709
        %v3774 = vpack.c.b16 %v3710, %v3710
        %v3775 = vpack.c.b16 %v3711, %v3711
        %v3776 = vpack.c.b16 %v3712, %v3712
        %v3777 = vpack.c.b16 %v3713, %v3713
        %v3778 = vpack.c.b16 %v3714, %v3714
        %v3779 = vpack.c.b16 %v3715, %v3715
        %vm3844 = vcmask 60416
        %3845 = vst.msk [vmem:[%s3] sm:$0xf] %vm3844, %v3716
        %3846 = vst.msk [vmem:[%s3 + $0x4] sm:$0xf] %vm3844, %v3717
        %3847 = vst.msk [vmem:[%s3 + $0x8] sm:$0xf] %vm3844, %v3718
        %3848 = vst.msk [vmem:[%s3 + $0xc] sm:$0xf] %vm3844, %v3719
        %3849 = vst.msk [vmem:[%s3 + $0x10] sm:$0xf] %vm3844, %v3720
        %3850 = vst.msk [vmem:[%s3 + $0x14] sm:$0xf] %vm3844, %v3721
        %3851 = vst.msk [vmem:[%s3 + $0x18] sm:$0xf] %vm3844, %v3722
        %3852 = vst.msk [vmem:[%s3 + $0x1c] sm:$0xf] %vm3844, %v3723
        %3853 = vst.msk [vmem:[%s3 + $0x20] sm:$0xf] %vm3844, %v3724
        %3854 = vst.msk [vmem:[%s3 + $0x24] sm:$0xf] %vm3844, %v3725
        %3855 = vst.msk [vmem:[%s3 + $0x28] sm:$0xf] %vm3844, %v3726
        %3856 = vst.msk [vmem:[%s3 + $0x2c] sm:$0xf] %vm3844, %v3727
        %3857 = vst.msk [vmem:[%s3 + $0x30] sm:$0xf] %vm3844, %v3728
        %3858 = vst.msk [vmem:[%s3 + $0x34] sm:$0xf] %vm3844, %v3729
        %3859 = vst.msk [vmem:[%s3 + $0x38] sm:$0xf] %vm3844, %v3730
        %3860 = vst.msk [vmem:[%s3 + $0x3c] sm:$0xf] %vm3844, %v3731
        %3861 = vst.msk [vmem:[%s3 + $0x40] sm:$0xf] %vm3844, %v3732
        %3862 = vst.msk [vmem:[%s3 + $0x44] sm:$0xf] %vm3844, %v3733
        %3863 = vst.msk [vmem:[%s3 + $0x48] sm:$0xf] %vm3844, %v3734
        %3864 = vst.msk [vmem:[%s3 + $0x4c] sm:$0xf] %vm3844, %v3735
        %3865 = vst.msk [vmem:[%s3 + $0x50] sm:$0xf] %vm3844, %v3736
        %3866 = vst.msk [vmem:[%s3 + $0x54] sm:$0xf] %vm3844, %v3737
        %3867 = vst.msk [vmem:[%s3 + $0x58] sm:$0xf] %vm3844, %v3738
        %3868 = vst.msk [vmem:[%s3 + $0x5c] sm:$0xf] %vm3844, %v3739
        %3869 = vst.msk [vmem:[%s3 + $0x60] sm:$0xf] %vm3844, %v3740
        %3870 = vst.msk [vmem:[%s3 + $0x64] sm:$0xf] %vm3844, %v3741
        %3871 = vst.msk [vmem:[%s3 + $0x68] sm:$0xf] %vm3844, %v3742
        %3872 = vst.msk [vmem:[%s3 + $0x6c] sm:$0xf] %vm3844, %v3743
        %3873 = vst.msk [vmem:[%s3 + $0x70] sm:$0xf] %vm3844, %v3744
        %3874 = vst.msk [vmem:[%s3 + $0x74] sm:$0xf] %vm3844, %v3745
        %3875 = vst.msk [vmem:[%s3 + $0x78] sm:$0xf] %vm3844, %v3746
        %3876 = vst.msk [vmem:[%s3 + $0x7c] sm:$0xf] %vm3844, %v3747
        %3877 = vst.msk [vmem:[%s3 + $0x80] sm:$0xf] %vm3844, %v3748
        %3878 = vst.msk [vmem:[%s3 + $0x84] sm:$0xf] %vm3844, %v3749
        %3879 = vst.msk [vmem:[%s3 + $0x88] sm:$0xf] %vm3844, %v3750
        %3880 = vst.msk [vmem:[%s3 + $0x8c] sm:$0xf] %vm3844, %v3751
        %3881 = vst.msk [vmem:[%s3 + $0x90] sm:$0xf] %vm3844, %v3752
        %3882 = vst.msk [vmem:[%s3 + $0x94] sm:$0xf] %vm3844, %v3753
        %3883 = vst.msk [vmem:[%s3 + $0x98] sm:$0xf] %vm3844, %v3754
        %3884 = vst.msk [vmem:[%s3 + $0x9c] sm:$0xf] %vm3844, %v3755
        %3885 = vst.msk [vmem:[%s3 + $0xa0] sm:$0xf] %vm3844, %v3756
        %3886 = vst.msk [vmem:[%s3 + $0xa4] sm:$0xf] %vm3844, %v3757
        %3887 = vst.msk [vmem:[%s3 + $0xa8] sm:$0xf] %vm3844, %v3758
        %3888 = vst.msk [vmem:[%s3 + $0xac] sm:$0xf] %vm3844, %v3759
        %3889 = vst.msk [vmem:[%s3 + $0xb0] sm:$0xf] %vm3844, %v3760
        %3890 = vst.msk [vmem:[%s3 + $0xb4] sm:$0xf] %vm3844, %v3761
        %3891 = vst.msk [vmem:[%s3 + $0xb8] sm:$0xf] %vm3844, %v3762
        %3892 = vst.msk [vmem:[%s3 + $0xbc] sm:$0xf] %vm3844, %v3763
        %3893 = vst.msk [vmem:[%s3 + $0xc0] sm:$0xf] %vm3844, %v3764
        %3894 = vst.msk [vmem:[%s3 + $0xc4] sm:$0xf] %vm3844, %v3765
        %3895 = vst.msk [vmem:[%s3 + $0xc8] sm:$0xf] %vm3844, %v3766
        %3896 = vst.msk [vmem:[%s3 + $0xcc] sm:$0xf] %vm3844, %v3767
        %3897 = vst.msk [vmem:[%s3 + $0xd0] sm:$0xf] %vm3844, %v3768
        %3898 = vst.msk [vmem:[%s3 + $0xd4] sm:$0xf] %vm3844, %v3769
        %3899 = vst.msk [vmem:[%s3 + $0xd8] sm:$0xf] %vm3844, %v3770
        %3900 = vst.msk [vmem:[%s3 + $0xdc] sm:$0xf] %vm3844, %v3771
        %3901 = vst.msk [vmem:[%s3 + $0xe0] sm:$0xf] %vm3844, %v3772
        %3902 = vst.msk [vmem:[%s3 + $0xe4] sm:$0xf] %vm3844, %v3773
        %3903 = vst.msk [vmem:[%s3 + $0xe8] sm:$0xf] %vm3844, %v3774
        %3904 = vst.msk [vmem:[%s3 + $0xec] sm:$0xf] %vm3844, %v3775
        %3905 = vst.msk [vmem:[%s3 + $0xf0] sm:$0xf] %vm3844, %v3776
        %3906 = vst.msk [vmem:[%s3 + $0xf4] sm:$0xf] %vm3844, %v3777
        %3907 = vst.msk [vmem:[%s3 + $0xf8] sm:$0xf] %vm3844, %v3778
        %3908 = vst.msk [vmem:[%s3 + $0xfc] sm:$0xf] %vm3844, %v3779
      $region44: #{tpu_custom_call.1} parent=31 // pred_fallthru
        _
      // Predicated region
      $region45: #{tpu_custom_call.1} parent=31 // pred_check
        %p3909 = pneg %p109
      $region46: #{tpu_custom_call.1} parent=31 // pred_check_branch
        %3911 = sbr.rel (%p3909) target = $region48
      $region47: #{tpu_custom_call.1} parent=31 // pred_region
        _
      $region48: #{tpu_custom_call.1} parent=31 // pred_fallthru
        _
      // Predicated region
      $region49: #{tpu_custom_call.1} parent=31 // pred_check
        %p3912 = pneg %p109
      $region50: #{tpu_custom_call.1} parent=31 // pred_check_branch
        %3914 = sbr.rel (%p3912) target = $region52
      $region51: #{tpu_custom_call.1} parent=31 // pred_region
        _
      $region52: #{tpu_custom_call.1} parent=31 // pred_fallthru
        _
    $region32: #{tpu_custom_call.1} parent=5 // pred_fallthru
      _
    %p3915 = scmp.le.s32.totalorder 2, %s9
    // Predicated region
    $region53: #{tpu_custom_call.1} parent=5 // pred_check
      %p3916 = pneg %p3915
    $region54: #{tpu_custom_call.1} parent=5 // pred_check_branch
      %3918 = sbr.rel (%p3916) target = $region56
    $region55: #{tpu_custom_call.1} parent=5 // pred_region
      %s3919 = ssub.s32 %s9, 2
    $region56: #{tpu_custom_call.1} parent=5 // pred_fallthru
      _
  $region6: #{tpu_custom_call.1} parent=0 // loop_footer
    %s13 = sadd.s32 1, %s9
  $region7: #{tpu_custom_call.1} parent=0 // loop_footer_branch
    %8 = sbr.rel target = $region3
  $region8: #{tpu_custom_call.1} parent=0 // loop_exit
    _

</llo_original>
